<compile_context>
chip_gen: v5e
topology: v5e:2x2
jax: 0.10.0
libtpu: 0.0.40
codegen_flags: <defaults>
</compile_context>

<pallas_src>
import functools
import math

import jax
import jax.numpy as jnp
from jax.experimental import pallas as pl
from jax.experimental.pallas import tpu as pltpu

# MXU input dtype.  Weights are cast at PACK time; activations are cast right before each
# matmul; accumulation is always f32.  Set to jnp.float32 for exact reference numerics.
MATMUL_DTYPE = jnp.bfloat16

_NEG_INF = -1e30      # finite "masked" value: exp underflows to exactly 0, no inf-inf NaN
_LN_EPS = 1e-5


# ----------------------------------------------------------------------- in-kernel helpers ----

def _mm(a, b):
    """a @ b (MXU, f32 accumulation)."""
    return jax.lax.dot_general(
        a.astype(MATMUL_DTYPE), b.astype(MATMUL_DTYPE),
        (((1,), (0,)), ((), ())), preferred_element_type=jnp.float32)


def _mm_nt(a, b):
    """a @ b.T with the transpose folded into the MXU operand feed (contract last dims)."""
    return jax.lax.dot_general(
        a.astype(MATMUL_DTYPE), b.astype(MATMUL_DTYPE),
        (((1,), (1,)), ((), ())), preferred_element_type=jnp.float32)


def _mm_tn(a, b):
    """a.T @ b with the transpose folded into the MXU operand feed (contract sublane dims)."""
    return jax.lax.dot_general(
        a.astype(MATMUL_DTYPE), b.astype(MATMUL_DTYPE),
        (((0,), (0,)), ((), ())), preferred_element_type=jnp.float32)


def _layernorm(x, g, b):
    mu = jnp.mean(x, axis=-1, keepdims=True)
    var = jnp.mean(jnp.square(x - mu), axis=-1, keepdims=True)
    return (x - mu) * jax.lax.rsqrt(var + _LN_EPS) * g + b


def _heads_attention(qT, kT, vT, wo, bo, nhead, causal):
    """Multi-head attention + output projection.

    qT: (D, Lq), kT/vT: (D, Lk) feature-major, so every head split is an 8-aligned sublane
    slice.  The 1/sqrt(Dh) score scale is pre-folded into the packed Q weights.  Head
    outputs stay feature-major, are concatenated on the sublane axis and go through ONE
    K=D output-projection matmul.  No explicit transposes anywhere.  Returns (Lq, D).
    """
    D, Lq = qT.shape
    Lk = kT.shape[1]
    Dh = D // nhead

    bias = None
    if causal:
        row = jax.lax.broadcasted_iota(jnp.int32, (Lq, Lk), 0)
        col = jax.lax.broadcasted_iota(jnp.int32, (Lq, Lk), 1)
        bias = jnp.where(col > row, jnp.float32(_NEG_INF), jnp.float32(0.0))

    # TODO(synk): for nhead >= 8 / long L, switch this static unroll to lax.fori_loop over
    # heads (bounds the live (Lq, Lk) score temporaries to one head -> no vreg spills).
    heads = []
    for h in range(nhead):
        sl = slice(h * Dh, (h + 1) * Dh)            # sublane-aligned head slice
        s = _mm_tn(qT[sl, :], kT[sl, :])            # (Lq, Lk); 1/sqrt(Dh) folded into Wq
        if causal:
            s = s + bias
        s = s - jnp.max(s, axis=-1, keepdims=True)
        p = jnp.exp(s)
        p = p * pl.reciprocal(jnp.sum(p, axis=-1, keepdims=True), approx=True)
        heads.append(_mm_nt(vT[sl, :], p))          # (Dh, Lq) feature-major head output
    attnT = jnp.concatenate(heads, axis=0)          # (D, Lq): sublane concat
    return _mm_tn(attnT, wo) + bo                   # single K=D out-projection -> (Lq, D)


# ------------------------------------------------------------------------------- kernels ----

def _conv_pe_kernel(x_ref, w_ref, b_ref, pe_ref, o_ref):
    # Conv1d(k=3, pad=1) as three shifted in-VMEM matmuls (im2col never hits HBM), fused
    # with the PE add.  NOTE: pe_ref is indexed by the BATCH axis (reference-module quirk).
    T = o_ref.shape[1]
    xp = x_ref[0]                                           # (T+2, Cin), zero-padded
    acc = _mm(xp[0:T, :], w_ref[0])
    acc = acc + _mm(xp[1:T + 1, :], w_ref[1])
    acc = acc + _mm(xp[2:T + 2, :], w_ref[2])
    o_ref[0] = acc + b_ref[...] + pe_ref[0]


def _enc_layer_kernel(x_ref, wqkvT_ref, bqkvT_ref, wo_ref, bo_ref,
                      w1_ref, b1_ref, w2_ref, b2_ref, norms_ref, o_ref, *, nhead):
    x = x_ref[0]                                            # (L, D)
    D = x.shape[1]
    # fused QKV projection, feature-major, transpose folded into dot_general
    qkvT = _mm_nt(wqkvT_ref[...], x) + bqkvT_ref[...]       # (3D, L)
    a = _heads_attention(qkvT[0:D, :], qkvT[D:2 * D, :], qkvT[2 * D:3 * D, :],
                         wo_ref[...], bo_ref[...], nhead, causal=False)
    x = _layernorm(x + a, norms_ref[0:1, :], norms_ref[1:2, :])
    h = jnp.maximum(_mm(x, w1_ref[...]) + b1_ref[...], 0.0)
    h = _mm(h, w2_ref[...]) + b2_ref[...]
    o_ref[0] = _layernorm(x + h, norms_ref[2:3, :], norms_ref[3:4, :])


def _dec_layer_kernel(y_ref, mem_ref,
                      s_wqkvT_ref, s_bqkvT_ref, s_wo_ref, s_bo_ref,
                      c_wqT_ref, c_bqT_ref, c_wkvT_ref, c_bkvT_ref, c_wo_ref, c_bo_ref,
                      w1_ref, b1_ref, w2_ref, b2_ref, norms_ref, o_ref, *, nhead):
    y = y_ref[0]                                            # (L, D)
    m = mem_ref[0]                                          # (T, D)
    D = y.shape[1]
    # causal self-attention (mask generated in-kernel)
    qkvT = _mm_nt(s_wqkvT_ref[...], y) + s_bqkvT_ref[...]   # (3D, L)
    a = _heads_attention(qkvT[0:D, :], qkvT[D:2 * D, :], qkvT[2 * D:3 * D, :],
                         s_wo_ref[...], s_bo_ref[...], nhead, causal=True)
    y = _layernorm(y + a, norms_ref[0:1, :], norms_ref[1:2, :])
    # cross-attention over encoder memory (fused KV projection)
    qT = _mm_nt(c_wqT_ref[...], y) + c_bqT_ref[...]         # (D, L)
    kvT = _mm_nt(c_wkvT_ref[...], m) + c_bkvT_ref[...]      # (2D, T)
    a = _heads_attention(qT, kvT[0:D, :], kvT[D:2 * D, :],
                         c_wo_ref[...], c_bo_ref[...], nhead, causal=False)
    y = _layernorm(y + a, norms_ref[2:3, :], norms_ref[3:4, :])
    # feed-forward
    h = jnp.maximum(_mm(y, w1_ref[...]) + b1_ref[...], 0.0)
    h = _mm(h, w2_ref[...]) + b2_ref[...]
    o_ref[0] = _layernorm(y + h, norms_ref[4:5, :], norms_ref[5:6, :])


def _fc_kernel(x_ref, w_ref, b_ref, o_ref):
    o_ref[0] = _mm(x_ref[0], w_ref[...]) + b_ref[...]


# ------------------------------------------------------------------------------ wrappers ----

@functools.lru_cache(maxsize=None)
def _vmem_limit_bytes():
    # ~80% of physical VMEM, capped at 100 MiB (leaves double-buffer headroom on v5e/v6e's
    # 128 MiB and stays well inside v7x's 64 MiB).
    try:
        cap = int(pltpu.get_tpu_info().vmem_capacity_bytes)
    except Exception:
        cap = 128 << 20
    return int(min(100 << 20, (cap * 4) // 5))


def _cparams(n_parallel):
    return pltpu.CompilerParams(
        dimension_semantics=("parallel",) * n_parallel,
        vmem_limit_bytes=_vmem_limit_bytes())


def conv1d_pe(src, w3, b, pe):
    """Fused Conv1d(n_mels->D, k=3, pad=1) + (batch-indexed) positional encoding."""
    B, T, Cin = src.shape
    D = w3.shape[2]
    xpad = jnp.pad(src, ((0, 0), (1, 1), (0, 0)))           # only the zero padding in XLA
    pe_b = pe[:B].reshape(B, 1, D)   # reference module quirk: PE indexed by batch position
    return pl.pallas_call(
        _conv_pe_kernel,
        out_shape=jax.ShapeDtypeStruct((B, T, D), jnp.float32),
        grid=(B,),
        in_specs=[
            pl.BlockSpec((1, T + 2, Cin), lambda i: (i, 0, 0)),
            pl.BlockSpec((3, Cin, D), lambda i: (0, 0, 0)),
            pl.BlockSpec((1, D), lambda i: (0, 0)),
            pl.BlockSpec((1, 1, D), lambda i: (i, 0, 0)),
        ],
        out_specs=pl.BlockSpec((1, T, D), lambda i: (i, 0, 0)),
        compiler_params=_cparams(1),
    )(xpad, w3, b, pe_b)


def encoder_layer(x, p, nhead):
    # TODO(synk): for realistic L (~1k+) / D=512 on v7x (64 MiB VMEM), add a query-row tile
    # grid axis (flash-style) so activations stream through in tiles; at these sizes the
    # whole layer fits comfortably under the explicit vmem_limit.
    B, L, D = x.shape
    F = p["w1"].shape[1]
    return pl.pallas_call(
        functools.partial(_enc_layer_kernel, nhead=nhead),
        out_shape=jax.ShapeDtypeStruct((B, L, D), jnp.float32),
        grid=(B,),
        in_specs=[
            pl.BlockSpec((1, L, D), lambda i: (i, 0, 0)),
            pl.BlockSpec((3 * D, D), lambda i: (0, 0)),
            pl.BlockSpec((3 * D, 1), lambda i: (0, 0)),
            pl.BlockSpec((D, D), lambda i: (0, 0)),
            pl.BlockSpec((1, D), lambda i: (0, 0)),
            pl.BlockSpec((D, F), lambda i: (0, 0)),
            pl.BlockSpec((1, F), lambda i: (0, 0)),
            pl.BlockSpec((F, D), lambda i: (0, 0)),
            pl.BlockSpec((1, D), lambda i: (0, 0)),
            pl.BlockSpec((4, D), lambda i: (0, 0)),
        ],
        out_specs=pl.BlockSpec((1, L, D), lambda i: (i, 0, 0)),
        compiler_params=_cparams(1),
    )(x, p["wqkvT"], p["bqkvT"], p["wo"], p["bo"],
      p["w1"], p["b1"], p["w2"], p["b2"], p["norms"])


def decoder_layer(y, memory, p, nhead):
    B, L, D = y.shape
    T = memory.shape[1]
    F = p["w1"].shape[1]
    return pl.pallas_call(
        functools.partial(_dec_layer_kernel, nhead=nhead),
        out_shape=jax.ShapeDtypeStruct((B, L, D), jnp.float32),
        grid=(B,),
        in_specs=[
            pl.BlockSpec((1, L, D), lambda i: (i, 0, 0)),
            pl.BlockSpec((1, T, D), lambda i: (i, 0, 0)),
            pl.BlockSpec((3 * D, D), lambda i: (0, 0)),
            pl.BlockSpec((3 * D, 1), lambda i: (0, 0)),
            pl.BlockSpec((D, D), lambda i: (0, 0)),
            pl.BlockSpec((1, D), lambda i: (0, 0)),
            pl.BlockSpec((D, D), lambda i: (0, 0)),
            pl.BlockSpec((D, 1), lambda i: (0, 0)),
            pl.BlockSpec((2 * D, D), lambda i: (0, 0)),
            pl.BlockSpec((2 * D, 1), lambda i: (0, 0)),
            pl.BlockSpec((D, D), lambda i: (0, 0)),
            pl.BlockSpec((1, D), lambda i: (0, 0)),
            pl.BlockSpec((D, F), lambda i: (0, 0)),
            pl.BlockSpec((1, F), lambda i: (0, 0)),
            pl.BlockSpec((F, D), lambda i: (0, 0)),
            pl.BlockSpec((1, D), lambda i: (0, 0)),
            pl.BlockSpec((6, D), lambda i: (0, 0)),
        ],
        out_specs=pl.BlockSpec((1, L, D), lambda i: (i, 0, 0)),
        compiler_params=_cparams(1),
    )(y, memory,
      p["s_wqkvT"], p["s_bqkvT"], p["s_wo"], p["s_bo"],
      p["c_wqT"], p["c_bqT"], p["c_wkvT"], p["c_bkvT"], p["c_wo"], p["c_bo"],
      p["w1"], p["b1"], p["w2"], p["b2"], p["norms"])


def fc_out(y, w, b, vocab_size):
    """Vocab projection tiled over (batch, vocab).  The packed weight is padded to a
    multiple of 512 columns so every vocab size tiles cleanly (a few-hundred-KiB bf16
    weight tile, double-buffered), then the logits are sliced back to vocab_size."""
    B, L, D = y.shape
    Vp = w.shape[1]
    tv = min(Vp, 512)
    nv = Vp // tv
    out = pl.pallas_call(
        _fc_kernel,
        out_shape=jax.ShapeDtypeStruct((B, L, Vp), jnp.float32),
        grid=(B, nv),
        in_specs=[
            pl.BlockSpec((1, L, D), lambda i, j: (i, 0, 0)),
            pl.BlockSpec((D, tv), lambda i, j: (0, j)),
            pl.BlockSpec((1, tv), lambda i, j: (0, j)),
        ],
        out_specs=pl.BlockSpec((1, L, tv), lambda i, j: (i, 0, j)),
        compiler_params=_cparams(2),
    )(y, w, b)
    return out[..., :vocab_size]


def audio_captioning_forward(kp, src, tgt, nhead, vocab_size):
    """src: (B, T, n_mels) f32, tgt: (B, L_tgt) int32 -> logits (B, L_tgt-1, vocab)."""
    # ---- encoder ----
    x = conv1d_pe(src, kp["conv_w"], kp["conv_b"], kp["pe"])
    for lp in kp["enc_layers"]:
        x = encoder_layer(x, lp, nhead)
    memory = x
    # ---- decoder ----
    tgt_input = tgt[:, :-1]
    L = tgt_input.shape[1]
    # embedding gather + seq-indexed PE: cheap XLA glue (data-dependent gather)
    y = jnp.take(kp["embedding"], tgt_input, axis=0) + kp["pe"][:L][None, :, :]
    for lp in kp["dec_layers"]:
        y = decoder_layer(y, memory, lp, nhead)
    return fc_out(y, kp["fc_w"], kp["fc_b"], vocab_size)


# -------------------------------------------------------------------------- param init ----

class _KeyGen:
    def __init__(self, key):
        self.key = key

    def __call__(self):
        self.key, sub = jax.random.split(self.key)
        return sub


def _init_linear(kg, fan_in, fan_out):
    s = 1.0 / math.sqrt(fan_in)
    w = jax.random.uniform(kg(), (fan_in, fan_out), jnp.float32, -s, s)
    b = jax.random.uniform(kg(), (fan_out,), jnp.float32, -s, s)
    return w, b


def _init_attn(kg, d):
    p = {}
    for name in ("q", "k", "v", "o"):
        w, b = _init_linear(kg, d, d)
        p["w" + name], p["b" + name] = w, b
    return p


def _init_enc_layer(kg, d, dff):
    p = {"self_attn": _init_attn(kg, d)}
    p["w1"], p["b1"] = _init_linear(kg, d, dff)
    p["w2"], p["b2"] = _init_linear(kg, dff, d)
    for n in ("norm1", "norm2"):
        p[n + "_g"] = jnp.ones((d,), jnp.float32)
        p[n + "_b"] = jnp.zeros((d,), jnp.float32)
    return p


def _init_dec_layer(kg, d, dff):
    p = {"self_attn": _init_attn(kg, d), "cross_attn": _init_attn(kg, d)}
    p["w1"], p["b1"] = _init_linear(kg, d, dff)
    p["w2"], p["b2"] = _init_linear(kg, dff, d)
    for n in ("norm1", "norm2", "norm3"):
        p[n + "_g"] = jnp.ones((d,), jnp.float32)
        p[n + "_b"] = jnp.zeros((d,), jnp.float32)
    return p


def make_positional_encoding(max_len, d_model):
    position = jnp.arange(max_len, dtype=jnp.float32)[:, None]
    div_term = jnp.exp(jnp.arange(0, d_model, 2, dtype=jnp.float32)
                       * (-math.log(10000.0) / d_model))
    pe = jnp.zeros((max_len, d_model), jnp.float32)
    pe = pe.at[:, 0::2].set(jnp.sin(position * div_term))
    pe = pe.at[:, 1::2].set(jnp.cos(position * div_term))
    return pe


def init_params(key, n_mels, vocab_size, d_model, num_encoder_layers,
                num_decoder_layers, dim_feedforward, max_len=64):
    kg = _KeyGen(key)
    s = 1.0 / math.sqrt(n_mels * 3)
    params = {
        "conv_w": jax.random.uniform(kg(), (3, n_mels, d_model), jnp.float32, -s, s),
        "conv_b": jax.random.uniform(kg(), (d_model,), jnp.float32, -s, s),
        "pe": make_positional_encoding(max_len, d_model),
        "embedding": jax.random.normal(kg(), (vocab_size, d_model), jnp.float32),
        "enc_layers": [_init_enc_layer(kg, d_model, dim_feedforward)
                       for _ in range(num_encoder_layers)],
        "dec_layers": [_init_dec_layer(kg, d_model, dim_feedforward)
                       for _ in range(num_decoder_layers)],
    }
    params["fc_w"], params["fc_b"] = _init_linear(kg, d_model, vocab_size)
    return params


def pack_params(base, nhead):
    """Pack reference-layout params into the fused-kernel layout:
       * QKV (and cross-KV) concatenated and pre-transposed to (out_features, in_features)
       * 1/sqrt(Dh) attention scale pre-folded into the Q weights/bias
       * matmul weights cast to MATMUL_DTYPE (bf16) at pack time; biases/norms stay f32
       * biases as 2-D rows/columns, norm scales/offsets stacked per layer
       * fc_out weight/bias padded to a multiple of 512 vocab columns for clean tiling."""
    d_model = base["conv_w"].shape[2]
    scale = 1.0 / math.sqrt(d_model / nhead)

    def _row(v):
        return v.reshape(1, -1)

    def _col(v):
        return v.reshape(-1, 1)

    def _w(v):
        return v.astype(MATMUL_DTYPE)

    def _pack_self(a):
        wqkv = jnp.concatenate([a["wq"] * scale, a["wk"], a["wv"]], axis=1)   # (D, 3D)
        bqkv = jnp.concatenate([a["bq"] * scale, a["bk"], a["bv"]], axis=0)   # (3D,)
        return _w(wqkv.T), _col(bqkv), _w(a["wo"]), _row(a["bo"])

    def _pack_cross(a):
        wkv = jnp.concatenate([a["wk"], a["wv"]], axis=1)                     # (D, 2D)
        bkv = jnp.concatenate([a["bk"], a["bv"]], axis=0)
        return (_w((a["wq"] * scale).T), _col(a["bq"] * scale),
                _w(wkv.T), _col(bkv), _w(a["wo"]), _row(a["bo"]))

    V = base["fc_w"].shape[1]
    Vp = ((V + 511) // 512) * 512
    fc_w = jnp.pad(base["fc_w"], ((0, 0), (0, Vp - V)))
    fc_b = jnp.pad(base["fc_b"], (0, Vp - V))

    kp = {
        "conv_w": _w(base["conv_w"]),              # (3, Cin, D), sliced per tap in-kernel
        "conv_b": _row(base["conv_b"]),
        "pe": base["pe"],
        "embedding": base["embedding"],            # gathered in XLA glue; keep f32
        "fc_w": _w(fc_w),
        "fc_b": _row(fc_b),
        "enc_layers": [],
        "dec_layers": [],
    }
    for lp in base["enc_layers"]:
        wqkvT, bqkvT, wo, bo = _pack_self(lp["self_attn"])
        kp["enc_layers"].append({
            "wqkvT": wqkvT, "bqkvT": bqkvT, "wo": wo, "bo": bo,
            "w1": _w(lp["w1"]), "b1": _row(lp["b1"]),
            "w2": _w(lp["w2"]), "b2": _row(lp["b2"]),
            "norms": jnp.stack([lp["norm1_g"], lp["norm1_b"],
                                lp["norm2_g"], lp["norm2_b"]]),
        })
    for lp in base["dec_layers"]:
        s_wqkvT, s_bqkvT, s_wo, s_bo = _pack_self(lp["self_attn"])
        c_wqT, c_bqT, c_wkvT, c_bkvT, c_wo, c_bo = _pack_cross(lp["cross_attn"])
        kp["dec_layers"].append({
            "s_wqkvT": s_wqkvT, "s_bqkvT": s_bqkvT, "s_wo": s_wo, "s_bo": s_bo,
            "c_wqT": c_wqT, "c_bqT": c_bqT, "c_wkvT": c_wkvT, "c_bkvT": c_bkvT,
            "c_wo": c_wo, "c_bo": c_bo,
            "w1": _w(lp["w1"]), "b1": _row(lp["b1"]),
            "w2": _w(lp["w2"]), "b2": _row(lp["b2"]),
            "norms": jnp.stack([lp["norm1_g"], lp["norm1_b"],
                                lp["norm2_g"], lp["norm2_b"],
                                lp["norm3_g"], lp["norm3_b"]]),
        })
    return kp


# ----------------------------------------------------------------- pure-JAX reference ----

def _ref_layernorm(x, g, b):
    mu = jnp.mean(x, axis=-1, keepdims=True)
    var = jnp.mean(jnp.square(x - mu), axis=-1, keepdims=True)
    return (x - mu) / jnp.sqrt(var + _LN_EPS) * g + b


def _ref_mha(q_in, kv_in, p, nhead, causal=False):
    B, Lq, D = q_in.shape
    Lk = kv_in.shape[1]
    Dh = D // nhead
    q = (q_in @ p["wq"] + p["bq"]).reshape(B, Lq, nhead, Dh).transpose(0, 2, 1, 3)
    k = (kv_in @ p["wk"] + p["bk"]).reshape(B, Lk, nhead, Dh).transpose(0, 2, 1, 3)
    v = (kv_in @ p["wv"] + p["bv"]).reshape(B, Lk, nhead, Dh).transpose(0, 2, 1, 3)
    s = jnp.einsum("bhqd,bhkd->bhqk", q, k) / math.sqrt(Dh)
    if causal:
        mask = jnp.triu(jnp.ones((Lq, Lk), dtype=bool), k=1)
        s = s + jnp.where(mask, _NEG_INF, 0.0)
    a = jax.nn.softmax(s, axis=-1)
    o = jnp.einsum("bhqk,bhkd->bhqd", a, v).transpose(0, 2, 1, 3).reshape(B, Lq, D)
    return o @ p["wo"] + p["bo"]


def reference_forward(base, src, tgt, nhead):
    B, T, _ = src.shape
    xpad = jnp.pad(src, ((0, 0), (1, 1), (0, 0)))
    x = (xpad[:, 0:T] @ base["conv_w"][0] + xpad[:, 1:T + 1] @ base["conv_w"][1]
         + xpad[:, 2:T + 2] @ base["conv_w"][2] + base["conv_b"])
    x = x + base["pe"][:B][:, None, :]        # batch-indexed PE (reference module quirk)
    for lp in base["enc_layers"]:
        a = _ref_mha(x, x, lp["self_attn"], nhead)
        x = _ref_layernorm(x + a, lp["norm1_g"], lp["norm1_b"])
        h = jax.nn.relu(x @ lp["w1"] + lp["b1"]) @ lp["w2"] + lp["b2"]
        x = _ref_layernorm(x + h, lp["norm2_g"], lp["norm2_b"])
    memory = x
    tgt_input = tgt[:, :-1]
    L = tgt_input.shape[1]
    y = base["embedding"][tgt_input] + base["pe"][:L][None, :, :]
    for lp in base["dec_layers"]:
        a = _ref_mha(y, y, lp["self_attn"], nhead, causal=True)
        y = _ref_layernorm(y + a, lp["norm1_g"], lp["norm1_b"])
        a = _ref_mha(y, memory, lp["cross_attn"], nhead)
        y = _ref_layernorm(y + a, lp["norm2_g"], lp["norm2_b"])
        h = jax.nn.relu(y @ lp["w1"] + lp["b1"]) @ lp["w2"] + lp["b2"]
        y = _ref_layernorm(y + h, lp["norm3_g"], lp["norm3_b"])
    return y @ base["fc_w"] + base["fc_b"]


# --------------------------------------------------------------------------------- main ---

if __name__ == "__main__":
    # Small, shape-consistent config.
    n_mels = 8
    vocab_size = 32
    d_model = 32
    nhead = 4
    num_encoder_layers = 2
    num_decoder_layers = 2
    dim_feedforward = 64
    B, T, L_tgt = 2, 16, 9

    root = jax.random.PRNGKey(0)
    k_params, k_src, k_tgt = jax.random.split(root, 3)

    base = init_params(k_params, n_mels, vocab_size, d_model,
                       num_encoder_layers, num_decoder_layers, dim_feedforward)
    kparams = pack_params(base, nhead)

    src = jax.random.normal(k_src, (B, T, n_mels), jnp.float32)
    tgt = jax.random.randint(k_tgt, (B, L_tgt), 0, vocab_size, jnp.int32)

    fwd = jax.jit(functools.partial(audio_captioning_forward,
                                    nhead=nhead, vocab_size=vocab_size))
    out = jax.block_until_ready(fwd(kparams, src, tgt))

    assert out.shape == (B, L_tgt - 1, vocab_size), out.shape
    assert bool(jnp.all(jnp.isfinite(out)))

    # Loose sanity check against a pure-JAX f32 reference (kernel uses bf16 MXU inputs and
    # an approximate EUP reciprocal in the softmax, so only gross errors are guarded).
    with jax.default_matmul_precision("float32"):
        ref = jax.block_until_ready(reference_forward(base, src, tgt, nhead))
    err = float(jnp.max(jnp.abs(out - ref)))
    scale = float(jnp.max(jnp.abs(ref)))
    assert err <= 7.5e-2 * (1.0 + scale), (err, scale)

    print("KERNEL_OK")
</pallas_src>

<mosaic_0001>
module attributes {stable_mosaic.version = 11 : i64} {
  func.func @_enc_layer_kernel(%arg0: i32, %arg1: memref<1x16x32xf32, #tpu.memory_space<vmem>>, %arg2: memref<96x32xbf16, #tpu.memory_space<vmem>>, %arg3: memref<96x1xf32, #tpu.memory_space<vmem>>, %arg4: memref<32x32xbf16, #tpu.memory_space<vmem>>, %arg5: memref<1x32xf32, #tpu.memory_space<vmem>>, %arg6: memref<32x64xbf16, #tpu.memory_space<vmem>>, %arg7: memref<1x64xf32, #tpu.memory_space<vmem>>, %arg8: memref<64x32xbf16, #tpu.memory_space<vmem>>, %arg9: memref<1x32xf32, #tpu.memory_space<vmem>>, %arg10: memref<4x32xf32, #tpu.memory_space<vmem>>, %arg11: memref<1x16x32xf32, #tpu.memory_space<vmem>>) attributes {dimension_semantics = [#tpu.dimension_semantics<parallel>], iteration_bounds = array<i64: 2>, scalar_prefetch = 0 : i64, scratch_operands = 0 : i64, tpu.core_type = #tpu.core_type<tc>, window_params = [{transform_indices = @transform_0, window_bounds = array<i64: 1, 16, 32>}, {pipeline_mode = #tpu.pipeline_mode<synchronous>, transform_indices = @transform_1, window_bounds = array<i64: 96, 32>}, {pipeline_mode = #tpu.pipeline_mode<synchronous>, transform_indices = @transform_2, window_bounds = array<i64: 96, 1>}, {pipeline_mode = #tpu.pipeline_mode<synchronous>, transform_indices = @transform_3, window_bounds = array<i64: 32, 32>}, {pipeline_mode = #tpu.pipeline_mode<synchronous>, transform_indices = @transform_4, window_bounds = array<i64: 1, 32>}, {pipeline_mode = #tpu.pipeline_mode<synchronous>, transform_indices = @transform_5, window_bounds = array<i64: 32, 64>}, {pipeline_mode = #tpu.pipeline_mode<synchronous>, transform_indices = @transform_6, window_bounds = array<i64: 1, 64>}, {pipeline_mode = #tpu.pipeline_mode<synchronous>, transform_indices = @transform_7, window_bounds = array<i64: 64, 32>}, {pipeline_mode = #tpu.pipeline_mode<synchronous>, transform_indices = @transform_8, window_bounds = array<i64: 1, 32>}, {pipeline_mode = #tpu.pipeline_mode<synchronous>, transform_indices = @transform_9, window_bounds = array<i64: 4, 32>}, {transform_indices = @transform_10, window_bounds = array<i64: 1, 16, 32>}]} {
    %c0 = arith.constant 0 : index
    %c0_0 = arith.constant 0 : index
    %c0_1 = arith.constant 0 : index
    %0 = vector.load %arg1[%c0, %c0_0, %c0_1] : memref<1x16x32xf32, #tpu.memory_space<vmem>>, vector<1x16x32xf32>
    %1 = vector.shape_cast %0 : vector<1x16x32xf32> to vector<16x32xf32>
    %c0_2 = arith.constant 0 : index
    %c0_3 = arith.constant 0 : index
    %2 = vector.load %arg2[%c0_2, %c0_3] : memref<96x32xbf16, #tpu.memory_space<vmem>>, vector<96x32xbf16>
    %3 = arith.truncf %1 : vector<16x32xf32> to vector<16x32xbf16>
    %cst = arith.constant dense<0.000000e+00> : vector<96x16xf32>
    %4 = tpu.matmul %2, %3, %cst {dimension_numbers = #tpu.dot_dimension_numbers<[1], [1], [0], [0], [0, 0, 1, 0], [], []>} : vector<96x32xbf16>, vector<16x32xbf16>, vector<96x16xf32> -> vector<96x16xf32>
    %c0_4 = arith.constant 0 : index
    %c0_5 = arith.constant 0 : index
    %5 = vector.load %arg3[%c0_4, %c0_5] : memref<96x1xf32, #tpu.memory_space<vmem>>, vector<96x1xf32>
    %6 = vector.broadcast %5 : vector<96x1xf32> to vector<96x16xf32>
    %7 = arith.addf %4, %6 : vector<96x16xf32>
    %8 = vector.extract_strided_slice %7 {offsets = [0, 0], sizes = [32, 16], strides = [1, 1]} : vector<96x16xf32> to vector<32x16xf32>
    %9 = vector.extract_strided_slice %7 {offsets = [32, 0], sizes = [32, 16], strides = [1, 1]} : vector<96x16xf32> to vector<32x16xf32>
    %10 = vector.extract_strided_slice %7 {offsets = [64, 0], sizes = [32, 16], strides = [1, 1]} : vector<96x16xf32> to vector<32x16xf32>
    %c0_6 = arith.constant 0 : index
    %c0_7 = arith.constant 0 : index
    %11 = vector.load %arg4[%c0_6, %c0_7] : memref<32x32xbf16, #tpu.memory_space<vmem>>, vector<32x32xbf16>
    %c0_8 = arith.constant 0 : index
    %c0_9 = arith.constant 0 : index
    %12 = vector.load %arg5[%c0_8, %c0_9] : memref<1x32xf32, #tpu.memory_space<vmem>>, vector<1x32xf32>
    %13 = vector.extract_strided_slice %8 {offsets = [0, 0], sizes = [8, 16], strides = [1, 1]} : vector<32x16xf32> to vector<8x16xf32>
    %14 = vector.extract_strided_slice %9 {offsets = [0, 0], sizes = [8, 16], strides = [1, 1]} : vector<32x16xf32> to vector<8x16xf32>
    %15 = arith.truncf %13 : vector<8x16xf32> to vector<8x16xbf16>
    %16 = arith.truncf %14 : vector<8x16xf32> to vector<8x16xbf16>
    %cst_10 = arith.constant dense<0.000000e+00> : vector<16x16xf32>
    %17 = tpu.matmul %15, %16, %cst_10 {dimension_numbers = #tpu.dot_dimension_numbers<[0], [0], [1], [1], [0, 1, 1, 1], [], []>} : vector<8x16xbf16>, vector<8x16xbf16>, vector<16x16xf32> -> vector<16x16xf32>
    %cst_11 = arith.constant dense<0xFF800000> : vector<16xf32>
    %18 = vector.multi_reduction <maximumf>, %17, %cst_11 [1] : vector<16x16xf32> to vector<16xf32>
    %19 = vector.shape_cast %18 : vector<16xf32> to vector<16x1xf32>
    %20 = vector.broadcast %19 : vector<16x1xf32> to vector<16x16xf32>
    %21 = arith.subf %17, %20 : vector<16x16xf32>
    %22 = math.exp %21 : vector<16x16xf32>
    %cst_12 = arith.constant dense<0.000000e+00> : vector<16xf32>
    %23 = vector.multi_reduction <add>, %22, %cst_12 [1] : vector<16x16xf32> to vector<16xf32>
    %24 = vector.shape_cast %23 : vector<16xf32> to vector<16x1xf32>
    %25 = tpu.reciprocal %24 {approx = true} : vector<16x1xf32> -> vector<16x1xf32>
    %26 = vector.broadcast %25 : vector<16x1xf32> to vector<16x16xf32>
    %27 = arith.mulf %22, %26 : vector<16x16xf32>
    %28 = vector.extract_strided_slice %10 {offsets = [0, 0], sizes = [8, 16], strides = [1, 1]} : vector<32x16xf32> to vector<8x16xf32>
    %29 = arith.truncf %28 : vector<8x16xf32> to vector<8x16xbf16>
    %30 = arith.truncf %27 : vector<16x16xf32> to vector<16x16xbf16>
    %cst_13 = arith.constant dense<0.000000e+00> : vector<8x16xf32>
    %31 = tpu.matmul %29, %30, %cst_13 {dimension_numbers = #tpu.dot_dimension_numbers<[1], [1], [0], [0], [0, 0, 1, 0], [], []>} : vector<8x16xbf16>, vector<16x16xbf16>, vector<8x16xf32> -> vector<8x16xf32>
    %32 = vector.extract_strided_slice %8 {offsets = [8, 0], sizes = [8, 16], strides = [1, 1]} : vector<32x16xf32> to vector<8x16xf32>
    %33 = vector.extract_strided_slice %9 {offsets = [8, 0], sizes = [8, 16], strides = [1, 1]} : vector<32x16xf32> to vector<8x16xf32>
    %34 = arith.truncf %32 : vector<8x16xf32> to vector<8x16xbf16>
    %35 = arith.truncf %33 : vector<8x16xf32> to vector<8x16xbf16>
    %cst_14 = arith.constant dense<0.000000e+00> : vector<16x16xf32>
    %36 = tpu.matmul %34, %35, %cst_14 {dimension_numbers = #tpu.dot_dimension_numbers<[0], [0], [1], [1], [0, 1, 1, 1], [], []>} : vector<8x16xbf16>, vector<8x16xbf16>, vector<16x16xf32> -> vector<16x16xf32>
    %cst_15 = arith.constant dense<0xFF800000> : vector<16xf32>
    %37 = vector.multi_reduction <maximumf>, %36, %cst_15 [1] : vector<16x16xf32> to vector<16xf32>
    %38 = vector.shape_cast %37 : vector<16xf32> to vector<16x1xf32>
    %39 = vector.broadcast %38 : vector<16x1xf32> to vector<16x16xf32>
    %40 = arith.subf %36, %39 : vector<16x16xf32>
    %41 = math.exp %40 : vector<16x16xf32>
    %cst_16 = arith.constant dense<0.000000e+00> : vector<16xf32>
    %42 = vector.multi_reduction <add>, %41, %cst_16 [1] : vector<16x16xf32> to vector<16xf32>
    %43 = vector.shape_cast %42 : vector<16xf32> to vector<16x1xf32>
    %44 = tpu.reciprocal %43 {approx = true} : vector<16x1xf32> -> vector<16x1xf32>
    %45 = vector.broadcast %44 : vector<16x1xf32> to vector<16x16xf32>
    %46 = arith.mulf %41, %45 : vector<16x16xf32>
    %47 = vector.extract_strided_slice %10 {offsets = [8, 0], sizes = [8, 16], strides = [1, 1]} : vector<32x16xf32> to vector<8x16xf32>
    %48 = arith.truncf %47 : vector<8x16xf32> to vector<8x16xbf16>
    %49 = arith.truncf %46 : vector<16x16xf32> to vector<16x16xbf16>
    %cst_17 = arith.constant dense<0.000000e+00> : vector<8x16xf32>
    %50 = tpu.matmul %48, %49, %cst_17 {dimension_numbers = #tpu.dot_dimension_numbers<[1], [1], [0], [0], [0, 0, 1, 0], [], []>} : vector<8x16xbf16>, vector<16x16xbf16>, vector<8x16xf32> -> vector<8x16xf32>
    %51 = vector.extract_strided_slice %8 {offsets = [16, 0], sizes = [8, 16], strides = [1, 1]} : vector<32x16xf32> to vector<8x16xf32>
    %52 = vector.extract_strided_slice %9 {offsets = [16, 0], sizes = [8, 16], strides = [1, 1]} : vector<32x16xf32> to vector<8x16xf32>
    %53 = arith.truncf %51 : vector<8x16xf32> to vector<8x16xbf16>
    %54 = arith.truncf %52 : vector<8x16xf32> to vector<8x16xbf16>
    %cst_18 = arith.constant dense<0.000000e+00> : vector<16x16xf32>
    %55 = tpu.matmul %53, %54, %cst_18 {dimension_numbers = #tpu.dot_dimension_numbers<[0], [0], [1], [1], [0, 1, 1, 1], [], []>} : vector<8x16xbf16>, vector<8x16xbf16>, vector<16x16xf32> -> vector<16x16xf32>
    %cst_19 = arith.constant dense<0xFF800000> : vector<16xf32>
    %56 = vector.multi_reduction <maximumf>, %55, %cst_19 [1] : vector<16x16xf32> to vector<16xf32>
    %57 = vector.shape_cast %56 : vector<16xf32> to vector<16x1xf32>
    %58 = vector.broadcast %57 : vector<16x1xf32> to vector<16x16xf32>
    %59 = arith.subf %55, %58 : vector<16x16xf32>
    %60 = math.exp %59 : vector<16x16xf32>
    %cst_20 = arith.constant dense<0.000000e+00> : vector<16xf32>
    %61 = vector.multi_reduction <add>, %60, %cst_20 [1] : vector<16x16xf32> to vector<16xf32>
    %62 = vector.shape_cast %61 : vector<16xf32> to vector<16x1xf32>
    %63 = tpu.reciprocal %62 {approx = true} : vector<16x1xf32> -> vector<16x1xf32>
    %64 = vector.broadcast %63 : vector<16x1xf32> to vector<16x16xf32>
    %65 = arith.mulf %60, %64 : vector<16x16xf32>
    %66 = vector.extract_strided_slice %10 {offsets = [16, 0], sizes = [8, 16], strides = [1, 1]} : vector<32x16xf32> to vector<8x16xf32>
    %67 = arith.truncf %66 : vector<8x16xf32> to vector<8x16xbf16>
    %68 = arith.truncf %65 : vector<16x16xf32> to vector<16x16xbf16>
    %cst_21 = arith.constant dense<0.000000e+00> : vector<8x16xf32>
    %69 = tpu.matmul %67, %68, %cst_21 {dimension_numbers = #tpu.dot_dimension_numbers<[1], [1], [0], [0], [0, 0, 1, 0], [], []>} : vector<8x16xbf16>, vector<16x16xbf16>, vector<8x16xf32> -> vector<8x16xf32>
    %70 = vector.extract_strided_slice %8 {offsets = [24, 0], sizes = [8, 16], strides = [1, 1]} : vector<32x16xf32> to vector<8x16xf32>
    %71 = vector.extract_strided_slice %9 {offsets = [24, 0], sizes = [8, 16], strides = [1, 1]} : vector<32x16xf32> to vector<8x16xf32>
    %72 = arith.truncf %70 : vector<8x16xf32> to vector<8x16xbf16>
    %73 = arith.truncf %71 : vector<8x16xf32> to vector<8x16xbf16>
    %cst_22 = arith.constant dense<0.000000e+00> : vector<16x16xf32>
    %74 = tpu.matmul %72, %73, %cst_22 {dimension_numbers = #tpu.dot_dimension_numbers<[0], [0], [1], [1], [0, 1, 1, 1], [], []>} : vector<8x16xbf16>, vector<8x16xbf16>, vector<16x16xf32> -> vector<16x16xf32>
    %cst_23 = arith.constant dense<0xFF800000> : vector<16xf32>
    %75 = vector.multi_reduction <maximumf>, %74, %cst_23 [1] : vector<16x16xf32> to vector<16xf32>
    %76 = vector.shape_cast %75 : vector<16xf32> to vector<16x1xf32>
    %77 = vector.broadcast %76 : vector<16x1xf32> to vector<16x16xf32>
    %78 = arith.subf %74, %77 : vector<16x16xf32>
    %79 = math.exp %78 : vector<16x16xf32>
    %cst_24 = arith.constant dense<0.000000e+00> : vector<16xf32>
    %80 = vector.multi_reduction <add>, %79, %cst_24 [1] : vector<16x16xf32> to vector<16xf32>
    %81 = vector.shape_cast %80 : vector<16xf32> to vector<16x1xf32>
    %82 = tpu.reciprocal %81 {approx = true} : vector<16x1xf32> -> vector<16x1xf32>
    %83 = vector.broadcast %82 : vector<16x1xf32> to vector<16x16xf32>
    %84 = arith.mulf %79, %83 : vector<16x16xf32>
    %85 = vector.extract_strided_slice %10 {offsets = [24, 0], sizes = [8, 16], strides = [1, 1]} : vector<32x16xf32> to vector<8x16xf32>
    %86 = arith.truncf %85 : vector<8x16xf32> to vector<8x16xbf16>
    %87 = arith.truncf %84 : vector<16x16xf32> to vector<16x16xbf16>
    %cst_25 = arith.constant dense<0.000000e+00> : vector<8x16xf32>
    %88 = tpu.matmul %86, %87, %cst_25 {dimension_numbers = #tpu.dot_dimension_numbers<[1], [1], [0], [0], [0, 0, 1, 0], [], []>} : vector<8x16xbf16>, vector<16x16xbf16>, vector<8x16xf32> -> vector<8x16xf32>
    %89 = tpu.concatenate %31, %50, %69, %88 in 0 : vector<8x16xf32>, vector<8x16xf32>, vector<8x16xf32>, vector<8x16xf32> -> vector<32x16xf32>
    %90 = arith.truncf %89 : vector<32x16xf32> to vector<32x16xbf16>
    %cst_26 = arith.constant dense<0.000000e+00> : vector<16x32xf32>
    %91 = tpu.matmul %90, %11, %cst_26 {dimension_numbers = #tpu.dot_dimension_numbers<[0], [0], [1], [1], [0, 1, 1, 1], [], []>} : vector<32x16xbf16>, vector<32x32xbf16>, vector<16x32xf32> -> vector<16x32xf32>
    %92 = vector.broadcast %12 : vector<1x32xf32> to vector<16x32xf32>
    %93 = arith.addf %91, %92 : vector<16x32xf32>
    %94 = arith.addf %1, %93 : vector<16x32xf32>
    %c0_27 = arith.constant 0 : index
    %c0_28 = arith.constant 0 : index
    %95 = vector.load %arg10[%c0_27, %c0_28] : memref<4x32xf32, #tpu.memory_space<vmem>>, vector<1x32xf32>
    %c1 = arith.constant 1 : index
    %c0_29 = arith.constant 0 : index
    %96 = vector.load %arg10[%c1, %c0_29] : memref<4x32xf32, #tpu.memory_space<vmem>>, vector<1x32xf32>
    %cst_30 = arith.constant dense<0.000000e+00> : vector<16xf32>
    %97 = vector.multi_reduction <add>, %94, %cst_30 [1] : vector<16x32xf32> to vector<16xf32>
    %98 = vector.shape_cast %97 : vector<16xf32> to vector<16x1xf32>
    %cst_31 = arith.constant 3.200000e+01 : f32
    %99 = vector.broadcast %cst_31 : f32 to vector<16x1xf32>
    %100 = arith.divf %98, %99 : vector<16x1xf32>
    %101 = vector.broadcast %100 : vector<16x1xf32> to vector<16x32xf32>
    %102 = arith.subf %94, %101 : vector<16x32xf32>
    %103 = arith.mulf %102, %102 : vector<16x32xf32>
    %cst_32 = arith.constant dense<0.000000e+00> : vector<16xf32>
    %104 = vector.multi_reduction <add>, %103, %cst_32 [1] : vector<16x32xf32> to vector<16xf32>
    %105 = vector.shape_cast %104 : vector<16xf32> to vector<16x1xf32>
    %cst_33 = arith.constant 3.200000e+01 : f32
    %106 = vector.broadcast %cst_33 : f32 to vector<16x1xf32>
    %107 = arith.divf %105, %106 : vector<16x1xf32>
    %108 = vector.broadcast %100 : vector<16x1xf32> to vector<16x32xf32>
    %109 = arith.subf %94, %108 : vector<16x32xf32>
    %cst_34 = arith.constant 9.99999974E-6 : f32
    %110 = vector.broadcast %cst_34 : f32 to vector<16x1xf32>
    %111 = arith.addf %107, %110 : vector<16x1xf32>
    %112 = math.rsqrt %111 : vector<16x1xf32>
    %113 = vector.broadcast %112 : vector<16x1xf32> to vector<16x32xf32>
    %114 = arith.mulf %109, %113 : vector<16x32xf32>
    %115 = vector.broadcast %95 : vector<1x32xf32> to vector<16x32xf32>
    %116 = arith.mulf %114, %115 : vector<16x32xf32>
    %117 = vector.broadcast %96 : vector<1x32xf32> to vector<16x32xf32>
    %118 = arith.addf %116, %117 : vector<16x32xf32>
    %c0_35 = arith.constant 0 : index
    %c0_36 = arith.constant 0 : index
    %119 = vector.load %arg6[%c0_35, %c0_36] : memref<32x64xbf16, #tpu.memory_space<vmem>>, vector<32x64xbf16>
    %120 = arith.truncf %118 : vector<16x32xf32> to vector<16x32xbf16>
    %cst_37 = arith.constant dense<0.000000e+00> : vector<16x64xf32>
    %121 = tpu.matmul %120, %119, %cst_37 {dimension_numbers = #tpu.dot_dimension_numbers<[1], [0], [0], [1], [0, 0, 1, 1], [], []>} : vector<16x32xbf16>, vector<32x64xbf16>, vector<16x64xf32> -> vector<16x64xf32>
    %c0_38 = arith.constant 0 : index
    %c0_39 = arith.constant 0 : index
    %122 = vector.load %arg7[%c0_38, %c0_39] : memref<1x64xf32, #tpu.memory_space<vmem>>, vector<1x64xf32>
    %123 = vector.broadcast %122 : vector<1x64xf32> to vector<16x64xf32>
    %124 = arith.addf %121, %123 : vector<16x64xf32>
    %cst_40 = arith.constant 0.000000e+00 : f32
    %125 = vector.broadcast %cst_40 : f32 to vector<16x64xf32>
    %126 = arith.maximumf %124, %125 : vector<16x64xf32>
    %c0_41 = arith.constant 0 : index
    %c0_42 = arith.constant 0 : index
    %127 = vector.load %arg8[%c0_41, %c0_42] : memref<64x32xbf16, #tpu.memory_space<vmem>>, vector<64x32xbf16>
    %128 = arith.truncf %126 : vector<16x64xf32> to vector<16x64xbf16>
    %cst_43 = arith.constant dense<0.000000e+00> : vector<16x32xf32>
    %129 = tpu.matmul %128, %127, %cst_43 {dimension_numbers = #tpu.dot_dimension_numbers<[1], [0], [0], [1], [0, 0, 1, 1], [], []>} : vector<16x64xbf16>, vector<64x32xbf16>, vector<16x32xf32> -> vector<16x32xf32>
    %c0_44 = arith.constant 0 : index
    %c0_45 = arith.constant 0 : index
    %130 = vector.load %arg9[%c0_44, %c0_45] : memref<1x32xf32, #tpu.memory_space<vmem>>, vector<1x32xf32>
    %131 = vector.broadcast %130 : vector<1x32xf32> to vector<16x32xf32>
    %132 = arith.addf %129, %131 : vector<16x32xf32>
    %133 = arith.addf %118, %132 : vector<16x32xf32>
    %c2 = arith.constant 2 : index
    %c0_46 = arith.constant 0 : index
    %134 = vector.load %arg10[%c2, %c0_46] : memref<4x32xf32, #tpu.memory_space<vmem>>, vector<1x32xf32>
    %c3 = arith.constant 3 : index
    %c0_47 = arith.constant 0 : index
    %135 = vector.load %arg10[%c3, %c0_47] : memref<4x32xf32, #tpu.memory_space<vmem>>, vector<1x32xf32>
    %cst_48 = arith.constant dense<0.000000e+00> : vector<16xf32>
    %136 = vector.multi_reduction <add>, %133, %cst_48 [1] : vector<16x32xf32> to vector<16xf32>
    %137 = vector.shape_cast %136 : vector<16xf32> to vector<16x1xf32>
    %cst_49 = arith.constant 3.200000e+01 : f32
    %138 = vector.broadcast %cst_49 : f32 to vector<16x1xf32>
    %139 = arith.divf %137, %138 : vector<16x1xf32>
    %140 = vector.broadcast %139 : vector<16x1xf32> to vector<16x32xf32>
    %141 = arith.subf %133, %140 : vector<16x32xf32>
    %142 = arith.mulf %141, %141 : vector<16x32xf32>
    %cst_50 = arith.constant dense<0.000000e+00> : vector<16xf32>
    %143 = vector.multi_reduction <add>, %142, %cst_50 [1] : vector<16x32xf32> to vector<16xf32>
    %144 = vector.shape_cast %143 : vector<16xf32> to vector<16x1xf32>
    %cst_51 = arith.constant 3.200000e+01 : f32
    %145 = vector.broadcast %cst_51 : f32 to vector<16x1xf32>
    %146 = arith.divf %144, %145 : vector<16x1xf32>
    %147 = vector.broadcast %139 : vector<16x1xf32> to vector<16x32xf32>
    %148 = arith.subf %133, %147 : vector<16x32xf32>
    %cst_52 = arith.constant 9.99999974E-6 : f32
    %149 = vector.broadcast %cst_52 : f32 to vector<16x1xf32>
    %150 = arith.addf %146, %149 : vector<16x1xf32>
    %151 = math.rsqrt %150 : vector<16x1xf32>
    %152 = vector.broadcast %151 : vector<16x1xf32> to vector<16x32xf32>
    %153 = arith.mulf %148, %152 : vector<16x32xf32>
    %154 = vector.broadcast %134 : vector<1x32xf32> to vector<16x32xf32>
    %155 = arith.mulf %153, %154 : vector<16x32xf32>
    %156 = vector.broadcast %135 : vector<1x32xf32> to vector<16x32xf32>
    %157 = arith.addf %155, %156 : vector<16x32xf32>
    %c0_53 = arith.constant 0 : index
    %c0_54 = arith.constant 0 : index
    %c0_55 = arith.constant 0 : index
    %158 = vector.load %arg11[%c0_53, %c0_54, %c0_55] : memref<1x16x32xf32, #tpu.memory_space<vmem>>, vector<1x16x32xf32>
    %159 = vector.shape_cast %158 : vector<1x16x32xf32> to vector<16x32xf32>
    %160 = vector.shape_cast %157 : vector<16x32xf32> to vector<1x16x32xf32>
    tpu.vector_store %arg11[%c0_53, %c0_54, %c0_55], %160 {strides = array<i32>} : memref<1x16x32xf32, #tpu.memory_space<vmem>>, vector<1x16x32xf32>,
    return
  }
  func.func @transform_0(%arg0: i32) -> (i32, i32, i32) {
    %c0_i32 = arith.constant 0 : i32
    %c0_i32_0 = arith.constant 0 : i32
    %c0_i32_1 = arith.constant 0 : i32
    return %arg0, %c0_i32, %c0_i32_0 : i32, i32, i32
  }
  func.func @transform_1(%arg0: i32) -> (i32, i32) {
    %c0_i32 = arith.constant 0 : i32
    %c0_i32_0 = arith.constant 0 : i32
    %c0_i32_1 = arith.constant 0 : i32
    return %c0_i32, %c0_i32_0 : i32, i32
  }
  func.func @transform_2(%arg0: i32) -> (i32, i32) {
    %c0_i32 = arith.constant 0 : i32
    %c0_i32_0 = arith.constant 0 : i32
    %c0_i32_1 = arith.constant 0 : i32
    return %c0_i32, %c0_i32_0 : i32, i32
  }
  func.func @transform_3(%arg0: i32) -> (i32, i32) {
    %c0_i32 = arith.constant 0 : i32
    %c0_i32_0 = arith.constant 0 : i32
    %c0_i32_1 = arith.constant 0 : i32
    return %c0_i32, %c0_i32_0 : i32, i32
  }
  func.func @transform_4(%arg0: i32) -> (i32, i32) {
    %c0_i32 = arith.constant 0 : i32
    %c0_i32_0 = arith.constant 0 : i32
    %c0_i32_1 = arith.constant 0 : i32
    return %c0_i32, %c0_i32_0 : i32, i32
  }
  func.func @transform_5(%arg0: i32) -> (i32, i32) {
    %c0_i32 = arith.constant 0 : i32
    %c0_i32_0 = arith.constant 0 : i32
    %c0_i32_1 = arith.constant 0 : i32
    return %c0_i32, %c0_i32_0 : i32, i32
  }
  func.func @transform_6(%arg0: i32) -> (i32, i32) {
    %c0_i32 = arith.constant 0 : i32
    %c0_i32_0 = arith.constant 0 : i32
    %c0_i32_1 = arith.constant 0 : i32
    return %c0_i32, %c0_i32_0 : i32, i32
  }
  func.func @transform_7(%arg0: i32) -> (i32, i32) {
    %c0_i32 = arith.constant 0 : i32
    %c0_i32_0 = arith.constant 0 : i32
    %c0_i32_1 = arith.constant 0 : i32
    return %c0_i32, %c0_i32_0 : i32, i32
  }
  func.func @transform_8(%arg0: i32) -> (i32, i32) {
    %c0_i32 = arith.constant 0 : i32
    %c0_i32_0 = arith.constant 0 : i32
    %c0_i32_1 = arith.constant 0 : i32
    return %c0_i32, %c0_i32_0 : i32, i32
  }
  func.func @transform_9(%arg0: i32) -> (i32, i32) {
    %c0_i32 = arith.constant 0 : i32
    %c0_i32_0 = arith.constant 0 : i32
    %c0_i32_1 = arith.constant 0 : i32
    return %c0_i32, %c0_i32_0 : i32, i32
  }
  func.func @transform_10(%arg0: i32) -> (i32, i32, i32) {
    %c0_i32 = arith.constant 0 : i32
    %c0_i32_0 = arith.constant 0 : i32
    %c0_i32_1 = arith.constant 0 : i32
    return %arg0, %c0_i32, %c0_i32_0 : i32, i32, i32
  }
}

module attributes {stable_mosaic.version = 11 : i64} {
  func.func @_conv_pe_kernel(%arg0: i32, %arg1: memref<1x18x8xf32, #tpu.memory_space<vmem>>, %arg2: memref<3x8x32xbf16, #tpu.memory_space<vmem>>, %arg3: memref<1x32xf32, #tpu.memory_space<vmem>>, %arg4: memref<1x1x32xf32, #tpu.memory_space<vmem>>, %arg5: memref<1x16x32xf32, #tpu.memory_space<vmem>>) attributes {dimension_semantics = [#tpu.dimension_semantics<parallel>], iteration_bounds = array<i64: 2>, scalar_prefetch = 0 : i64, scratch_operands = 0 : i64, tpu.core_type = #tpu.core_type<tc>, window_params = [{transform_indices = @transform_0, window_bounds = array<i64: 1, 18, 8>}, {pipeline_mode = #tpu.pipeline_mode<synchronous>, transform_indices = @transform_1, window_bounds = array<i64: 3, 8, 32>}, {pipeline_mode = #tpu.pipeline_mode<synchronous>, transform_indices = @transform_2, window_bounds = array<i64: 1, 32>}, {transform_indices = @transform_3, window_bounds = array<i64: 1, 1, 32>}, {transform_indices = @transform_4, window_bounds = array<i64: 1, 16, 32>}]} {
    %c0 = arith.constant 0 : index
    %c0_0 = arith.constant 0 : index
    %c0_1 = arith.constant 0 : index
    %0 = vector.load %arg1[%c0, %c0_0, %c0_1] : memref<1x18x8xf32, #tpu.memory_space<vmem>>, vector<1x18x8xf32>
    %1 = vector.shape_cast %0 : vector<1x18x8xf32> to vector<18x8xf32>
    %2 = vector.extract_strided_slice %1 {offsets = [0, 0], sizes = [16, 8], strides = [1, 1]} : vector<18x8xf32> to vector<16x8xf32>
    %c0_2 = arith.constant 0 : index
    %c0_3 = arith.constant 0 : index
    %c0_4 = arith.constant 0 : index
    %3 = vector.load %arg2[%c0_2, %c0_3, %c0_4] : memref<3x8x32xbf16, #tpu.memory_space<vmem>>, vector<1x8x32xbf16>
    %4 = vector.shape_cast %3 : vector<1x8x32xbf16> to vector<8x32xbf16>
    %5 = arith.truncf %2 : vector<16x8xf32> to vector<16x8xbf16>
    %cst = arith.constant dense<0.000000e+00> : vector<16x32xf32>
    %6 = tpu.matmul %5, %4, %cst {dimension_numbers = #tpu.dot_dimension_numbers<[1], [0], [0], [1], [0, 0, 1, 1], [], []>} : vector<16x8xbf16>, vector<8x32xbf16>, vector<16x32xf32> -> vector<16x32xf32>
    %7 = vector.extract_strided_slice %1 {offsets = [1, 0], sizes = [16, 8], strides = [1, 1]} : vector<18x8xf32> to vector<16x8xf32>
    %c1 = arith.constant 1 : index
    %c0_5 = arith.constant 0 : index
    %c0_6 = arith.constant 0 : index
    %8 = vector.load %arg2[%c1, %c0_5, %c0_6] : memref<3x8x32xbf16, #tpu.memory_space<vmem>>, vector<1x8x32xbf16>
    %9 = vector.shape_cast %8 : vector<1x8x32xbf16> to vector<8x32xbf16>
    %10 = arith.truncf %7 : vector<16x8xf32> to vector<16x8xbf16>
    %cst_7 = arith.constant dense<0.000000e+00> : vector<16x32xf32>
    %11 = tpu.matmul %10, %9, %cst_7 {dimension_numbers = #tpu.dot_dimension_numbers<[1], [0], [0], [1], [0, 0, 1, 1], [], []>} : vector<16x8xbf16>, vector<8x32xbf16>, vector<16x32xf32> -> vector<16x32xf32>
    %12 = arith.addf %6, %11 : vector<16x32xf32>
    %13 = vector.extract_strided_slice %1 {offsets = [2, 0], sizes = [16, 8], strides = [1, 1]} : vector<18x8xf32> to vector<16x8xf32>
    %c2 = arith.constant 2 : index
    %c0_8 = arith.constant 0 : index
    %c0_9 = arith.constant 0 : index
    %14 = vector.load %arg2[%c2, %c0_8, %c0_9] : memref<3x8x32xbf16, #tpu.memory_space<vmem>>, vector<1x8x32xbf16>
    %15 = vector.shape_cast %14 : vector<1x8x32xbf16> to vector<8x32xbf16>
    %16 = arith.truncf %13 : vector<16x8xf32> to vector<16x8xbf16>
    %cst_10 = arith.constant dense<0.000000e+00> : vector<16x32xf32>
    %17 = tpu.matmul %16, %15, %cst_10 {dimension_numbers = #tpu.dot_dimension_numbers<[1], [0], [0], [1], [0, 0, 1, 1], [], []>} : vector<16x8xbf16>, vector<8x32xbf16>, vector<16x32xf32> -> vector<16x32xf32>
    %18 = arith.addf %12, %17 : vector<16x32xf32>
    %c0_11 = arith.constant 0 : index
    %c0_12 = arith.constant 0 : index
    %19 = vector.load %arg3[%c0_11, %c0_12] : memref<1x32xf32, #tpu.memory_space<vmem>>, vector<1x32xf32>
    %20 = vector.broadcast %19 : vector<1x32xf32> to vector<16x32xf32>
    %21 = arith.addf %18, %20 : vector<16x32xf32>
    %c0_13 = arith.constant 0 : index
    %c0_14 = arith.constant 0 : index
    %c0_15 = arith.constant 0 : index
    %22 = vector.load %arg4[%c0_13, %c0_14, %c0_15] : memref<1x1x32xf32, #tpu.memory_space<vmem>>, vector<1x1x32xf32>
    %23 = vector.shape_cast %22 : vector<1x1x32xf32> to vector<1x32xf32>
    %24 = vector.broadcast %23 : vector<1x32xf32> to vector<16x32xf32>
    %25 = arith.addf %21, %24 : vector<16x32xf32>
    %c0_16 = arith.constant 0 : index
    %c0_17 = arith.constant 0 : index
    %c0_18 = arith.constant 0 : index
    %26 = vector.load %arg5[%c0_16, %c0_17, %c0_18] : memref<1x16x32xf32, #tpu.memory_space<vmem>>, vector<1x16x32xf32>
    %27 = vector.shape_cast %26 : vector<1x16x32xf32> to vector<16x32xf32>
    %28 = vector.shape_cast %25 : vector<16x32xf32> to vector<1x16x32xf32>
    tpu.vector_store %arg5[%c0_16, %c0_17, %c0_18], %28 {strides = array<i32>} : memref<1x16x32xf32, #tpu.memory_space<vmem>>, vector<1x16x32xf32>,
    return
  }
  func.func @transform_0(%arg0: i32) -> (i32, i32, i32) {
    %c0_i32 = arith.constant 0 : i32
    %c0_i32_0 = arith.constant 0 : i32
    %c0_i32_1 = arith.constant 0 : i32
    return %arg0, %c0_i32, %c0_i32_0 : i32, i32, i32
  }
  func.func @transform_1(%arg0: i32) -> (i32, i32, i32) {
    %c0_i32 = arith.constant 0 : i32
    %c0_i32_0 = arith.constant 0 : i32
    %c0_i32_1 = arith.constant 0 : i32
    %c0_i32_2 = arith.constant 0 : i32
    return %c0_i32, %c0_i32_0, %c0_i32_1 : i32, i32, i32
  }
  func.func @transform_2(%arg0: i32) -> (i32, i32) {
    %c0_i32 = arith.constant 0 : i32
    %c0_i32_0 = arith.constant 0 : i32
    %c0_i32_1 = arith.constant 0 : i32
    return %c0_i32, %c0_i32_0 : i32, i32
  }
  func.func @transform_3(%arg0: i32) -> (i32, i32, i32) {
    %c0_i32 = arith.constant 0 : i32
    %c0_i32_0 = arith.constant 0 : i32
    %c0_i32_1 = arith.constant 0 : i32
    return %arg0, %c0_i32, %c0_i32_0 : i32, i32, i32
  }
  func.func @transform_4(%arg0: i32) -> (i32, i32, i32) {
    %c0_i32 = arith.constant 0 : i32
    %c0_i32_0 = arith.constant 0 : i32
    %c0_i32_1 = arith.constant 0 : i32
    return %arg0, %c0_i32, %c0_i32_0 : i32, i32, i32
  }
}

module attributes {stable_mosaic.version = 11 : i64} {
  func.func @_fc_kernel(%arg0: i32, %arg1: i32, %arg2: memref<1x8x32xf32, #tpu.memory_space<vmem>>, %arg3: memref<32x512xbf16, #tpu.memory_space<vmem>>, %arg4: memref<1x512xf32, #tpu.memory_space<vmem>>, %arg5: memref<1x8x512xf32, #tpu.memory_space<vmem>>) attributes {dimension_semantics = [#tpu.dimension_semantics<parallel>, #tpu.dimension_semantics<parallel>], iteration_bounds = array<i64: 2, 1>, scalar_prefetch = 0 : i64, scratch_operands = 0 : i64, tpu.core_type = #tpu.core_type<tc>, window_params = [{transform_indices = @transform_0, window_bounds = array<i64: 1, 8, 32>}, {transform_indices = @transform_1, window_bounds = array<i64: 32, 512>}, {transform_indices = @transform_2, window_bounds = array<i64: 1, 512>}, {transform_indices = @transform_3, window_bounds = array<i64: 1, 8, 512>}]} {
    %c0 = arith.constant 0 : index
    %c0_0 = arith.constant 0 : index
    %c0_1 = arith.constant 0 : index
    %0 = vector.load %arg2[%c0, %c0_0, %c0_1] : memref<1x8x32xf32, #tpu.memory_space<vmem>>, vector<1x8x32xf32>
    %1 = vector.shape_cast %0 : vector<1x8x32xf32> to vector<8x32xf32>
    %c0_2 = arith.constant 0 : index
    %c0_3 = arith.constant 0 : index
    %2 = vector.load %arg3[%c0_2, %c0_3] : memref<32x512xbf16, #tpu.memory_space<vmem>>, vector<32x512xbf16>
    %3 = arith.truncf %1 : vector<8x32xf32> to vector<8x32xbf16>
    %cst = arith.constant dense<0.000000e+00> : vector<8x512xf32>
    %4 = tpu.matmul %3, %2, %cst {dimension_numbers = #tpu.dot_dimension_numbers<[1], [0], [0], [1], [0, 0, 1, 1], [], []>} : vector<8x32xbf16>, vector<32x512xbf16>, vector<8x512xf32> -> vector<8x512xf32>
    %c0_4 = arith.constant 0 : index
    %c0_5 = arith.constant 0 : index
    %5 = vector.load %arg4[%c0_4, %c0_5] : memref<1x512xf32, #tpu.memory_space<vmem>>, vector<1x512xf32>
    %6 = vector.broadcast %5 : vector<1x512xf32> to vector<8x512xf32>
    %7 = arith.addf %4, %6 : vector<8x512xf32>
    %c0_6 = arith.constant 0 : index
    %c0_7 = arith.constant 0 : index
    %c0_8 = arith.constant 0 : index
    %8 = vector.load %arg5[%c0_6, %c0_7, %c0_8] : memref<1x8x512xf32, #tpu.memory_space<vmem>>, vector<1x8x512xf32>
    %9 = vector.shape_cast %8 : vector<1x8x512xf32> to vector<8x512xf32>
    %10 = vector.shape_cast %7 : vector<8x512xf32> to vector<1x8x512xf32>
    tpu.vector_store %arg5[%c0_6, %c0_7, %c0_8], %10 {strides = array<i32>} : memref<1x8x512xf32, #tpu.memory_space<vmem>>, vector<1x8x512xf32>,
    return
  }
  func.func @transform_0(%arg0: i32, %arg1: i32) -> (i32, i32, i32) {
    %c0_i32 = arith.constant 0 : i32
    %c0_i32_0 = arith.constant 0 : i32
    %c0_i32_1 = arith.constant 0 : i32
    return %arg0, %c0_i32, %c0_i32_0 : i32, i32, i32
  }
  func.func @transform_1(%arg0: i32, %arg1: i32) -> (i32, i32) {
    %c0_i32 = arith.constant 0 : i32
    %c0_i32_0 = arith.constant 0 : i32
    return %c0_i32, %arg1 : i32, i32
  }
  func.func @transform_2(%arg0: i32, %arg1: i32) -> (i32, i32) {
    %c0_i32 = arith.constant 0 : i32
    %c0_i32_0 = arith.constant 0 : i32
    return %c0_i32, %arg1 : i32, i32
  }
  func.func @transform_3(%arg0: i32, %arg1: i32) -> (i32, i32, i32) {
    %c0_i32 = arith.constant 0 : i32
    %c0_i32_0 = arith.constant 0 : i32
    return %arg0, %c0_i32, %arg1 : i32, i32, i32
  }
}

module attributes {stable_mosaic.version = 11 : i64} {
  func.func @_dec_layer_kernel(%arg0: i32, %arg1: memref<1x8x32xf32, #tpu.memory_space<vmem>>, %arg2: memref<1x16x32xf32, #tpu.memory_space<vmem>>, %arg3: memref<96x32xbf16, #tpu.memory_space<vmem>>, %arg4: memref<96x1xf32, #tpu.memory_space<vmem>>, %arg5: memref<32x32xbf16, #tpu.memory_space<vmem>>, %arg6: memref<1x32xf32, #tpu.memory_space<vmem>>, %arg7: memref<32x32xbf16, #tpu.memory_space<vmem>>, %arg8: memref<32x1xf32, #tpu.memory_space<vmem>>, %arg9: memref<64x32xbf16, #tpu.memory_space<vmem>>, %arg10: memref<64x1xf32, #tpu.memory_space<vmem>>, %arg11: memref<32x32xbf16, #tpu.memory_space<vmem>>, %arg12: memref<1x32xf32, #tpu.memory_space<vmem>>, %arg13: memref<32x64xbf16, #tpu.memory_space<vmem>>, %arg14: memref<1x64xf32, #tpu.memory_space<vmem>>, %arg15: memref<64x32xbf16, #tpu.memory_space<vmem>>, %arg16: memref<1x32xf32, #tpu.memory_space<vmem>>, %arg17: memref<6x32xf32, #tpu.memory_space<vmem>>, %arg18: memref<1x8x32xf32, #tpu.memory_space<vmem>>) attributes {dimension_semantics = [#tpu.dimension_semantics<parallel>], iteration_bounds = array<i64: 2>, scalar_prefetch = 0 : i64, scratch_operands = 0 : i64, tpu.core_type = #tpu.core_type<tc>, window_params = [{transform_indices = @transform_0, window_bounds = array<i64: 1, 8, 32>}, {transform_indices = @transform_1, window_bounds = array<i64: 1, 16, 32>}, {pipeline_mode = #tpu.pipeline_mode<synchronous>, transform_indices = @transform_2, window_bounds = array<i64: 96, 32>}, {pipeline_mode = #tpu.pipeline_mode<synchronous>, transform_indices = @transform_3, window_bounds = array<i64: 96, 1>}, {pipeline_mode = #tpu.pipeline_mode<synchronous>, transform_indices = @transform_4, window_bounds = array<i64: 32, 32>}, {pipeline_mode = #tpu.pipeline_mode<synchronous>, transform_indices = @transform_5, window_bounds = array<i64: 1, 32>}, {pipeline_mode = #tpu.pipeline_mode<synchronous>, transform_indices = @transform_6, window_bounds = array<i64: 32, 32>}, {pipeline_mode = #tpu.pipeline_mode<synchronous>, transform_indices = @transform_7, window_bounds = array<i64: 32, 1>}, {pipeline_mode = #tpu.pipeline_mode<synchronous>, transform_indices = @transform_8, window_bounds = array<i64: 64, 32>}, {pipeline_mode = #tpu.pipeline_mode<synchronous>, transform_indices = @transform_9, window_bounds = array<i64: 64, 1>}, {pipeline_mode = #tpu.pipeline_mode<synchronous>, transform_indices = @transform_10, window_bounds = array<i64: 32, 32>}, {pipeline_mode = #tpu.pipeline_mode<synchronous>, transform_indices = @transform_11, window_bounds = array<i64: 1, 32>}, {pipeline_mode = #tpu.pipeline_mode<synchronous>, transform_indices = @transform_12, window_bounds = array<i64: 32, 64>}, {pipeline_mode = #tpu.pipeline_mode<synchronous>, transform_indices = @transform_13, window_bounds = array<i64: 1, 64>}, {pipeline_mode = #tpu.pipeline_mode<synchronous>, transform_indices = @transform_14, window_bounds = array<i64: 64, 32>}, {pipeline_mode = #tpu.pipeline_mode<synchronous>, transform_indices = @transform_15, window_bounds = array<i64: 1, 32>}, {pipeline_mode = #tpu.pipeline_mode<synchronous>, transform_indices = @transform_16, window_bounds = array<i64: 6, 32>}, {transform_indices = @transform_17, window_bounds = array<i64: 1, 8, 32>}]} {
    %c0 = arith.constant 0 : index
    %c0_0 = arith.constant 0 : index
    %c0_1 = arith.constant 0 : index
    %0 = vector.load %arg1[%c0, %c0_0, %c0_1] : memref<1x8x32xf32, #tpu.memory_space<vmem>>, vector<1x8x32xf32>
    %1 = vector.shape_cast %0 : vector<1x8x32xf32> to vector<8x32xf32>
    %c0_2 = arith.constant 0 : index
    %c0_3 = arith.constant 0 : index
    %c0_4 = arith.constant 0 : index
    %2 = vector.load %arg2[%c0_2, %c0_3, %c0_4] : memref<1x16x32xf32, #tpu.memory_space<vmem>>, vector<1x16x32xf32>
    %3 = vector.shape_cast %2 : vector<1x16x32xf32> to vector<16x32xf32>
    %c0_5 = arith.constant 0 : index
    %c0_6 = arith.constant 0 : index
    %4 = vector.load %arg3[%c0_5, %c0_6] : memref<96x32xbf16, #tpu.memory_space<vmem>>, vector<96x32xbf16>
    %5 = arith.truncf %1 : vector<8x32xf32> to vector<8x32xbf16>
    %cst = arith.constant dense<0.000000e+00> : vector<96x8xf32>
    %6 = tpu.matmul %4, %5, %cst {dimension_numbers = #tpu.dot_dimension_numbers<[1], [1], [0], [0], [0, 0, 1, 0], [], []>} : vector<96x32xbf16>, vector<8x32xbf16>, vector<96x8xf32> -> vector<96x8xf32>
    %c0_7 = arith.constant 0 : index
    %c0_8 = arith.constant 0 : index
    %7 = vector.load %arg4[%c0_7, %c0_8] : memref<96x1xf32, #tpu.memory_space<vmem>>, vector<96x1xf32>
    %8 = vector.broadcast %7 : vector<96x1xf32> to vector<96x8xf32>
    %9 = arith.addf %6, %8 : vector<96x8xf32>
    %10 = vector.extract_strided_slice %9 {offsets = [0, 0], sizes = [32, 8], strides = [1, 1]} : vector<96x8xf32> to vector<32x8xf32>
    %11 = vector.extract_strided_slice %9 {offsets = [32, 0], sizes = [32, 8], strides = [1, 1]} : vector<96x8xf32> to vector<32x8xf32>
    %12 = vector.extract_strided_slice %9 {offsets = [64, 0], sizes = [32, 8], strides = [1, 1]} : vector<96x8xf32> to vector<32x8xf32>
    %c0_9 = arith.constant 0 : index
    %c0_10 = arith.constant 0 : index
    %13 = vector.load %arg5[%c0_9, %c0_10] : memref<32x32xbf16, #tpu.memory_space<vmem>>, vector<32x32xbf16>
    %c0_11 = arith.constant 0 : index
    %c0_12 = arith.constant 0 : index
    %14 = vector.load %arg6[%c0_11, %c0_12] : memref<1x32xf32, #tpu.memory_space<vmem>>, vector<1x32xf32>
    %15 = tpu.iota {dimensions = array<i32: 0>} : vector<8x8xi32>
    %16 = tpu.iota {dimensions = array<i32: 1>} : vector<8x8xi32>
    %17 = arith.cmpi sgt, %16, %15 : vector<8x8xi32>
    %cst_13 = arith.constant -1.000000e+30 : f32
    %cst_14 = arith.constant 0.000000e+00 : f32
    %18 = vector.broadcast %cst_13 : f32 to vector<8x8xf32>
    %19 = vector.broadcast %cst_14 : f32 to vector<8x8xf32>
    %20 = arith.select %17, %18, %19 : vector<8x8xi1>, vector<8x8xf32>
    %21 = vector.extract_strided_slice %10 {offsets = [0, 0], sizes = [8, 8], strides = [1, 1]} : vector<32x8xf32> to vector<8x8xf32>
    %22 = vector.extract_strided_slice %11 {offsets = [0, 0], sizes = [8, 8], strides = [1, 1]} : vector<32x8xf32> to vector<8x8xf32>
    %23 = arith.truncf %21 : vector<8x8xf32> to vector<8x8xbf16>
    %24 = arith.truncf %22 : vector<8x8xf32> to vector<8x8xbf16>
    %cst_15 = arith.constant dense<0.000000e+00> : vector<8x8xf32>
    %25 = tpu.matmul %23, %24, %cst_15 {dimension_numbers = #tpu.dot_dimension_numbers<[0], [0], [1], [1], [0, 1, 1, 1], [], []>} : vector<8x8xbf16>, vector<8x8xbf16>, vector<8x8xf32> -> vector<8x8xf32>
    %26 = arith.addf %25, %20 : vector<8x8xf32>
    %cst_16 = arith.constant dense<0xFF800000> : vector<8xf32>
    %27 = vector.multi_reduction <maximumf>, %26, %cst_16 [1] : vector<8x8xf32> to vector<8xf32>
    %28 = vector.shape_cast %27 : vector<8xf32> to vector<8x1xf32>
    %29 = vector.broadcast %28 : vector<8x1xf32> to vector<8x8xf32>
    %30 = arith.subf %26, %29 : vector<8x8xf32>
    %31 = math.exp %30 : vector<8x8xf32>
    %cst_17 = arith.constant dense<0.000000e+00> : vector<8xf32>
    %32 = vector.multi_reduction <add>, %31, %cst_17 [1] : vector<8x8xf32> to vector<8xf32>
    %33 = vector.shape_cast %32 : vector<8xf32> to vector<8x1xf32>
    %34 = tpu.reciprocal %33 {approx = true} : vector<8x1xf32> -> vector<8x1xf32>
    %35 = vector.broadcast %34 : vector<8x1xf32> to vector<8x8xf32>
    %36 = arith.mulf %31, %35 : vector<8x8xf32>
    %37 = vector.extract_strided_slice %12 {offsets = [0, 0], sizes = [8, 8], strides = [1, 1]} : vector<32x8xf32> to vector<8x8xf32>
    %38 = arith.truncf %37 : vector<8x8xf32> to vector<8x8xbf16>
    %39 = arith.truncf %36 : vector<8x8xf32> to vector<8x8xbf16>
    %cst_18 = arith.constant dense<0.000000e+00> : vector<8x8xf32>
    %40 = tpu.matmul %38, %39, %cst_18 {dimension_numbers = #tpu.dot_dimension_numbers<[1], [1], [0], [0], [0, 0, 1, 0], [], []>} : vector<8x8xbf16>, vector<8x8xbf16>, vector<8x8xf32> -> vector<8x8xf32>
    %41 = vector.extract_strided_slice %10 {offsets = [8, 0], sizes = [8, 8], strides = [1, 1]} : vector<32x8xf32> to vector<8x8xf32>
    %42 = vector.extract_strided_slice %11 {offsets = [8, 0], sizes = [8, 8], strides = [1, 1]} : vector<32x8xf32> to vector<8x8xf32>
    %43 = arith.truncf %41 : vector<8x8xf32> to vector<8x8xbf16>
    %44 = arith.truncf %42 : vector<8x8xf32> to vector<8x8xbf16>
    %cst_19 = arith.constant dense<0.000000e+00> : vector<8x8xf32>
    %45 = tpu.matmul %43, %44, %cst_19 {dimension_numbers = #tpu.dot_dimension_numbers<[0], [0], [1], [1], [0, 1, 1, 1], [], []>} : vector<8x8xbf16>, vector<8x8xbf16>, vector<8x8xf32> -> vector<8x8xf32>
    %46 = arith.addf %45, %20 : vector<8x8xf32>
    %cst_20 = arith.constant dense<0xFF800000> : vector<8xf32>
    %47 = vector.multi_reduction <maximumf>, %46, %cst_20 [1] : vector<8x8xf32> to vector<8xf32>
    %48 = vector.shape_cast %47 : vector<8xf32> to vector<8x1xf32>
    %49 = vector.broadcast %48 : vector<8x1xf32> to vector<8x8xf32>
    %50 = arith.subf %46, %49 : vector<8x8xf32>
    %51 = math.exp %50 : vector<8x8xf32>
    %cst_21 = arith.constant dense<0.000000e+00> : vector<8xf32>
    %52 = vector.multi_reduction <add>, %51, %cst_21 [1] : vector<8x8xf32> to vector<8xf32>
    %53 = vector.shape_cast %52 : vector<8xf32> to vector<8x1xf32>
    %54 = tpu.reciprocal %53 {approx = true} : vector<8x1xf32> -> vector<8x1xf32>
    %55 = vector.broadcast %54 : vector<8x1xf32> to vector<8x8xf32>
    %56 = arith.mulf %51, %55 : vector<8x8xf32>
    %57 = vector.extract_strided_slice %12 {offsets = [8, 0], sizes = [8, 8], strides = [1, 1]} : vector<32x8xf32> to vector<8x8xf32>
    %58 = arith.truncf %57 : vector<8x8xf32> to vector<8x8xbf16>
    %59 = arith.truncf %56 : vector<8x8xf32> to vector<8x8xbf16>
    %cst_22 = arith.constant dense<0.000000e+00> : vector<8x8xf32>
    %60 = tpu.matmul %58, %59, %cst_22 {dimension_numbers = #tpu.dot_dimension_numbers<[1], [1], [0], [0], [0, 0, 1, 0], [], []>} : vector<8x8xbf16>, vector<8x8xbf16>, vector<8x8xf32> -> vector<8x8xf32>
    %61 = vector.extract_strided_slice %10 {offsets = [16, 0], sizes = [8, 8], strides = [1, 1]} : vector<32x8xf32> to vector<8x8xf32>
    %62 = vector.extract_strided_slice %11 {offsets = [16, 0], sizes = [8, 8], strides = [1, 1]} : vector<32x8xf32> to vector<8x8xf32>
    %63 = arith.truncf %61 : vector<8x8xf32> to vector<8x8xbf16>
    %64 = arith.truncf %62 : vector<8x8xf32> to vector<8x8xbf16>
    %cst_23 = arith.constant dense<0.000000e+00> : vector<8x8xf32>
    %65 = tpu.matmul %63, %64, %cst_23 {dimension_numbers = #tpu.dot_dimension_numbers<[0], [0], [1], [1], [0, 1, 1, 1], [], []>} : vector<8x8xbf16>, vector<8x8xbf16>, vector<8x8xf32> -> vector<8x8xf32>
    %66 = arith.addf %65, %20 : vector<8x8xf32>
    %cst_24 = arith.constant dense<0xFF800000> : vector<8xf32>
    %67 = vector.multi_reduction <maximumf>, %66, %cst_24 [1] : vector<8x8xf32> to vector<8xf32>
    %68 = vector.shape_cast %67 : vector<8xf32> to vector<8x1xf32>
    %69 = vector.broadcast %68 : vector<8x1xf32> to vector<8x8xf32>
    %70 = arith.subf %66, %69 : vector<8x8xf32>
    %71 = math.exp %70 : vector<8x8xf32>
    %cst_25 = arith.constant dense<0.000000e+00> : vector<8xf32>
    %72 = vector.multi_reduction <add>, %71, %cst_25 [1] : vector<8x8xf32> to vector<8xf32>
    %73 = vector.shape_cast %72 : vector<8xf32> to vector<8x1xf32>
    %74 = tpu.reciprocal %73 {approx = true} : vector<8x1xf32> -> vector<8x1xf32>
    %75 = vector.broadcast %74 : vector<8x1xf32> to vector<8x8xf32>
    %76 = arith.mulf %71, %75 : vector<8x8xf32>
    %77 = vector.extract_strided_slice %12 {offsets = [16, 0], sizes = [8, 8], strides = [1, 1]} : vector<32x8xf32> to vector<8x8xf32>
    %78 = arith.truncf %77 : vector<8x8xf32> to vector<8x8xbf16>
    %79 = arith.truncf %76 : vector<8x8xf32> to vector<8x8xbf16>
    %cst_26 = arith.constant dense<0.000000e+00> : vector<8x8xf32>
    %80 = tpu.matmul %78, %79, %cst_26 {dimension_numbers = #tpu.dot_dimension_numbers<[1], [1], [0], [0], [0, 0, 1, 0], [], []>} : vector<8x8xbf16>, vector<8x8xbf16>, vector<8x8xf32> -> vector<8x8xf32>
    %81 = vector.extract_strided_slice %10 {offsets = [24, 0], sizes = [8, 8], strides = [1, 1]} : vector<32x8xf32> to vector<8x8xf32>
    %82 = vector.extract_strided_slice %11 {offsets = [24, 0], sizes = [8, 8], strides = [1, 1]} : vector<32x8xf32> to vector<8x8xf32>
    %83 = arith.truncf %81 : vector<8x8xf32> to vector<8x8xbf16>
    %84 = arith.truncf %82 : vector<8x8xf32> to vector<8x8xbf16>
    %cst_27 = arith.constant dense<0.000000e+00> : vector<8x8xf32>
    %85 = tpu.matmul %83, %84, %cst_27 {dimension_numbers = #tpu.dot_dimension_numbers<[0], [0], [1], [1], [0, 1, 1, 1], [], []>} : vector<8x8xbf16>, vector<8x8xbf16>, vector<8x8xf32> -> vector<8x8xf32>
    %86 = arith.addf %85, %20 : vector<8x8xf32>
    %cst_28 = arith.constant dense<0xFF800000> : vector<8xf32>
    %87 = vector.multi_reduction <maximumf>, %86, %cst_28 [1] : vector<8x8xf32> to vector<8xf32>
    %88 = vector.shape_cast %87 : vector<8xf32> to vector<8x1xf32>
    %89 = vector.broadcast %88 : vector<8x1xf32> to vector<8x8xf32>
    %90 = arith.subf %86, %89 : vector<8x8xf32>
    %91 = math.exp %90 : vector<8x8xf32>
    %cst_29 = arith.constant dense<0.000000e+00> : vector<8xf32>
    %92 = vector.multi_reduction <add>, %91, %cst_29 [1] : vector<8x8xf32> to vector<8xf32>
    %93 = vector.shape_cast %92 : vector<8xf32> to vector<8x1xf32>
    %94 = tpu.reciprocal %93 {approx = true} : vector<8x1xf32> -> vector<8x1xf32>
    %95 = vector.broadcast %94 : vector<8x1xf32> to vector<8x8xf32>
    %96 = arith.mulf %91, %95 : vector<8x8xf32>
    %97 = vector.extract_strided_slice %12 {offsets = [24, 0], sizes = [8, 8], strides = [1, 1]} : vector<32x8xf32> to vector<8x8xf32>
    %98 = arith.truncf %97 : vector<8x8xf32> to vector<8x8xbf16>
    %99 = arith.truncf %96 : vector<8x8xf32> to vector<8x8xbf16>
    %cst_30 = arith.constant dense<0.000000e+00> : vector<8x8xf32>
    %100 = tpu.matmul %98, %99, %cst_30 {dimension_numbers = #tpu.dot_dimension_numbers<[1], [1], [0], [0], [0, 0, 1, 0], [], []>} : vector<8x8xbf16>, vector<8x8xbf16>, vector<8x8xf32> -> vector<8x8xf32>
    %101 = tpu.concatenate %40, %60, %80, %100 in 0 : vector<8x8xf32>, vector<8x8xf32>, vector<8x8xf32>, vector<8x8xf32> -> vector<32x8xf32>
    %102 = arith.truncf %101 : vector<32x8xf32> to vector<32x8xbf16>
    %cst_31 = arith.constant dense<0.000000e+00> : vector<8x32xf32>
    %103 = tpu.matmul %102, %13, %cst_31 {dimension_numbers = #tpu.dot_dimension_numbers<[0], [0], [1], [1], [0, 1, 1, 1], [], []>} : vector<32x8xbf16>, vector<32x32xbf16>, vector<8x32xf32> -> vector<8x32xf32>
    %104 = vector.broadcast %14 : vector<1x32xf32> to vector<8x32xf32>
    %105 = arith.addf %103, %104 : vector<8x32xf32>
    %106 = arith.addf %1, %105 : vector<8x32xf32>
    %c0_32 = arith.constant 0 : index
    %c0_33 = arith.constant 0 : index
    %107 = vector.load %arg17[%c0_32, %c0_33] : memref<6x32xf32, #tpu.memory_space<vmem>>, vector<1x32xf32>
    %c1 = arith.constant 1 : index
    %c0_34 = arith.constant 0 : index
    %108 = vector.load %arg17[%c1, %c0_34] : memref<6x32xf32, #tpu.memory_space<vmem>>, vector<1x32xf32>
    %cst_35 = arith.constant dense<0.000000e+00> : vector<8xf32>
    %109 = vector.multi_reduction <add>, %106, %cst_35 [1] : vector<8x32xf32> to vector<8xf32>
    %110 = vector.shape_cast %109 : vector<8xf32> to vector<8x1xf32>
    %cst_36 = arith.constant 3.200000e+01 : f32
    %111 = vector.broadcast %cst_36 : f32 to vector<8x1xf32>
    %112 = arith.divf %110, %111 : vector<8x1xf32>
    %113 = vector.broadcast %112 : vector<8x1xf32> to vector<8x32xf32>
    %114 = arith.subf %106, %113 : vector<8x32xf32>
    %115 = arith.mulf %114, %114 : vector<8x32xf32>
    %cst_37 = arith.constant dense<0.000000e+00> : vector<8xf32>
    %116 = vector.multi_reduction <add>, %115, %cst_37 [1] : vector<8x32xf32> to vector<8xf32>
    %117 = vector.shape_cast %116 : vector<8xf32> to vector<8x1xf32>
    %cst_38 = arith.constant 3.200000e+01 : f32
    %118 = vector.broadcast %cst_38 : f32 to vector<8x1xf32>
    %119 = arith.divf %117, %118 : vector<8x1xf32>
    %120 = vector.broadcast %112 : vector<8x1xf32> to vector<8x32xf32>
    %121 = arith.subf %106, %120 : vector<8x32xf32>
    %cst_39 = arith.constant 9.99999974E-6 : f32
    %122 = vector.broadcast %cst_39 : f32 to vector<8x1xf32>
    %123 = arith.addf %119, %122 : vector<8x1xf32>
    %124 = math.rsqrt %123 : vector<8x1xf32>
    %125 = vector.broadcast %124 : vector<8x1xf32> to vector<8x32xf32>
    %126 = arith.mulf %121, %125 : vector<8x32xf32>
    %127 = vector.broadcast %107 : vector<1x32xf32> to vector<8x32xf32>
    %128 = arith.mulf %126, %127 : vector<8x32xf32>
    %129 = vector.broadcast %108 : vector<1x32xf32> to vector<8x32xf32>
    %130 = arith.addf %128, %129 : vector<8x32xf32>
    %c0_40 = arith.constant 0 : index
    %c0_41 = arith.constant 0 : index
    %131 = vector.load %arg7[%c0_40, %c0_41] : memref<32x32xbf16, #tpu.memory_space<vmem>>, vector<32x32xbf16>
    %132 = arith.truncf %130 : vector<8x32xf32> to vector<8x32xbf16>
    %cst_42 = arith.constant dense<0.000000e+00> : vector<32x8xf32>
    %133 = tpu.matmul %131, %132, %cst_42 {dimension_numbers = #tpu.dot_dimension_numbers<[1], [1], [0], [0], [0, 0, 1, 0], [], []>} : vector<32x32xbf16>, vector<8x32xbf16>, vector<32x8xf32> -> vector<32x8xf32>
    %c0_43 = arith.constant 0 : index
    %c0_44 = arith.constant 0 : index
    %134 = vector.load %arg8[%c0_43, %c0_44] : memref<32x1xf32, #tpu.memory_space<vmem>>, vector<32x1xf32>
    %135 = vector.broadcast %134 : vector<32x1xf32> to vector<32x8xf32>
    %136 = arith.addf %133, %135 : vector<32x8xf32>
    %c0_45 = arith.constant 0 : index
    %c0_46 = arith.constant 0 : index
    %137 = vector.load %arg9[%c0_45, %c0_46] : memref<64x32xbf16, #tpu.memory_space<vmem>>, vector<64x32xbf16>
    %138 = arith.truncf %3 : vector<16x32xf32> to vector<16x32xbf16>
    %cst_47 = arith.constant dense<0.000000e+00> : vector<64x16xf32>
    %139 = tpu.matmul %137, %138, %cst_47 {dimension_numbers = #tpu.dot_dimension_numbers<[1], [1], [0], [0], [0, 0, 1, 0], [], []>} : vector<64x32xbf16>, vector<16x32xbf16>, vector<64x16xf32> -> vector<64x16xf32>
    %c0_48 = arith.constant 0 : index
    %c0_49 = arith.constant 0 : index
    %140 = vector.load %arg10[%c0_48, %c0_49] : memref<64x1xf32, #tpu.memory_space<vmem>>, vector<64x1xf32>
    %141 = vector.broadcast %140 : vector<64x1xf32> to vector<64x16xf32>
    %142 = arith.addf %139, %141 : vector<64x16xf32>
    %143 = vector.extract_strided_slice %142 {offsets = [0, 0], sizes = [32, 16], strides = [1, 1]} : vector<64x16xf32> to vector<32x16xf32>
    %144 = vector.extract_strided_slice %142 {offsets = [32, 0], sizes = [32, 16], strides = [1, 1]} : vector<64x16xf32> to vector<32x16xf32>
    %c0_50 = arith.constant 0 : index
    %c0_51 = arith.constant 0 : index
    %145 = vector.load %arg11[%c0_50, %c0_51] : memref<32x32xbf16, #tpu.memory_space<vmem>>, vector<32x32xbf16>
    %c0_52 = arith.constant 0 : index
    %c0_53 = arith.constant 0 : index
    %146 = vector.load %arg12[%c0_52, %c0_53] : memref<1x32xf32, #tpu.memory_space<vmem>>, vector<1x32xf32>
    %147 = vector.extract_strided_slice %136 {offsets = [0, 0], sizes = [8, 8], strides = [1, 1]} : vector<32x8xf32> to vector<8x8xf32>
    %148 = vector.extract_strided_slice %143 {offsets = [0, 0], sizes = [8, 16], strides = [1, 1]} : vector<32x16xf32> to vector<8x16xf32>
    %149 = arith.truncf %147 : vector<8x8xf32> to vector<8x8xbf16>
    %150 = arith.truncf %148 : vector<8x16xf32> to vector<8x16xbf16>
    %cst_54 = arith.constant dense<0.000000e+00> : vector<8x16xf32>
    %151 = tpu.matmul %149, %150, %cst_54 {dimension_numbers = #tpu.dot_dimension_numbers<[0], [0], [1], [1], [0, 1, 1, 1], [], []>} : vector<8x8xbf16>, vector<8x16xbf16>, vector<8x16xf32> -> vector<8x16xf32>
    %cst_55 = arith.constant dense<0xFF800000> : vector<8xf32>
    %152 = vector.multi_reduction <maximumf>, %151, %cst_55 [1] : vector<8x16xf32> to vector<8xf32>
    %153 = vector.shape_cast %152 : vector<8xf32> to vector<8x1xf32>
    %154 = vector.broadcast %153 : vector<8x1xf32> to vector<8x16xf32>
    %155 = arith.subf %151, %154 : vector<8x16xf32>
    %156 = math.exp %155 : vector<8x16xf32>
    %cst_56 = arith.constant dense<0.000000e+00> : vector<8xf32>
    %157 = vector.multi_reduction <add>, %156, %cst_56 [1] : vector<8x16xf32> to vector<8xf32>
    %158 = vector.shape_cast %157 : vector<8xf32> to vector<8x1xf32>
    %159 = tpu.reciprocal %158 {approx = true} : vector<8x1xf32> -> vector<8x1xf32>
    %160 = vector.broadcast %159 : vector<8x1xf32> to vector<8x16xf32>
    %161 = arith.mulf %156, %160 : vector<8x16xf32>
    %162 = vector.extract_strided_slice %144 {offsets = [0, 0], sizes = [8, 16], strides = [1, 1]} : vector<32x16xf32> to vector<8x16xf32>
    %163 = arith.truncf %162 : vector<8x16xf32> to vector<8x16xbf16>
    %164 = arith.truncf %161 : vector<8x16xf32> to vector<8x16xbf16>
    %cst_57 = arith.constant dense<0.000000e+00> : vector<8x8xf32>
    %165 = tpu.matmul %163, %164, %cst_57 {dimension_numbers = #tpu.dot_dimension_numbers<[1], [1], [0], [0], [0, 0, 1, 0], [], []>} : vector<8x16xbf16>, vector<8x16xbf16>, vector<8x8xf32> -> vector<8x8xf32>
    %166 = vector.extract_strided_slice %136 {offsets = [8, 0], sizes = [8, 8], strides = [1, 1]} : vector<32x8xf32> to vector<8x8xf32>
    %167 = vector.extract_strided_slice %143 {offsets = [8, 0], sizes = [8, 16], strides = [1, 1]} : vector<32x16xf32> to vector<8x16xf32>
    %168 = arith.truncf %166 : vector<8x8xf32> to vector<8x8xbf16>
    %169 = arith.truncf %167 : vector<8x16xf32> to vector<8x16xbf16>
    %cst_58 = arith.constant dense<0.000000e+00> : vector<8x16xf32>
    %170 = tpu.matmul %168, %169, %cst_58 {dimension_numbers = #tpu.dot_dimension_numbers<[0], [0], [1], [1], [0, 1, 1, 1], [], []>} : vector<8x8xbf16>, vector<8x16xbf16>, vector<8x16xf32> -> vector<8x16xf32>
    %cst_59 = arith.constant dense<0xFF800000> : vector<8xf32>
    %171 = vector.multi_reduction <maximumf>, %170, %cst_59 [1] : vector<8x16xf32> to vector<8xf32>
    %172 = vector.shape_cast %171 : vector<8xf32> to vector<8x1xf32>
    %173 = vector.broadcast %172 : vector<8x1xf32> to vector<8x16xf32>
    %174 = arith.subf %170, %173 : vector<8x16xf32>
    %175 = math.exp %174 : vector<8x16xf32>
    %cst_60 = arith.constant dense<0.000000e+00> : vector<8xf32>
    %176 = vector.multi_reduction <add>, %175, %cst_60 [1] : vector<8x16xf32> to vector<8xf32>
    %177 = vector.shape_cast %176 : vector<8xf32> to vector<8x1xf32>
    %178 = tpu.reciprocal %177 {approx = true} : vector<8x1xf32> -> vector<8x1xf32>
    %179 = vector.broadcast %178 : vector<8x1xf32> to vector<8x16xf32>
    %180 = arith.mulf %175, %179 : vector<8x16xf32>
    %181 = vector.extract_strided_slice %144 {offsets = [8, 0], sizes = [8, 16], strides = [1, 1]} : vector<32x16xf32> to vector<8x16xf32>
    %182 = arith.truncf %181 : vector<8x16xf32> to vector<8x16xbf16>
    %183 = arith.truncf %180 : vector<8x16xf32> to vector<8x16xbf16>
    %cst_61 = arith.constant dense<0.000000e+00> : vector<8x8xf32>
    %184 = tpu.matmul %182, %183, %cst_61 {dimension_numbers = #tpu.dot_dimension_numbers<[1], [1], [0], [0], [0, 0, 1, 0], [], []>} : vector<8x16xbf16>, vector<8x16xbf16>, vector<8x8xf32> -> vector<8x8xf32>
    %185 = vector.extract_strided_slice %136 {offsets = [16, 0], sizes = [8, 8], strides = [1, 1]} : vector<32x8xf32> to vector<8x8xf32>
    %186 = vector.extract_strided_slice %143 {offsets = [16, 0], sizes = [8, 16], strides = [1, 1]} : vector<32x16xf32> to vector<8x16xf32>
    %187 = arith.truncf %185 : vector<8x8xf32> to vector<8x8xbf16>
    %188 = arith.truncf %186 : vector<8x16xf32> to vector<8x16xbf16>
    %cst_62 = arith.constant dense<0.000000e+00> : vector<8x16xf32>
    %189 = tpu.matmul %187, %188, %cst_62 {dimension_numbers = #tpu.dot_dimension_numbers<[0], [0], [1], [1], [0, 1, 1, 1], [], []>} : vector<8x8xbf16>, vector<8x16xbf16>, vector<8x16xf32> -> vector<8x16xf32>
    %cst_63 = arith.constant dense<0xFF800000> : vector<8xf32>
    %190 = vector.multi_reduction <maximumf>, %189, %cst_63 [1] : vector<8x16xf32> to vector<8xf32>
    %191 = vector.shape_cast %190 : vector<8xf32> to vector<8x1xf32>
    %192 = vector.broadcast %191 : vector<8x1xf32> to vector<8x16xf32>
    %193 = arith.subf %189, %192 : vector<8x16xf32>
    %194 = math.exp %193 : vector<8x16xf32>
    %cst_64 = arith.constant dense<0.000000e+00> : vector<8xf32>
    %195 = vector.multi_reduction <add>, %194, %cst_64 [1] : vector<8x16xf32> to vector<8xf32>
    %196 = vector.shape_cast %195 : vector<8xf32> to vector<8x1xf32>
    %197 = tpu.reciprocal %196 {approx = true} : vector<8x1xf32> -> vector<8x1xf32>
    %198 = vector.broadcast %197 : vector<8x1xf32> to vector<8x16xf32>
    %199 = arith.mulf %194, %198 : vector<8x16xf32>
    %200 = vector.extract_strided_slice %144 {offsets = [16, 0], sizes = [8, 16], strides = [1, 1]} : vector<32x16xf32> to vector<8x16xf32>
    %201 = arith.truncf %200 : vector<8x16xf32> to vector<8x16xbf16>
    %202 = arith.truncf %199 : vector<8x16xf32> to vector<8x16xbf16>
    %cst_65 = arith.constant dense<0.000000e+00> : vector<8x8xf32>
    %203 = tpu.matmul %201, %202, %cst_65 {dimension_numbers = #tpu.dot_dimension_numbers<[1], [1], [0], [0], [0, 0, 1, 0], [], []>} : vector<8x16xbf16>, vector<8x16xbf16>, vector<8x8xf32> -> vector<8x8xf32>
    %204 = vector.extract_strided_slice %136 {offsets = [24, 0], sizes = [8, 8], strides = [1, 1]} : vector<32x8xf32> to vector<8x8xf32>
    %205 = vector.extract_strided_slice %143 {offsets = [24, 0], sizes = [8, 16], strides = [1, 1]} : vector<32x16xf32> to vector<8x16xf32>
    %206 = arith.truncf %204 : vector<8x8xf32> to vector<8x8xbf16>
    %207 = arith.truncf %205 : vector<8x16xf32> to vector<8x16xbf16>
    %cst_66 = arith.constant dense<0.000000e+00> : vector<8x16xf32>
    %208 = tpu.matmul %206, %207, %cst_66 {dimension_numbers = #tpu.dot_dimension_numbers<[0], [0], [1], [1], [0, 1, 1, 1], [], []>} : vector<8x8xbf16>, vector<8x16xbf16>, vector<8x16xf32> -> vector<8x16xf32>
    %cst_67 = arith.constant dense<0xFF800000> : vector<8xf32>
    %209 = vector.multi_reduction <maximumf>, %208, %cst_67 [1] : vector<8x16xf32> to vector<8xf32>
    %210 = vector.shape_cast %209 : vector<8xf32> to vector<8x1xf32>
    %211 = vector.broadcast %210 : vector<8x1xf32> to vector<8x16xf32>
    %212 = arith.subf %208, %211 : vector<8x16xf32>
    %213 = math.exp %212 : vector<8x16xf32>
    %cst_68 = arith.constant dense<0.000000e+00> : vector<8xf32>
    %214 = vector.multi_reduction <add>, %213, %cst_68 [1] : vector<8x16xf32> to vector<8xf32>
    %215 = vector.shape_cast %214 : vector<8xf32> to vector<8x1xf32>
    %216 = tpu.reciprocal %215 {approx = true} : vector<8x1xf32> -> vector<8x1xf32>
    %217 = vector.broadcast %216 : vector<8x1xf32> to vector<8x16xf32>
    %218 = arith.mulf %213, %217 : vector<8x16xf32>
    %219 = vector.extract_strided_slice %144 {offsets = [24, 0], sizes = [8, 16], strides = [1, 1]} : vector<32x16xf32> to vector<8x16xf32>
    %220 = arith.truncf %219 : vector<8x16xf32> to vector<8x16xbf16>
    %221 = arith.truncf %218 : vector<8x16xf32> to vector<8x16xbf16>
    %cst_69 = arith.constant dense<0.000000e+00> : vector<8x8xf32>
    %222 = tpu.matmul %220, %221, %cst_69 {dimension_numbers = #tpu.dot_dimension_numbers<[1], [1], [0], [0], [0, 0, 1, 0], [], []>} : vector<8x16xbf16>, vector<8x16xbf16>, vector<8x8xf32> -> vector<8x8xf32>
    %223 = tpu.concatenate %165, %184, %203, %222 in 0 : vector<8x8xf32>, vector<8x8xf32>, vector<8x8xf32>, vector<8x8xf32> -> vector<32x8xf32>
    %224 = arith.truncf %223 : vector<32x8xf32> to vector<32x8xbf16>
    %cst_70 = arith.constant dense<0.000000e+00> : vector<8x32xf32>
    %225 = tpu.matmul %224, %145, %cst_70 {dimension_numbers = #tpu.dot_dimension_numbers<[0], [0], [1], [1], [0, 1, 1, 1], [], []>} : vector<32x8xbf16>, vector<32x32xbf16>, vector<8x32xf32> -> vector<8x32xf32>
    %226 = vector.broadcast %146 : vector<1x32xf32> to vector<8x32xf32>
    %227 = arith.addf %225, %226 : vector<8x32xf32>
    %228 = arith.addf %130, %227 : vector<8x32xf32>
    %c2 = arith.constant 2 : index
    %c0_71 = arith.constant 0 : index
    %229 = vector.load %arg17[%c2, %c0_71] : memref<6x32xf32, #tpu.memory_space<vmem>>, vector<1x32xf32>
    %c3 = arith.constant 3 : index
    %c0_72 = arith.constant 0 : index
    %230 = vector.load %arg17[%c3, %c0_72] : memref<6x32xf32, #tpu.memory_space<vmem>>, vector<1x32xf32>
    %cst_73 = arith.constant dense<0.000000e+00> : vector<8xf32>
    %231 = vector.multi_reduction <add>, %228, %cst_73 [1] : vector<8x32xf32> to vector<8xf32>
    %232 = vector.shape_cast %231 : vector<8xf32> to vector<8x1xf32>
    %cst_74 = arith.constant 3.200000e+01 : f32
    %233 = vector.broadcast %cst_74 : f32 to vector<8x1xf32>
    %234 = arith.divf %232, %233 : vector<8x1xf32>
    %235 = vector.broadcast %234 : vector<8x1xf32> to vector<8x32xf32>
    %236 = arith.subf %228, %235 : vector<8x32xf32>
    %237 = arith.mulf %236, %236 : vector<8x32xf32>
    %cst_75 = arith.constant dense<0.000000e+00> : vector<8xf32>
    %238 = vector.multi_reduction <add>, %237, %cst_75 [1] : vector<8x32xf32> to vector<8xf32>
    %239 = vector.shape_cast %238 : vector<8xf32> to vector<8x1xf32>
    %cst_76 = arith.constant 3.200000e+01 : f32
    %240 = vector.broadcast %cst_76 : f32 to vector<8x1xf32>
    %241 = arith.divf %239, %240 : vector<8x1xf32>
    %242 = vector.broadcast %234 : vector<8x1xf32> to vector<8x32xf32>
    %243 = arith.subf %228, %242 : vector<8x32xf32>
    %cst_77 = arith.constant 9.99999974E-6 : f32
    %244 = vector.broadcast %cst_77 : f32 to vector<8x1xf32>
    %245 = arith.addf %241, %244 : vector<8x1xf32>
    %246 = math.rsqrt %245 : vector<8x1xf32>
    %247 = vector.broadcast %246 : vector<8x1xf32> to vector<8x32xf32>
    %248 = arith.mulf %243, %247 : vector<8x32xf32>
    %249 = vector.broadcast %229 : vector<1x32xf32> to vector<8x32xf32>
    %250 = arith.mulf %248, %249 : vector<8x32xf32>
    %251 = vector.broadcast %230 : vector<1x32xf32> to vector<8x32xf32>
    %252 = arith.addf %250, %251 : vector<8x32xf32>
    %c0_78 = arith.constant 0 : index
    %c0_79 = arith.constant 0 : index
    %253 = vector.load %arg13[%c0_78, %c0_79] : memref<32x64xbf16, #tpu.memory_space<vmem>>, vector<32x64xbf16>
    %254 = arith.truncf %252 : vector<8x32xf32> to vector<8x32xbf16>
    %cst_80 = arith.constant dense<0.000000e+00> : vector<8x64xf32>
    %255 = tpu.matmul %254, %253, %cst_80 {dimension_numbers = #tpu.dot_dimension_numbers<[1], [0], [0], [1], [0, 0, 1, 1], [], []>} : vector<8x32xbf16>, vector<32x64xbf16>, vector<8x64xf32> -> vector<8x64xf32>
    %c0_81 = arith.constant 0 : index
    %c0_82 = arith.constant 0 : index
    %256 = vector.load %arg14[%c0_81, %c0_82] : memref<1x64xf32, #tpu.memory_space<vmem>>, vector<1x64xf32>
    %257 = vector.broadcast %256 : vector<1x64xf32> to vector<8x64xf32>
    %258 = arith.addf %255, %257 : vector<8x64xf32>
    %cst_83 = arith.constant 0.000000e+00 : f32
    %259 = vector.broadcast %cst_83 : f32 to vector<8x64xf32>
    %260 = arith.maximumf %258, %259 : vector<8x64xf32>
    %c0_84 = arith.constant 0 : index
    %c0_85 = arith.constant 0 : index
    %261 = vector.load %arg15[%c0_84, %c0_85] : memref<64x32xbf16, #tpu.memory_space<vmem>>, vector<64x32xbf16>
    %262 = arith.truncf %260 : vector<8x64xf32> to vector<8x64xbf16>
    %cst_86 = arith.constant dense<0.000000e+00> : vector<8x32xf32>
    %263 = tpu.matmul %262, %261, %cst_86 {dimension_numbers = #tpu.dot_dimension_numbers<[1], [0], [0], [1], [0, 0, 1, 1], [], []>} : vector<8x64xbf16>, vector<64x32xbf16>, vector<8x32xf32> -> vector<8x32xf32>
    %c0_87 = arith.constant 0 : index
    %c0_88 = arith.constant 0 : index
    %264 = vector.load %arg16[%c0_87, %c0_88] : memref<1x32xf32, #tpu.memory_space<vmem>>, vector<1x32xf32>
    %265 = vector.broadcast %264 : vector<1x32xf32> to vector<8x32xf32>
    %266 = arith.addf %263, %265 : vector<8x32xf32>
    %267 = arith.addf %252, %266 : vector<8x32xf32>
    %c4 = arith.constant 4 : index
    %c0_89 = arith.constant 0 : index
    %268 = vector.load %arg17[%c4, %c0_89] : memref<6x32xf32, #tpu.memory_space<vmem>>, vector<1x32xf32>
    %c5 = arith.constant 5 : index
    %c0_90 = arith.constant 0 : index
    %269 = vector.load %arg17[%c5, %c0_90] : memref<6x32xf32, #tpu.memory_space<vmem>>, vector<1x32xf32>
    %cst_91 = arith.constant dense<0.000000e+00> : vector<8xf32>
    %270 = vector.multi_reduction <add>, %267, %cst_91 [1] : vector<8x32xf32> to vector<8xf32>
    %271 = vector.shape_cast %270 : vector<8xf32> to vector<8x1xf32>
    %cst_92 = arith.constant 3.200000e+01 : f32
    %272 = vector.broadcast %cst_92 : f32 to vector<8x1xf32>
    %273 = arith.divf %271, %272 : vector<8x1xf32>
    %274 = vector.broadcast %273 : vector<8x1xf32> to vector<8x32xf32>
    %275 = arith.subf %267, %274 : vector<8x32xf32>
    %276 = arith.mulf %275, %275 : vector<8x32xf32>
    %cst_93 = arith.constant dense<0.000000e+00> : vector<8xf32>
    %277 = vector.multi_reduction <add>, %276, %cst_93 [1] : vector<8x32xf32> to vector<8xf32>
    %278 = vector.shape_cast %277 : vector<8xf32> to vector<8x1xf32>
    %cst_94 = arith.constant 3.200000e+01 : f32
    %279 = vector.broadcast %cst_94 : f32 to vector<8x1xf32>
    %280 = arith.divf %278, %279 : vector<8x1xf32>
    %281 = vector.broadcast %273 : vector<8x1xf32> to vector<8x32xf32>
    %282 = arith.subf %267, %281 : vector<8x32xf32>
    %cst_95 = arith.constant 9.99999974E-6 : f32
    %283 = vector.broadcast %cst_95 : f32 to vector<8x1xf32>
    %284 = arith.addf %280, %283 : vector<8x1xf32>
    %285 = math.rsqrt %284 : vector<8x1xf32>
    %286 = vector.broadcast %285 : vector<8x1xf32> to vector<8x32xf32>
    %287 = arith.mulf %282, %286 : vector<8x32xf32>
    %288 = vector.broadcast %268 : vector<1x32xf32> to vector<8x32xf32>
    %289 = arith.mulf %287, %288 : vector<8x32xf32>
    %290 = vector.broadcast %269 : vector<1x32xf32> to vector<8x32xf32>
    %291 = arith.addf %289, %290 : vector<8x32xf32>
    %c0_96 = arith.constant 0 : index
    %c0_97 = arith.constant 0 : index
    %c0_98 = arith.constant 0 : index
    %292 = vector.load %arg18[%c0_96, %c0_97, %c0_98] : memref<1x8x32xf32, #tpu.memory_space<vmem>>, vector<1x8x32xf32>
    %293 = vector.shape_cast %292 : vector<1x8x32xf32> to vector<8x32xf32>
    %294 = vector.shape_cast %291 : vector<8x32xf32> to vector<1x8x32xf32>
    tpu.vector_store %arg18[%c0_96, %c0_97, %c0_98], %294 {strides = array<i32>} : memref<1x8x32xf32, #tpu.memory_space<vmem>>, vector<1x8x32xf32>,
    return
  }
  func.func @transform_0(%arg0: i32) -> (i32, i32, i32) {
    %c0_i32 = arith.constant 0 : i32
    %c0_i32_0 = arith.constant 0 : i32
    %c0_i32_1 = arith.constant 0 : i32
    return %arg0, %c0_i32, %c0_i32_0 : i32, i32, i32
  }
  func.func @transform_1(%arg0: i32) -> (i32, i32, i32) {
    %c0_i32 = arith.constant 0 : i32
    %c0_i32_0 = arith.constant 0 : i32
    %c0_i32_1 = arith.constant 0 : i32
    return %arg0, %c0_i32, %c0_i32_0 : i32, i32, i32
  }
  func.func @transform_2(%arg0: i32) -> (i32, i32) {
    %c0_i32 = arith.constant 0 : i32
    %c0_i32_0 = arith.constant 0 : i32
    %c0_i32_1 = arith.constant 0 : i32
    return %c0_i32, %c0_i32_0 : i32, i32
  }
  func.func @transform_3(%arg0: i32) -> (i32, i32) {
    %c0_i32 = arith.constant 0 : i32
    %c0_i32_0 = arith.constant 0 : i32
    %c0_i32_1 = arith.constant 0 : i32
    return %c0_i32, %c0_i32_0 : i32, i32
  }
  func.func @transform_4(%arg0: i32) -> (i32, i32) {
    %c0_i32 = arith.constant 0 : i32
    %c0_i32_0 = arith.constant 0 : i32
    %c0_i32_1 = arith.constant 0 : i32
    return %c0_i32, %c0_i32_0 : i32, i32
  }
  func.func @transform_5(%arg0: i32) -> (i32, i32) {
    %c0_i32 = arith.constant 0 : i32
    %c0_i32_0 = arith.constant 0 : i32
    %c0_i32_1 = arith.constant 0 : i32
    return %c0_i32, %c0_i32_0 : i32, i32
  }
  func.func @transform_6(%arg0: i32) -> (i32, i32) {
    %c0_i32 = arith.constant 0 : i32
    %c0_i32_0 = arith.constant 0 : i32
    %c0_i32_1 = arith.constant 0 : i32
    return %c0_i32, %c0_i32_0 : i32, i32
  }
  func.func @transform_7(%arg0: i32) -> (i32, i32) {
    %c0_i32 = arith.constant 0 : i32
    %c0_i32_0 = arith.constant 0 : i32
    %c0_i32_1 = arith.constant 0 : i32
    return %c0_i32, %c0_i32_0 : i32, i32
  }
  func.func @transform_8(%arg0: i32) -> (i32, i32) {
    %c0_i32 = arith.constant 0 : i32
    %c0_i32_0 = arith.constant 0 : i32
    %c0_i32_1 = arith.constant 0 : i32
    return %c0_i32, %c0_i32_0 : i32, i32
  }
  func.func @transform_9(%arg0: i32) -> (i32, i32) {
    %c0_i32 = arith.constant 0 : i32
    %c0_i32_0 = arith.constant 0 : i32
    %c0_i32_1 = arith.constant 0 : i32
    return %c0_i32, %c0_i32_0 : i32, i32
  }
  func.func @transform_10(%arg0: i32) -> (i32, i32) {
    %c0_i32 = arith.constant 0 : i32
    %c0_i32_0 = arith.constant 0 : i32
    %c0_i32_1 = arith.constant 0 : i32
    return %c0_i32, %c0_i32_0 : i32, i32
  }
  func.func @transform_11(%arg0: i32) -> (i32, i32) {
    %c0_i32 = arith.constant 0 : i32
    %c0_i32_0 = arith.constant 0 : i32
    %c0_i32_1 = arith.constant 0 : i32
    return %c0_i32, %c0_i32_0 : i32, i32
  }
  func.func @transform_12(%arg0: i32) -> (i32, i32) {
    %c0_i32 = arith.constant 0 : i32
    %c0_i32_0 = arith.constant 0 : i32
    %c0_i32_1 = arith.constant 0 : i32
    return %c0_i32, %c0_i32_0 : i32, i32
  }
  func.func @transform_13(%arg0: i32) -> (i32, i32) {
    %c0_i32 = arith.constant 0 : i32
    %c0_i32_0 = arith.constant 0 : i32
    %c0_i32_1 = arith.constant 0 : i32
    return %c0_i32, %c0_i32_0 : i32, i32
  }
  func.func @transform_14(%arg0: i32) -> (i32, i32) {
    %c0_i32 = arith.constant 0 : i32
    %c0_i32_0 = arith.constant 0 : i32
    %c0_i32_1 = arith.constant 0 : i32
    return %c0_i32, %c0_i32_0 : i32, i32
  }
  func.func @transform_15(%arg0: i32) -> (i32, i32) {
    %c0_i32 = arith.constant 0 : i32
    %c0_i32_0 = arith.constant 0 : i32
    %c0_i32_1 = arith.constant 0 : i32
    return %c0_i32, %c0_i32_0 : i32, i32
  }
  func.func @transform_16(%arg0: i32) -> (i32, i32) {
    %c0_i32 = arith.constant 0 : i32
    %c0_i32_0 = arith.constant 0 : i32
    %c0_i32_1 = arith.constant 0 : i32
    return %c0_i32, %c0_i32_0 : i32, i32
  }
  func.func @transform_17(%arg0: i32) -> (i32, i32, i32) {
    %c0_i32 = arith.constant 0 : i32
    %c0_i32_0 = arith.constant 0 : i32
    %c0_i32_1 = arith.constant 0 : i32
    return %arg0, %c0_i32, %c0_i32_0 : i32, i32, i32
  }
}

</mosaic_0001>

<llo_original>
// kernel: audio_captioning_forward.6
$region0: #{audio_captioning_forward.6}
  #allocation0 [shape = 'u32[]', space=smem, size = 0x4, offset = 0x4, fixed_abs, tag = 'smem constant byte address 0x4 - core index']
  #allocation1 [shape = 'u32[72,128]{1,0:T(1,128)}', space=vmem, size = 0x9000, scoped, tag = 'internal scratch']
  %s0 = inlined_call_operand.vmem [shape: f32[2,18,8], index: 0, kind: input, shape index: {}]
  %s1 = inlined_call_operand.vmem [shape: bf16[3,8,32], index: 1, kind: input, shape index: {}]
  %s2 = inlined_call_operand.vmem [shape: f32[1,32], index: 2, kind: input, shape index: {}]
  %s3 = inlined_call_operand.vmem [shape: f32[2,1,32], index: 3, kind: input, shape index: {}]
  %s4 = inlined_call_operand.vmem [shape: f32[2,16,32], index: 4, kind: output, shape index: {}]
  %s5 = sld [smem:[#allocation0]]
  $region49: #{audio_captioning_forward.6} parent=0
    _
  %s7 = ssub.s32 1, %s5
  %s8 = scalar_select 0, %s7, %s5
  loop: start=0, step=1, limit=4
  $region2: #{audio_captioning_forward.6} parent=0 // loop_pre_header
    _
  $region3: #{audio_captioning_forward.6} parent=0 // loop_header
    %s10 = sphi 0, %s14
    %p11 = scmp.ge.s32.totalorder %s10, 4
    %s20 = sphi 0, %s22
    %s23 = sphi 0, %s20
    %s24 = sphi 0, %s23
    %s40 = sphi 0, %s24
    %s44 = sphi 0, %s44
    %s46 = sphi 0, %s44
    %s47 = sphi 0, %s46
    %s61 = sphi 0, %s47
    %s65 = sphi 0, %s65
    %s67 = sphi 0, %s65
    %s68 = sphi 0, %s67
    %s82 = sphi 0, %s68
    %s88 = sphi 0, %s90
    %s91 = sphi 0, %s88
    %s92 = sphi 0, %s91
    %s108 = sphi 0, %s92
    %s114 = sphi 0, %s116
    %s117 = sphi 0, %s114
    %s118 = sphi 0, %s117
    %s134 = sphi 0, %s118
  $region4: #{audio_captioning_forward.6} parent=0 // loop_header_branch
    %13 = sbr.rel (%p11) target = $region8
  $region5: #{audio_captioning_forward.6} parent=0 // loop_body
    %s15 = ssub.s32 %s10, 1
    %s16 = ssub.s32 %s10, 2
    %s17 = sadd.s32 %s10, 1
    %s18 = ssub.s32 %s10, %s17
    %p19 = scmp.eq.s32.totalorder %s18, 0
    %s21 = sadd.s32 %s20, 1
    %s22 = scalar_select %p19, %s20, %s21
    %p25 = pneg %p19
    %p26 = scmp.eq.s32.totalorder %s10, 1
    %p27 = por %p25, %p26
    %p28 = scmp.ne.s32.totalorder %s20, %s23
    %p29 = scmp.eq.s32.totalorder %s10, 0
    %p30 = por %p28, %p29
    %p31 = scmp.ne.s32.totalorder %s20, %s23
    %p32 = scmp.eq.s32.totalorder %s15, 1
    %p33 = por %p31, %p32
    %p34 = scmp.ne.s32.totalorder %s23, %s24
    %p35 = scmp.eq.s32.totalorder %s15, 0
    %p36 = por %p34, %p35
    %p37 = scmp.ne.s32.totalorder %s23, %s24
    %p38 = scmp.eq.s32.totalorder %s16, 1
    %p39 = por %p37, %p38
    %p41 = scmp.ne.s32.totalorder %s24, %s40
    %p42 = scmp.eq.s32.totalorder %s16, 0
    %p43 = por %p41, %p42
    %s45 = sadd.s32 %s44, 1
    %p48 = scmp.eq.s32.totalorder %s10, 1
    %p49 = scmp.ne.s32.totalorder %s44, %s46
    %p50 = scmp.eq.s32.totalorder %s10, 0
    %p51 = por %p49, %p50
    %p52 = scmp.ne.s32.totalorder %s44, %s46
    %p53 = scmp.eq.s32.totalorder %s15, 1
    %p54 = por %p52, %p53
    %p55 = scmp.ne.s32.totalorder %s46, %s47
    %p56 = scmp.eq.s32.totalorder %s15, 0
    %p57 = por %p55, %p56
    %p58 = scmp.ne.s32.totalorder %s46, %s47
    %p59 = scmp.eq.s32.totalorder %s16, 1
    %p60 = por %p58, %p59
    %p62 = scmp.ne.s32.totalorder %s47, %s61
    %p63 = scmp.eq.s32.totalorder %s16, 0
    %p64 = por %p62, %p63
    %s66 = sadd.s32 %s65, 1
    %p69 = scmp.eq.s32.totalorder %s10, 1
    %p70 = scmp.ne.s32.totalorder %s65, %s67
    %p71 = scmp.eq.s32.totalorder %s10, 0
    %p72 = por %p70, %p71
    %p73 = scmp.ne.s32.totalorder %s65, %s67
    %p74 = scmp.eq.s32.totalorder %s15, 1
    %p75 = por %p73, %p74
    %p76 = scmp.ne.s32.totalorder %s67, %s68
    %p77 = scmp.eq.s32.totalorder %s15, 0
    %p78 = por %p76, %p77
    %p79 = scmp.ne.s32.totalorder %s67, %s68
    %p80 = scmp.eq.s32.totalorder %s16, 1
    %p81 = por %p79, %p80
    %p83 = scmp.ne.s32.totalorder %s68, %s82
    %p84 = scmp.eq.s32.totalorder %s16, 0
    %p85 = por %p83, %p84
    %s86 = ssub.s32 %s10, %s17
    %p87 = scmp.eq.s32.totalorder %s86, 0
    %s89 = sadd.s32 %s88, 1
    %s90 = scalar_select %p87, %s88, %s89
    %p93 = pneg %p87
    %p94 = scmp.eq.s32.totalorder %s10, 1
    %p95 = por %p93, %p94
    %p96 = scmp.ne.s32.totalorder %s88, %s91
    %p97 = scmp.eq.s32.totalorder %s10, 0
    %p98 = por %p96, %p97
    %p99 = scmp.ne.s32.totalorder %s88, %s91
    %p100 = scmp.eq.s32.totalorder %s15, 1
    %p101 = por %p99, %p100
    %p102 = scmp.ne.s32.totalorder %s91, %s92
    %p103 = scmp.eq.s32.totalorder %s15, 0
    %p104 = por %p102, %p103
    %p105 = scmp.ne.s32.totalorder %s91, %s92
    %p106 = scmp.eq.s32.totalorder %s16, 1
    %p107 = por %p105, %p106
    %p109 = scmp.ne.s32.totalorder %s92, %s108
    %p110 = scmp.eq.s32.totalorder %s16, 0
    %p111 = por %p109, %p110
    %s112 = ssub.s32 %s10, %s17
    %p113 = scmp.eq.s32.totalorder %s112, 0
    %s115 = sadd.s32 %s114, 1
    %s116 = scalar_select %p113, %s114, %s115
    %p119 = pneg %p113
    %p120 = scmp.eq.s32.totalorder %s10, 1
    %p121 = por %p119, %p120
    %p122 = scmp.ne.s32.totalorder %s114, %s117
    %p123 = scmp.eq.s32.totalorder %s10, 0
    %p124 = por %p122, %p123
    %p125 = scmp.ne.s32.totalorder %s114, %s117
    %p126 = scmp.eq.s32.totalorder %s15, 1
    %p127 = por %p125, %p126
    %p128 = scmp.ne.s32.totalorder %s117, %s118
    %p129 = scmp.eq.s32.totalorder %s15, 0
    %p130 = por %p128, %p129
    %p131 = scmp.ne.s32.totalorder %s117, %s118
    %p132 = scmp.eq.s32.totalorder %s16, 1
    %p133 = por %p131, %p132
    %p135 = scmp.ne.s32.totalorder %s118, %s134
    %p136 = scmp.eq.s32.totalorder %s16, 0
    %p137 = por %p135, %p136
    %p138 = scmp.le.s32.totalorder 1, %s10
    %p139 = scmp.lt.s32.totalorder %s10, 3
    %p140 = pnand %p138, %p139
    %p141 = pneg %p140
    // Predicated region
    $region9: #{audio_captioning_forward.6} parent=5 // pred_check
      _
    $region10: #{audio_captioning_forward.6} parent=5 // pred_check_branch
      %143 = sbr.rel (%p140) target = $region12
    $region11: #{audio_captioning_forward.6} parent=5 // pred_region
      %s144 = ssub.s32 %s10, 1
      // Predicated region
      $region13: #{audio_captioning_forward.6} parent=11 // pred_check
        %p145 = pneg %p57
      $region14: #{audio_captioning_forward.6} parent=11 // pred_check_branch
        %147 = sbr.rel (%p145) target = $region16
      $region15: #{audio_captioning_forward.6} parent=11 // pred_region
        _
      $region16: #{audio_captioning_forward.6} parent=11 // pred_fallthru
        _
      // Predicated region
      $region17: #{audio_captioning_forward.6} parent=11 // pred_check
        %p148 = pneg %p78
      $region18: #{audio_captioning_forward.6} parent=11 // pred_check_branch
        %150 = sbr.rel (%p148) target = $region20
      $region19: #{audio_captioning_forward.6} parent=11 // pred_region
        _
      $region20: #{audio_captioning_forward.6} parent=11 // pred_fallthru
        _
    $region12: #{audio_captioning_forward.6} parent=5 // pred_fallthru
      _
    %p151 = scmp.lt.s32.totalorder %s10, 2
    // Predicated region
    $region21: #{audio_captioning_forward.6} parent=5 // pred_check
      %p152 = pneg %p151
    $region22: #{audio_captioning_forward.6} parent=5 // pred_check_branch
      %154 = sbr.rel (%p152) target = $region24
    $region23: #{audio_captioning_forward.6} parent=5 // pred_region
      // Predicated region
      $region25: #{audio_captioning_forward.6} parent=23 // pred_check
        %p155 = pneg %p30
      $region26: #{audio_captioning_forward.6} parent=23 // pred_check_branch
        %157 = sbr.rel (%p155) target = $region28
      $region27: #{audio_captioning_forward.6} parent=23 // pred_region
        %p158 = scmp.lt.s32.totalorder %s10, 1
        %s159 = scalar_select %p158, %s10, 1
        %s160 = smul.addr %s159, 3
        %s161 = smul.addr %s160, 8
        %s162 = scalar_lea.vmem %s0, %s161
      $region28: #{audio_captioning_forward.6} parent=23 // pred_fallthru
        _
      // Predicated region
      $region29: #{audio_captioning_forward.6} parent=23 // pred_check
        %p163 = pneg %p98
      $region30: #{audio_captioning_forward.6} parent=23 // pred_check_branch
        %165 = sbr.rel (%p163) target = $region32
      $region31: #{audio_captioning_forward.6} parent=23 // pred_region
        %p166 = scmp.lt.s32.totalorder %s10, 1
        %s167 = scalar_select %p166, %s10, 1
        %s168 = scalar_lea.vmem %s3, %s167
      $region32: #{audio_captioning_forward.6} parent=23 // pred_fallthru
        _
    $region24: #{audio_captioning_forward.6} parent=5 // pred_fallthru
      _
    %p169 = scmp.le.s32.totalorder 1, %s10
    %p170 = scmp.lt.s32.totalorder %s10, 3
    %p171 = pnand %p169, %p170
    %p172 = pneg %p171
    // Predicated region
    $region33: #{audio_captioning_forward.6} parent=5 // pred_check
      _
    $region34: #{audio_captioning_forward.6} parent=5 // pred_check_branch
      %174 = sbr.rel (%p171) target = $region36
    $region35: #{audio_captioning_forward.6} parent=5 // pred_region
      %s175 = ssub.s32 %s10, 1
      %p176 = scmp.lt.s32.totalorder %s15, 1
      %s177 = scalar_select %p176, %s15, 1
      %s178 = smul.addr %s177, 3
      %s179 = smul.addr %s178, 8
      %s180 = scalar_lea.vmem %s0, %s179
      %p181 = pneg %p36
      %p182 = pneg %p33
      %p183 = pneg %p57
      %p184 = pneg %p54
      %p185 = pneg %p78
      %p186 = pneg %p75
      %p187 = scmp.lt.s32.totalorder %s15, 1
      %s188 = scalar_select %p187, %s15, 1
      %s189 = scalar_lea.vmem %s3, %s188
      %p190 = pneg %p104
      %p191 = pneg %p101
      %p192 = pneg %p130
      %p193 = pneg %p127
      %p194 = scmp.lt.s32.totalorder %s15, 1
      %s195 = scalar_select %p194, %s15, 1
      %s196 = smul.addr %s195, 2
      %s197 = smul.addr %s196, 8
      %s198 = scalar_lea.vmem %s4, %s197
      %p199 = scmp.lt.s32.totalorder %s15, 1
      %s200 = scalar_select %p199, %s15, 1
      %s201 = smul.addr %s200, 3
      %s202 = smul.addr %s201, 8
      %s203 = scalar_lea.vmem %s0, %s202
      %p204 = scmp.lt.s32.totalorder %s15, 1
      %s205 = scalar_select %p204, %s15, 1
      %s206 = scalar_lea.vmem %s3, %s205
      %p207 = scmp.lt.s32.totalorder %s15, 1
      %s208 = scalar_select %p207, %s15, 1
      %s209 = smul.addr %s208, 2
      %s210 = smul.addr %s209, 8
      %s211 = scalar_lea.vmem %s4, %s210
      %v213 = vld [vmem:[%s203] sm:$0xff]
      %v214 = vld [vmem:[%s203 + $0x8] sm:$0xff]
      %v215 = vld [vmem:[%s203 + $0x10] sm:$0x3]
      %v216 = vld [vmem:[%s1] sm:$0xf]
      %v217 = vpack.c.bf16 %v214, %v213
      %s218 = scalar_lea.vmem %s1, 4
      %v219 = vld [vmem:[%s218] sm:$0xf]
      %v220 = vpack.c.bf16 %v215, %v215
      %vm221 = vsmask.f32 7424
      %v223 = vshrl.u32 %v217, 16
      %v225 = vshll.u32 %v217, 16
      %v227 = vrot.slane %v225, 1
      %v228 = vor.u32 %v223, %v227
      %v230 = vshll.u32 %v220, 16
      %v232 = vrot.slane %v230, 1
      %v233 = vsel %vm221, %v228, %v232
      %vm234 = vcmask 64512
      %v236 = vsel %vm234, %v233, 0
      %vm238 = vcmask 1043456
      %v240 = vsel %vm238, %v219, 0
      %242 = vmatpush.bf16.msra.mxu0 0
      %243 = vmatpush.bf16.msra.mxu0 0
      %244 = vmatpush.bf16.msra.mxu0 0
      %245 = vmatpush.bf16.msra.mxu0 0
      %246 = vmatpush.bf16.msra.mxu0 0
      %247 = vmatpush.bf16.msra.mxu0 0
      %248 = vmatpush.bf16.msra.mxu0 0
      %249 = vmatpush.bf16.msra.mxu0 %v240
      %250 = vmatmul.bf16.gmra.mxu0 %v236
      %v251 = vpop.f32.mrf.mxu0
      %v252 = vadd.f32 0.0, %v251
      %v253 = vpop.f32.mrf.mxu0
      %v254 = vadd.f32 0.0, %v253
      %255 = vdwg.mxu0
      %v256 = vsel %vm234, %v217, 0
      %v259 = vsel %vm238, %v216, 0
      %261 = vmatpush.bf16.msra.mxu0 0
      %262 = vmatpush.bf16.msra.mxu0 0
      %263 = vmatpush.bf16.msra.mxu0 0
      %264 = vmatpush.bf16.msra.mxu0 0
      %265 = vmatpush.bf16.msra.mxu0 0
      %266 = vmatpush.bf16.msra.mxu0 0
      %267 = vmatpush.bf16.msra.mxu0 0
      %268 = vmatpush.bf16.msra.mxu0 %v259
      %269 = vmatmul.bf16.gmra.mxu0 %v256
      %v270 = vpop.f32.mrf.mxu0
      %v271 = vadd.f32 %v252, %v270
      %v272 = vpop.f32.mrf.mxu0
      %v273 = vadd.f32 %v254, %v272
      %274 = vdwg.mxu0
      %s275 = scalar_lea.vmem %s1, 8
      %v276 = vld [vmem:[%s275] sm:$0xf]
      %vm279 = vcmask 1046528
      %v280 = vrot.slane %v217, 1
      %v281 = vrot.slane %v220, 1
      %v282 = vsel %vm279, %v280, %v281
      %v284 = vsel %vm234, %v282, 0
      %v287 = vsel %vm238, %v276, 0
      %289 = vmatpush.bf16.msra.mxu0 0
      %290 = vmatpush.bf16.msra.mxu0 0
      %291 = vmatpush.bf16.msra.mxu0 0
      %292 = vmatpush.bf16.msra.mxu0 0
      %293 = vmatpush.bf16.msra.mxu0 0
      %294 = vmatpush.bf16.msra.mxu0 0
      %295 = vmatpush.bf16.msra.mxu0 0
      %296 = vmatpush.bf16.msra.mxu0 %v287
      %297 = vmatmul.bf16.gmra.mxu0 %v284
      %v298 = vpop.f32.mrf.mxu0
      %v299 = vadd.f32 0.0, %v298
      %v300 = vpop.f32.mrf.mxu0
      %v301 = vadd.f32 0.0, %v300
      %302 = vdwg.mxu0
      %v303 = vadd.f32 %v271, %v299
      %v304 = vadd.f32 %v273, %v301
      %v305 = vld [vmem:[%s2] sm:$0x1]
      %v307 = vperm.slane %v305, 0
      %v309 = vadd.f32 %v303, %v307
      %v310 = vadd.f32 %v304, %v307
      %v311 = vld [vmem:[%s206] sm:$0x1]
      %v313 = vperm.slane %v311, 0
      %v315 = vadd.f32 %v309, %v313
      %v316 = vadd.f32 %v310, %v313
      %vm317 = vcmask 261120
      %318 = vst.msk [vmem:[%s211] sm:$0xff] %vm317, %v315
      %319 = vst.msk [vmem:[%s211 + $0x8] sm:$0xff] %vm317, %v316
      %p320 = scmp.lt.s32.totalorder %s15, 1
      %s321 = scalar_select %p320, %s15, 1
      %s322 = smul.addr %s321, 2
      %s323 = smul.addr %s322, 8
      %s324 = scalar_lea.vmem %s4, %s323
      // Predicated region
      $region37: #{audio_captioning_forward.6} parent=35 // pred_check
        %p325 = pneg %p127
      $region38: #{audio_captioning_forward.6} parent=35 // pred_check_branch
        %327 = sbr.rel (%p325) target = $region40
      $region39: #{audio_captioning_forward.6} parent=35 // pred_region
        _
      $region40: #{audio_captioning_forward.6} parent=35 // pred_fallthru
        _
    $region36: #{audio_captioning_forward.6} parent=5 // pred_fallthru
      _
    %p328 = scmp.le.s32.totalorder 2, %s10
    // Predicated region
    $region41: #{audio_captioning_forward.6} parent=5 // pred_check
      %p329 = pneg %p328
    $region42: #{audio_captioning_forward.6} parent=5 // pred_check_branch
      %331 = sbr.rel (%p329) target = $region44
    $region43: #{audio_captioning_forward.6} parent=5 // pred_region
      %s332 = ssub.s32 %s10, 2
      // Predicated region
      $region45: #{audio_captioning_forward.6} parent=43 // pred_check
        %p333 = pneg %p133
      $region46: #{audio_captioning_forward.6} parent=43 // pred_check_branch
        %335 = sbr.rel (%p333) target = $region48
      $region47: #{audio_captioning_forward.6} parent=43 // pred_region
        %p336 = scmp.lt.s32.totalorder %s16, 1
        %s337 = scalar_select %p336, %s16, 1
        %s338 = smul.addr %s337, 2
        %s339 = smul.addr %s338, 8
        %s340 = scalar_lea.vmem %s4, %s339
      $region48: #{audio_captioning_forward.6} parent=43 // pred_fallthru
        _
    $region44: #{audio_captioning_forward.6} parent=5 // pred_fallthru
      _
  $region6: #{audio_captioning_forward.6} parent=0 // loop_footer
    %s14 = sadd.s32 1, %s10
  $region7: #{audio_captioning_forward.6} parent=0 // loop_footer_branch
    %9 = sbr.rel target = $region3
  $region8: #{audio_captioning_forward.6} parent=0 // loop_exit
    _

// kernel: audio_captioning_forward.11
$region0: #{audio_captioning_forward.11}
  #allocation0 [shape = 'u32[]', space=smem, size = 0x4, offset = 0x4, fixed_abs, tag = 'smem constant byte address 0x4 - core index']
  #allocation1 [shape = 'u32[72,128]{1,0:T(1,128)}', space=vmem, size = 0x9000, scoped, tag = 'internal scratch']
  %s0 = inlined_call_operand.vmem [shape: f32[2,8,32], index: 0, kind: input, shape index: {}]
  %s1 = inlined_call_operand.vmem [shape: bf16[32,512], index: 1, kind: input, shape index: {}]
  %s2 = inlined_call_operand.vmem [shape: f32[1,512], index: 2, kind: input, shape index: {}]
  %s3 = inlined_call_operand.vmem [shape: f32[2,8,512], index: 3, kind: output, shape index: {}]
  %s4 = sld [smem:[#allocation0]]
  $region45: #{audio_captioning_forward.11} parent=0
    _
  %s6 = ssub.s32 1, %s4
  %s7 = scalar_select 0, %s6, %s4
  loop: start=0, step=1, limit=4
  $region2: #{audio_captioning_forward.11} parent=0 // loop_pre_header
    _
  $region3: #{audio_captioning_forward.11} parent=0 // loop_header
    %s9 = sphi 0, %s13
    %p10 = scmp.ge.s32.totalorder %s9, 4
    %s16 = sphi 0, %s28
    %s17 = sphi 0, %s24
    %s18 = sphi 0, %s16
    %s19 = sphi 0, %s17
    %s20 = sphi 0, %s18
    %s21 = sphi 0, %s19
    %s31 = sphi 0, %s33
    %s34 = sphi 0, %s31
    %s35 = sphi 0, %s34
    %s51 = sphi 0, %s35
    %s57 = sphi 0, %s59
    %s60 = sphi 0, %s57
    %s61 = sphi 0, %s60
    %s77 = sphi 0, %s61
    %s83 = sphi 0, %s85
    %s86 = sphi 0, %s83
    %s87 = sphi 0, %s86
    %s103 = sphi 0, %s87
    %s111 = sphi 0, %s113
    %s114 = sphi 0, %s111
    %s115 = sphi 0, %s114
    %s131 = sphi 0, %s115
  $region4: #{audio_captioning_forward.11} parent=0 // loop_header_branch
    %12 = sbr.rel (%p10) target = $region8
  $region5: #{audio_captioning_forward.11} parent=0 // loop_body
    %s14 = ssub.s32 %s9, 1
    %s15 = ssub.s32 %s9, 2
    %s22 = sadd.s32 1, %s17
    %p23 = scmp.ge.s32.totalorder %s22, 1
    %s24 = scalar_select %p23, 0, %s22
    %s25 = sadd.s32 1, %s16
    %s26 = scalar_select %p23, %s25, %s16
    %p27 = scmp.ge.s32.totalorder %s26, 2
    %s28 = scalar_select %p27, 0, %s26
    %s29 = ssub.s32 %s16, %s28
    %p30 = scmp.eq.s32.totalorder %s29, 0
    %s32 = sadd.s32 %s31, 1
    %s33 = scalar_select %p30, %s31, %s32
    %p36 = pneg %p30
    %p37 = scmp.eq.s32.totalorder %s9, 1
    %p38 = por %p36, %p37
    %p39 = scmp.ne.s32.totalorder %s31, %s34
    %p40 = scmp.eq.s32.totalorder %s9, 0
    %p41 = por %p39, %p40
    %p42 = scmp.ne.s32.totalorder %s31, %s34
    %p43 = scmp.eq.s32.totalorder %s14, 1
    %p44 = por %p42, %p43
    %p45 = scmp.ne.s32.totalorder %s34, %s35
    %p46 = scmp.eq.s32.totalorder %s14, 0
    %p47 = por %p45, %p46
    %p48 = scmp.ne.s32.totalorder %s34, %s35
    %p49 = scmp.eq.s32.totalorder %s15, 1
    %p50 = por %p48, %p49
    %p52 = scmp.ne.s32.totalorder %s35, %s51
    %p53 = scmp.eq.s32.totalorder %s15, 0
    %p54 = por %p52, %p53
    %s55 = ssub.s32 %s17, %s24
    %p56 = scmp.eq.s32.totalorder %s55, 0
    %s58 = sadd.s32 %s57, 1
    %s59 = scalar_select %p56, %s57, %s58
    %p62 = pneg %p56
    %p63 = scmp.eq.s32.totalorder %s9, 1
    %p64 = por %p62, %p63
    %p65 = scmp.ne.s32.totalorder %s57, %s60
    %p66 = scmp.eq.s32.totalorder %s9, 0
    %p67 = por %p65, %p66
    %p68 = scmp.ne.s32.totalorder %s57, %s60
    %p69 = scmp.eq.s32.totalorder %s14, 1
    %p70 = por %p68, %p69
    %p71 = scmp.ne.s32.totalorder %s60, %s61
    %p72 = scmp.eq.s32.totalorder %s14, 0
    %p73 = por %p71, %p72
    %p74 = scmp.ne.s32.totalorder %s60, %s61
    %p75 = scmp.eq.s32.totalorder %s15, 1
    %p76 = por %p74, %p75
    %p78 = scmp.ne.s32.totalorder %s61, %s77
    %p79 = scmp.eq.s32.totalorder %s15, 0
    %p80 = por %p78, %p79
    %s81 = ssub.s32 %s17, %s24
    %p82 = scmp.eq.s32.totalorder %s81, 0
    %s84 = sadd.s32 %s83, 1
    %s85 = scalar_select %p82, %s83, %s84
    %p88 = pneg %p82
    %p89 = scmp.eq.s32.totalorder %s9, 1
    %p90 = por %p88, %p89
    %p91 = scmp.ne.s32.totalorder %s83, %s86
    %p92 = scmp.eq.s32.totalorder %s9, 0
    %p93 = por %p91, %p92
    %p94 = scmp.ne.s32.totalorder %s83, %s86
    %p95 = scmp.eq.s32.totalorder %s14, 1
    %p96 = por %p94, %p95
    %p97 = scmp.ne.s32.totalorder %s86, %s87
    %p98 = scmp.eq.s32.totalorder %s14, 0
    %p99 = por %p97, %p98
    %p100 = scmp.ne.s32.totalorder %s86, %s87
    %p101 = scmp.eq.s32.totalorder %s15, 1
    %p102 = por %p100, %p101
    %p104 = scmp.ne.s32.totalorder %s87, %s103
    %p105 = scmp.eq.s32.totalorder %s15, 0
    %p106 = por %p104, %p105
    %s107 = ssub.s32 %s16, %s28
    %s108 = ssub.s32 %s17, %s24
    %s109 = sor.u32 %s107, %s108
    %p110 = scmp.eq.s32.totalorder %s109, 0
    %s112 = sadd.s32 %s111, 1
    %s113 = scalar_select %p110, %s111, %s112
    %p116 = pneg %p110
    %p117 = scmp.eq.s32.totalorder %s9, 1
    %p118 = por %p116, %p117
    %p119 = scmp.ne.s32.totalorder %s111, %s114
    %p120 = scmp.eq.s32.totalorder %s9, 0
    %p121 = por %p119, %p120
    %p122 = scmp.ne.s32.totalorder %s111, %s114
    %p123 = scmp.eq.s32.totalorder %s14, 1
    %p124 = por %p122, %p123
    %p125 = scmp.ne.s32.totalorder %s114, %s115
    %p126 = scmp.eq.s32.totalorder %s14, 0
    %p127 = por %p125, %p126
    %p128 = scmp.ne.s32.totalorder %s114, %s115
    %p129 = scmp.eq.s32.totalorder %s15, 1
    %p130 = por %p128, %p129
    %p132 = scmp.ne.s32.totalorder %s115, %s131
    %p133 = scmp.eq.s32.totalorder %s15, 0
    %p134 = por %p132, %p133
    %p135 = scmp.le.s32.totalorder 1, %s9
    %p136 = scmp.lt.s32.totalorder %s9, 3
    %p137 = pnand %p135, %p136
    %p138 = pneg %p137
    // Predicated region
    $region9: #{audio_captioning_forward.11} parent=5 // pred_check
      _
    $region10: #{audio_captioning_forward.11} parent=5 // pred_check_branch
      %140 = sbr.rel (%p137) target = $region12
    $region11: #{audio_captioning_forward.11} parent=5 // pred_region
      %s141 = ssub.s32 %s9, 1
      // Predicated region
      $region13: #{audio_captioning_forward.11} parent=11 // pred_check
        %p142 = pneg %p73
      $region14: #{audio_captioning_forward.11} parent=11 // pred_check_branch
        %144 = sbr.rel (%p142) target = $region16
      $region15: #{audio_captioning_forward.11} parent=11 // pred_region
        %s145 = smul.u32 4, %s19
        %p146 = scmp.lt.s32.totalorder %s145, 3
        %s147 = scalar_select %p146, %s145, 3
        %s148 = smul.addr %s147, 4
        %s149 = scalar_lea.vmem %s1, %s148
        %s150 = smul.u32 4, %s19
      $region16: #{audio_captioning_forward.11} parent=11 // pred_fallthru
        _
      // Predicated region
      $region17: #{audio_captioning_forward.11} parent=11 // pred_check
        %p151 = pneg %p99
      $region18: #{audio_captioning_forward.11} parent=11 // pred_check_branch
        %153 = sbr.rel (%p151) target = $region20
      $region19: #{audio_captioning_forward.11} parent=11 // pred_region
        %s154 = smul.u32 4, %s19
        %p155 = scmp.lt.s32.totalorder %s154, 3
        %s156 = scalar_select %p155, %s154, 3
        %s157 = scalar_lea.vmem %s2, %s156
        %s158 = smul.u32 4, %s19
      $region20: #{audio_captioning_forward.11} parent=11 // pred_fallthru
        _
    $region12: #{audio_captioning_forward.11} parent=5 // pred_fallthru
      _
    %p159 = scmp.lt.s32.totalorder %s9, 2
    // Predicated region
    $region21: #{audio_captioning_forward.11} parent=5 // pred_check
      %p160 = pneg %p159
    $region22: #{audio_captioning_forward.11} parent=5 // pred_check_branch
      %162 = sbr.rel (%p160) target = $region24
    $region23: #{audio_captioning_forward.11} parent=5 // pred_region
      // Predicated region
      $region25: #{audio_captioning_forward.11} parent=23 // pred_check
        %p163 = pneg %p41
      $region26: #{audio_captioning_forward.11} parent=23 // pred_check_branch
        %165 = sbr.rel (%p163) target = $region28
      $region27: #{audio_captioning_forward.11} parent=23 // pred_region
        %p166 = scmp.lt.s32.totalorder %s16, 1
        %s167 = scalar_select %p166, %s16, 1
        %s168 = smul.addr %s167, 8
        %s169 = scalar_lea.vmem %s0, %s168
      $region28: #{audio_captioning_forward.11} parent=23 // pred_fallthru
        _
    $region24: #{audio_captioning_forward.11} parent=5 // pred_fallthru
      _
    %p170 = scmp.le.s32.totalorder 1, %s9
    %p171 = scmp.lt.s32.totalorder %s9, 3
    %p172 = pnand %p170, %p171
    %p173 = pneg %p172
    // Predicated region
    $region29: #{audio_captioning_forward.11} parent=5 // pred_check
      _
    $region30: #{audio_captioning_forward.11} parent=5 // pred_check_branch
      %175 = sbr.rel (%p172) target = $region32
    $region31: #{audio_captioning_forward.11} parent=5 // pred_region
      %s176 = ssub.s32 %s9, 1
      %p177 = scmp.lt.s32.totalorder %s18, 1
      %s178 = scalar_select %p177, %s18, 1
      %s179 = smul.addr %s178, 8
      %s180 = scalar_lea.vmem %s0, %s179
      %p181 = pneg %p47
      %p182 = pneg %p44
      %s183 = smul.u32 4, %s19
      %p184 = scmp.lt.s32.totalorder %s183, 3
      %s185 = scalar_select %p184, %s183, 3
      %s186 = smul.addr %s185, 4
      %s187 = scalar_lea.vmem %s1, %s186
      %p188 = pneg %p73
      %p189 = pneg %p70
      %s190 = smul.u32 4, %s19
      %p191 = scmp.lt.s32.totalorder %s190, 3
      %s192 = scalar_select %p191, %s190, 3
      %s193 = scalar_lea.vmem %s2, %s192
      %p194 = pneg %p99
      %p195 = pneg %p96
      %p196 = pneg %p127
      %p197 = pneg %p124
      %s198 = smul.u32 4, %s19
      %p199 = scmp.lt.s32.totalorder %s18, 1
      %s200 = scalar_select %p199, %s18, 1
      %p201 = scmp.lt.s32.totalorder %s198, 3
      %s202 = scalar_select %p201, %s198, 3
      %s203 = smul.addr %s200, 4
      %s204 = sadd.s32 %s202, %s203
      %s205 = smul.addr %s204, 8
      %s206 = scalar_lea.vmem %s3, %s205
      %p207 = scmp.lt.s32.totalorder %s18, 1
      %s208 = scalar_select %p207, %s18, 1
      %s209 = smul.addr %s208, 8
      %s210 = scalar_lea.vmem %s0, %s209
      %s211 = smul.u32 4, %s19
      %p212 = scmp.lt.s32.totalorder %s211, 3
      %s213 = scalar_select %p212, %s211, 3
      %s214 = smul.addr %s213, 4
      %s215 = scalar_lea.vmem %s1, %s214
      %s216 = smul.u32 4, %s19
      %s217 = smul.u32 4, %s19
      %p218 = scmp.lt.s32.totalorder %s217, 3
      %s219 = scalar_select %p218, %s217, 3
      %s220 = scalar_lea.vmem %s2, %s219
      %s221 = smul.u32 4, %s19
      %s222 = smul.u32 4, %s19
      %p223 = scmp.lt.s32.totalorder %s18, 1
      %s224 = scalar_select %p223, %s18, 1
      %p225 = scmp.lt.s32.totalorder %s222, 3
      %s226 = scalar_select %p225, %s222, 3
      %s227 = smul.addr %s224, 4
      %s228 = sadd.s32 %s226, %s227
      %s229 = smul.addr %s228, 8
      %s230 = scalar_lea.vmem %s3, %s229
      %s231 = smul.u32 4, %s19
      %v233 = vld [vmem:[%s210] sm:$0xff]
      %v234 = vld [vmem:[%s215] sm:$0xff]
      %v235 = vld [vmem:[%s215 + $0x8] sm:$0xff]
      %v236 = vld [vmem:[%s215 + $0x10] sm:$0xff]
      %v237 = vld [vmem:[%s215 + $0x18] sm:$0xff]
      %v238 = vld [vmem:[%s215 + $0x20] sm:$0xff]
      %v239 = vld [vmem:[%s215 + $0x28] sm:$0xff]
      %v240 = vld [vmem:[%s215 + $0x30] sm:$0xff]
      %v241 = vld [vmem:[%s215 + $0x38] sm:$0xff]
      %v242 = vpack.c.bf16 %v233, %v233
      %v243 = vld [vmem:[%s220] sm:$0xf]
      %v245 = vperm.slane %v243, 0
      %v246 = vperm.slane %v243, 1
      %v247 = vperm.slane %v243, 2
      %v248 = vperm.slane %v243, 3
      %v261 = vunpack.c.l.b16 %v234
      %v262 = vunpack.c.h.b16 %v234
      %v263 = vunpack.c.l.b16 %v235
      %v264 = vunpack.c.h.b16 %v235
      %v265 = vunpack.c.l.b16 %v236
      %v266 = vunpack.c.h.b16 %v236
      %v267 = vunpack.c.l.b16 %v237
      %v268 = vunpack.c.h.b16 %v237
      %v269 = vunpack.c.l.b16 %v238
      %v270 = vunpack.c.h.b16 %v238
      %v271 = vunpack.c.l.b16 %v239
      %v272 = vunpack.c.h.b16 %v239
      %v273 = vunpack.c.l.b16 %v240
      %v274 = vunpack.c.h.b16 %v240
      %v275 = vunpack.c.l.b16 %v241
      %v276 = vunpack.c.h.b16 %v241
      %v277 = vpack.c.b16 %v265, %v261
      %v278 = vpack.c.b16 %v266, %v262
      %v279 = vpack.c.b16 %v267, %v263
      %v280 = vpack.c.b16 %v268, %v264
      %v281 = vpack.c.b16 %v273, %v269
      %v282 = vpack.c.b16 %v274, %v270
      %v283 = vpack.c.b16 %v275, %v271
      %v284 = vpack.c.b16 %v276, %v272
      %vm293 = vcmask 261120
      %v295 = vsel %vm293, %v242, 0
      %297 = vmatpush.bf16.msra.mxu0 0
      %298 = vmatpush.bf16.msra.mxu0 0
      %299 = vmatpush.bf16.msra.mxu0 0
      %300 = vmatpush.bf16.msra.mxu0 0
      %301 = vmatpush.bf16.msra.mxu0 0
      %302 = vmatpush.bf16.msra.mxu0 0
      %303 = vmatpush.bf16.msra.mxu0 %v281
      %304 = vmatpush.bf16.msra.mxu0 %v277
      %305 = vmatmul.bf16.gmra.mxu0 %v295
      %v306 = vpop.f32.mrf.mxu0
      %v307 = vadd.f32 %v245, %v306
      %v308 = vpop.f32.mrf.mxu0
      %309 = vdwg.mxu0
      %310 = vmatpush.bf16.msra.mxu0 0
      %311 = vmatpush.bf16.msra.mxu0 0
      %312 = vmatpush.bf16.msra.mxu0 0
      %313 = vmatpush.bf16.msra.mxu0 0
      %314 = vmatpush.bf16.msra.mxu0 0
      %315 = vmatpush.bf16.msra.mxu0 0
      %316 = vmatpush.bf16.msra.mxu0 %v282
      %317 = vmatpush.bf16.msra.mxu0 %v278
      %318 = vmatmul.bf16.gmra.mxu0 %v295
      %v319 = vpop.f32.mrf.mxu0
      %v320 = vadd.f32 %v246, %v319
      %v321 = vpop.f32.mrf.mxu0
      %322 = vdwg.mxu0
      %323 = vmatpush.bf16.msra.mxu0 0
      %324 = vmatpush.bf16.msra.mxu0 0
      %325 = vmatpush.bf16.msra.mxu0 0
      %326 = vmatpush.bf16.msra.mxu0 0
      %327 = vmatpush.bf16.msra.mxu0 0
      %328 = vmatpush.bf16.msra.mxu0 0
      %329 = vmatpush.bf16.msra.mxu0 %v283
      %330 = vmatpush.bf16.msra.mxu0 %v279
      %331 = vmatmul.bf16.gmra.mxu0 %v295
      %v332 = vpop.f32.mrf.mxu0
      %v333 = vadd.f32 %v247, %v332
      %v334 = vpop.f32.mrf.mxu0
      %335 = vdwg.mxu0
      %336 = vmatpush.bf16.msra.mxu0 0
      %337 = vmatpush.bf16.msra.mxu0 0
      %338 = vmatpush.bf16.msra.mxu0 0
      %339 = vmatpush.bf16.msra.mxu0 0
      %340 = vmatpush.bf16.msra.mxu0 0
      %341 = vmatpush.bf16.msra.mxu0 0
      %342 = vmatpush.bf16.msra.mxu0 %v284
      %343 = vmatpush.bf16.msra.mxu0 %v280
      %344 = vmatmul.bf16.gmra.mxu0 %v295
      %v345 = vpop.f32.mrf.mxu0
      %v346 = vadd.f32 %v248, %v345
      %v347 = vpop.f32.mrf.mxu0
      %348 = vdwg.mxu0
      %349 = vst [vmem:[%s230] sm:$0xff] %v307
      %350 = vst [vmem:[%s230 + $0x8] sm:$0xff] %v320
      %351 = vst [vmem:[%s230 + $0x10] sm:$0xff] %v333
      %352 = vst [vmem:[%s230 + $0x18] sm:$0xff] %v346
      %s353 = smul.u32 4, %s19
      %p354 = scmp.lt.s32.totalorder %s18, 1
      %s355 = scalar_select %p354, %s18, 1
      %p356 = scmp.lt.s32.totalorder %s353, 3
      %s357 = scalar_select %p356, %s353, 3
      %s358 = smul.addr %s355, 4
      %s359 = sadd.s32 %s357, %s358
      %s360 = smul.addr %s359, 8
      %s361 = scalar_lea.vmem %s3, %s360
      // Predicated region
      $region33: #{audio_captioning_forward.11} parent=31 // pred_check
        %p362 = pneg %p124
      $region34: #{audio_captioning_forward.11} parent=31 // pred_check_branch
        %364 = sbr.rel (%p362) target = $region36
      $region35: #{audio_captioning_forward.11} parent=31 // pred_region
        %s365 = smul.u32 4, %s19
      $region36: #{audio_captioning_forward.11} parent=31 // pred_fallthru
        _
    $region32: #{audio_captioning_forward.11} parent=5 // pred_fallthru
      _
    %p366 = scmp.le.s32.totalorder 2, %s9
    // Predicated region
    $region37: #{audio_captioning_forward.11} parent=5 // pred_check
      %p367 = pneg %p366
    $region38: #{audio_captioning_forward.11} parent=5 // pred_check_branch
      %369 = sbr.rel (%p367) target = $region40
    $region39: #{audio_captioning_forward.11} parent=5 // pred_region
      %s370 = ssub.s32 %s9, 2
      // Predicated region
      $region41: #{audio_captioning_forward.11} parent=39 // pred_check
        %p371 = pneg %p130
      $region42: #{audio_captioning_forward.11} parent=39 // pred_check_branch
        %373 = sbr.rel (%p371) target = $region44
      $region43: #{audio_captioning_forward.11} parent=39 // pred_region
        %s374 = smul.u32 4, %s21
        %p375 = scmp.lt.s32.totalorder %s20, 1
        %s376 = scalar_select %p375, %s20, 1
        %p377 = scmp.lt.s32.totalorder %s374, 3
        %s378 = scalar_select %p377, %s374, 3
        %s379 = smul.addr %s376, 4
        %s380 = sadd.s32 %s378, %s379
        %s381 = smul.addr %s380, 8
        %s382 = scalar_lea.vmem %s3, %s381
      $region44: #{audio_captioning_forward.11} parent=39 // pred_fallthru
        _
    $region40: #{audio_captioning_forward.11} parent=5 // pred_fallthru
      _
  $region6: #{audio_captioning_forward.11} parent=0 // loop_footer
    %s13 = sadd.s32 1, %s9
  $region7: #{audio_captioning_forward.11} parent=0 // loop_footer_branch
    %8 = sbr.rel target = $region3
  $region8: #{audio_captioning_forward.11} parent=0 // loop_exit
    _

// kernel: audio_captioning_forward.7
$region0: #{audio_captioning_forward.7}
  #allocation0 [shape = 'u32[]', space=smem, size = 0x4, offset = 0x4, fixed_abs, tag = 'smem constant byte address 0x4 - core index']
  #allocation1 [shape = 'u32[72,128]{1,0:T(1,128)}', space=vmem, size = 0x9000, scoped, tag = 'internal scratch']
  %s0 = inlined_call_operand.vmem [shape: f32[2,16,32], index: 0, kind: input, shape index: {}]
  %s1 = inlined_call_operand.vmem [shape: bf16[96,32], index: 1, kind: input, shape index: {}]
  %s2 = inlined_call_operand.vmem [shape: f32[96,1], index: 2, kind: input, shape index: {}]
  %s3 = inlined_call_operand.vmem [shape: bf16[32,32], index: 3, kind: input, shape index: {}]
  %s4 = inlined_call_operand.vmem [shape: f32[1,32], index: 4, kind: input, shape index: {}]
  %s5 = inlined_call_operand.vmem [shape: bf16[32,64], index: 5, kind: input, shape index: {}]
  %s6 = inlined_call_operand.vmem [shape: f32[1,64], index: 6, kind: input, shape index: {}]
  %s7 = inlined_call_operand.vmem [shape: bf16[64,32], index: 7, kind: input, shape index: {}]
  %s8 = inlined_call_operand.vmem [shape: f32[1,32], index: 8, kind: input, shape index: {}]
  %s9 = inlined_call_operand.vmem [shape: f32[4,32], index: 9, kind: input, shape index: {}]
  %s10 = inlined_call_operand.vmem [shape: f32[2,16,32], index: 10, kind: output, shape index: {}]
  %s11 = sld [smem:[#allocation0]]
  $region73: #{audio_captioning_forward.7} parent=0
    _
  %s13 = ssub.s32 1, %s11
  %s14 = scalar_select 0, %s13, %s11
  loop: start=0, step=1, limit=4
  $region2: #{audio_captioning_forward.7} parent=0 // loop_pre_header
    _
  $region3: #{audio_captioning_forward.7} parent=0 // loop_header
    %s16 = sphi 0, %s20
    %p17 = scmp.ge.s32.totalorder %s16, 4
    %s26 = sphi 0, %s28
    %s29 = sphi 0, %s26
    %s30 = sphi 0, %s29
    %s46 = sphi 0, %s30
    %s50 = sphi 0, %s50
    %s52 = sphi 0, %s50
    %s53 = sphi 0, %s52
    %s67 = sphi 0, %s53
    %s71 = sphi 0, %s71
    %s73 = sphi 0, %s71
    %s74 = sphi 0, %s73
    %s88 = sphi 0, %s74
    %s92 = sphi 0, %s92
    %s94 = sphi 0, %s92
    %s95 = sphi 0, %s94
    %s109 = sphi 0, %s95
    %s113 = sphi 0, %s113
    %s115 = sphi 0, %s113
    %s116 = sphi 0, %s115
    %s130 = sphi 0, %s116
    %s134 = sphi 0, %s134
    %s136 = sphi 0, %s134
    %s137 = sphi 0, %s136
    %s151 = sphi 0, %s137
    %s155 = sphi 0, %s155
    %s157 = sphi 0, %s155
    %s158 = sphi 0, %s157
    %s172 = sphi 0, %s158
    %s176 = sphi 0, %s176
    %s178 = sphi 0, %s176
    %s179 = sphi 0, %s178
    %s193 = sphi 0, %s179
    %s197 = sphi 0, %s197
    %s199 = sphi 0, %s197
    %s200 = sphi 0, %s199
    %s214 = sphi 0, %s200
    %s218 = sphi 0, %s218
    %s220 = sphi 0, %s218
    %s221 = sphi 0, %s220
    %s235 = sphi 0, %s221
    %s241 = sphi 0, %s243
    %s244 = sphi 0, %s241
    %s245 = sphi 0, %s244
    %s261 = sphi 0, %s245
  $region4: #{audio_captioning_forward.7} parent=0 // loop_header_branch
    %19 = sbr.rel (%p17) target = $region8
  $region5: #{audio_captioning_forward.7} parent=0 // loop_body
    %s21 = ssub.s32 %s16, 1
    %s22 = ssub.s32 %s16, 2
    %s23 = sadd.s32 %s16, 1
    %s24 = ssub.s32 %s16, %s23
    %p25 = scmp.eq.s32.totalorder %s24, 0
    %s27 = sadd.s32 %s26, 1
    %s28 = scalar_select %p25, %s26, %s27
    %p31 = pneg %p25
    %p32 = scmp.eq.s32.totalorder %s16, 1
    %p33 = por %p31, %p32
    %p34 = scmp.ne.s32.totalorder %s26, %s29
    %p35 = scmp.eq.s32.totalorder %s16, 0
    %p36 = por %p34, %p35
    %p37 = scmp.ne.s32.totalorder %s26, %s29
    %p38 = scmp.eq.s32.totalorder %s21, 1
    %p39 = por %p37, %p38
    %p40 = scmp.ne.s32.totalorder %s29, %s30
    %p41 = scmp.eq.s32.totalorder %s21, 0
    %p42 = por %p40, %p41
    %p43 = scmp.ne.s32.totalorder %s29, %s30
    %p44 = scmp.eq.s32.totalorder %s22, 1
    %p45 = por %p43, %p44
    %p47 = scmp.ne.s32.totalorder %s30, %s46
    %p48 = scmp.eq.s32.totalorder %s22, 0
    %p49 = por %p47, %p48
    %s51 = sadd.s32 %s50, 1
    %p54 = scmp.eq.s32.totalorder %s16, 1
    %p55 = scmp.ne.s32.totalorder %s50, %s52
    %p56 = scmp.eq.s32.totalorder %s16, 0
    %p57 = por %p55, %p56
    %p58 = scmp.ne.s32.totalorder %s50, %s52
    %p59 = scmp.eq.s32.totalorder %s21, 1
    %p60 = por %p58, %p59
    %p61 = scmp.ne.s32.totalorder %s52, %s53
    %p62 = scmp.eq.s32.totalorder %s21, 0
    %p63 = por %p61, %p62
    %p64 = scmp.ne.s32.totalorder %s52, %s53
    %p65 = scmp.eq.s32.totalorder %s22, 1
    %p66 = por %p64, %p65
    %p68 = scmp.ne.s32.totalorder %s53, %s67
    %p69 = scmp.eq.s32.totalorder %s22, 0
    %p70 = por %p68, %p69
    %s72 = sadd.s32 %s71, 1
    %p75 = scmp.eq.s32.totalorder %s16, 1
    %p76 = scmp.ne.s32.totalorder %s71, %s73
    %p77 = scmp.eq.s32.totalorder %s16, 0
    %p78 = por %p76, %p77
    %p79 = scmp.ne.s32.totalorder %s71, %s73
    %p80 = scmp.eq.s32.totalorder %s21, 1
    %p81 = por %p79, %p80
    %p82 = scmp.ne.s32.totalorder %s73, %s74
    %p83 = scmp.eq.s32.totalorder %s21, 0
    %p84 = por %p82, %p83
    %p85 = scmp.ne.s32.totalorder %s73, %s74
    %p86 = scmp.eq.s32.totalorder %s22, 1
    %p87 = por %p85, %p86
    %p89 = scmp.ne.s32.totalorder %s74, %s88
    %p90 = scmp.eq.s32.totalorder %s22, 0
    %p91 = por %p89, %p90
    %s93 = sadd.s32 %s92, 1
    %p96 = scmp.eq.s32.totalorder %s16, 1
    %p97 = scmp.ne.s32.totalorder %s92, %s94
    %p98 = scmp.eq.s32.totalorder %s16, 0
    %p99 = por %p97, %p98
    %p100 = scmp.ne.s32.totalorder %s92, %s94
    %p101 = scmp.eq.s32.totalorder %s21, 1
    %p102 = por %p100, %p101
    %p103 = scmp.ne.s32.totalorder %s94, %s95
    %p104 = scmp.eq.s32.totalorder %s21, 0
    %p105 = por %p103, %p104
    %p106 = scmp.ne.s32.totalorder %s94, %s95
    %p107 = scmp.eq.s32.totalorder %s22, 1
    %p108 = por %p106, %p107
    %p110 = scmp.ne.s32.totalorder %s95, %s109
    %p111 = scmp.eq.s32.totalorder %s22, 0
    %p112 = por %p110, %p111
    %s114 = sadd.s32 %s113, 1
    %p117 = scmp.eq.s32.totalorder %s16, 1
    %p118 = scmp.ne.s32.totalorder %s113, %s115
    %p119 = scmp.eq.s32.totalorder %s16, 0
    %p120 = por %p118, %p119
    %p121 = scmp.ne.s32.totalorder %s113, %s115
    %p122 = scmp.eq.s32.totalorder %s21, 1
    %p123 = por %p121, %p122
    %p124 = scmp.ne.s32.totalorder %s115, %s116
    %p125 = scmp.eq.s32.totalorder %s21, 0
    %p126 = por %p124, %p125
    %p127 = scmp.ne.s32.totalorder %s115, %s116
    %p128 = scmp.eq.s32.totalorder %s22, 1
    %p129 = por %p127, %p128
    %p131 = scmp.ne.s32.totalorder %s116, %s130
    %p132 = scmp.eq.s32.totalorder %s22, 0
    %p133 = por %p131, %p132
    %s135 = sadd.s32 %s134, 1
    %p138 = scmp.eq.s32.totalorder %s16, 1
    %p139 = scmp.ne.s32.totalorder %s134, %s136
    %p140 = scmp.eq.s32.totalorder %s16, 0
    %p141 = por %p139, %p140
    %p142 = scmp.ne.s32.totalorder %s134, %s136
    %p143 = scmp.eq.s32.totalorder %s21, 1
    %p144 = por %p142, %p143
    %p145 = scmp.ne.s32.totalorder %s136, %s137
    %p146 = scmp.eq.s32.totalorder %s21, 0
    %p147 = por %p145, %p146
    %p148 = scmp.ne.s32.totalorder %s136, %s137
    %p149 = scmp.eq.s32.totalorder %s22, 1
    %p150 = por %p148, %p149
    %p152 = scmp.ne.s32.totalorder %s137, %s151
    %p153 = scmp.eq.s32.totalorder %s22, 0
    %p154 = por %p152, %p153
    %s156 = sadd.s32 %s155, 1
    %p159 = scmp.eq.s32.totalorder %s16, 1
    %p160 = scmp.ne.s32.totalorder %s155, %s157
    %p161 = scmp.eq.s32.totalorder %s16, 0
    %p162 = por %p160, %p161
    %p163 = scmp.ne.s32.totalorder %s155, %s157
    %p164 = scmp.eq.s32.totalorder %s21, 1
    %p165 = por %p163, %p164
    %p166 = scmp.ne.s32.totalorder %s157, %s158
    %p167 = scmp.eq.s32.totalorder %s21, 0
    %p168 = por %p166, %p167
    %p169 = scmp.ne.s32.totalorder %s157, %s158
    %p170 = scmp.eq.s32.totalorder %s22, 1
    %p171 = por %p169, %p170
    %p173 = scmp.ne.s32.totalorder %s158, %s172
    %p174 = scmp.eq.s32.totalorder %s22, 0
    %p175 = por %p173, %p174
    %s177 = sadd.s32 %s176, 1
    %p180 = scmp.eq.s32.totalorder %s16, 1
    %p181 = scmp.ne.s32.totalorder %s176, %s178
    %p182 = scmp.eq.s32.totalorder %s16, 0
    %p183 = por %p181, %p182
    %p184 = scmp.ne.s32.totalorder %s176, %s178
    %p185 = scmp.eq.s32.totalorder %s21, 1
    %p186 = por %p184, %p185
    %p187 = scmp.ne.s32.totalorder %s178, %s179
    %p188 = scmp.eq.s32.totalorder %s21, 0
    %p189 = por %p187, %p188
    %p190 = scmp.ne.s32.totalorder %s178, %s179
    %p191 = scmp.eq.s32.totalorder %s22, 1
    %p192 = por %p190, %p191
    %p194 = scmp.ne.s32.totalorder %s179, %s193
    %p195 = scmp.eq.s32.totalorder %s22, 0
    %p196 = por %p194, %p195
    %s198 = sadd.s32 %s197, 1
    %p201 = scmp.eq.s32.totalorder %s16, 1
    %p202 = scmp.ne.s32.totalorder %s197, %s199
    %p203 = scmp.eq.s32.totalorder %s16, 0
    %p204 = por %p202, %p203
    %p205 = scmp.ne.s32.totalorder %s197, %s199
    %p206 = scmp.eq.s32.totalorder %s21, 1
    %p207 = por %p205, %p206
    %p208 = scmp.ne.s32.totalorder %s199, %s200
    %p209 = scmp.eq.s32.totalorder %s21, 0
    %p210 = por %p208, %p209
    %p211 = scmp.ne.s32.totalorder %s199, %s200
    %p212 = scmp.eq.s32.totalorder %s22, 1
    %p213 = por %p211, %p212
    %p215 = scmp.ne.s32.totalorder %s200, %s214
    %p216 = scmp.eq.s32.totalorder %s22, 0
    %p217 = por %p215, %p216
    %s219 = sadd.s32 %s218, 1
    %p222 = scmp.eq.s32.totalorder %s16, 1
    %p223 = scmp.ne.s32.totalorder %s218, %s220
    %p224 = scmp.eq.s32.totalorder %s16, 0
    %p225 = por %p223, %p224
    %p226 = scmp.ne.s32.totalorder %s218, %s220
    %p227 = scmp.eq.s32.totalorder %s21, 1
    %p228 = por %p226, %p227
    %p229 = scmp.ne.s32.totalorder %s220, %s221
    %p230 = scmp.eq.s32.totalorder %s21, 0
    %p231 = por %p229, %p230
    %p232 = scmp.ne.s32.totalorder %s220, %s221
    %p233 = scmp.eq.s32.totalorder %s22, 1
    %p234 = por %p232, %p233
    %p236 = scmp.ne.s32.totalorder %s221, %s235
    %p237 = scmp.eq.s32.totalorder %s22, 0
    %p238 = por %p236, %p237
    %s239 = ssub.s32 %s16, %s23
    %p240 = scmp.eq.s32.totalorder %s239, 0
    %s242 = sadd.s32 %s241, 1
    %s243 = scalar_select %p240, %s241, %s242
    %p246 = pneg %p240
    %p247 = scmp.eq.s32.totalorder %s16, 1
    %p248 = por %p246, %p247
    %p249 = scmp.ne.s32.totalorder %s241, %s244
    %p250 = scmp.eq.s32.totalorder %s16, 0
    %p251 = por %p249, %p250
    %p252 = scmp.ne.s32.totalorder %s241, %s244
    %p253 = scmp.eq.s32.totalorder %s21, 1
    %p254 = por %p252, %p253
    %p255 = scmp.ne.s32.totalorder %s244, %s245
    %p256 = scmp.eq.s32.totalorder %s21, 0
    %p257 = por %p255, %p256
    %p258 = scmp.ne.s32.totalorder %s244, %s245
    %p259 = scmp.eq.s32.totalorder %s22, 1
    %p260 = por %p258, %p259
    %p262 = scmp.ne.s32.totalorder %s245, %s261
    %p263 = scmp.eq.s32.totalorder %s22, 0
    %p264 = por %p262, %p263
    %p265 = scmp.le.s32.totalorder 1, %s16
    %p266 = scmp.lt.s32.totalorder %s16, 3
    %p267 = pnand %p265, %p266
    %p268 = pneg %p267
    // Predicated region
    $region9: #{audio_captioning_forward.7} parent=5 // pred_check
      _
    $region10: #{audio_captioning_forward.7} parent=5 // pred_check_branch
      %270 = sbr.rel (%p267) target = $region12
    $region11: #{audio_captioning_forward.7} parent=5 // pred_region
      %s271 = ssub.s32 %s16, 1
      // Predicated region
      $region13: #{audio_captioning_forward.7} parent=11 // pred_check
        %p272 = pneg %p63
      $region14: #{audio_captioning_forward.7} parent=11 // pred_check_branch
        %274 = sbr.rel (%p272) target = $region16
      $region15: #{audio_captioning_forward.7} parent=11 // pred_region
        _
      $region16: #{audio_captioning_forward.7} parent=11 // pred_fallthru
        _
      // Predicated region
      $region17: #{audio_captioning_forward.7} parent=11 // pred_check
        %p275 = pneg %p84
      $region18: #{audio_captioning_forward.7} parent=11 // pred_check_branch
        %277 = sbr.rel (%p275) target = $region20
      $region19: #{audio_captioning_forward.7} parent=11 // pred_region
        _
      $region20: #{audio_captioning_forward.7} parent=11 // pred_fallthru
        _
      // Predicated region
      $region21: #{audio_captioning_forward.7} parent=11 // pred_check
        %p278 = pneg %p105
      $region22: #{audio_captioning_forward.7} parent=11 // pred_check_branch
        %280 = sbr.rel (%p278) target = $region24
      $region23: #{audio_captioning_forward.7} parent=11 // pred_region
        _
      $region24: #{audio_captioning_forward.7} parent=11 // pred_fallthru
        _
      // Predicated region
      $region25: #{audio_captioning_forward.7} parent=11 // pred_check
        %p281 = pneg %p126
      $region26: #{audio_captioning_forward.7} parent=11 // pred_check_branch
        %283 = sbr.rel (%p281) target = $region28
      $region27: #{audio_captioning_forward.7} parent=11 // pred_region
        _
      $region28: #{audio_captioning_forward.7} parent=11 // pred_fallthru
        _
      // Predicated region
      $region29: #{audio_captioning_forward.7} parent=11 // pred_check
        %p284 = pneg %p147
      $region30: #{audio_captioning_forward.7} parent=11 // pred_check_branch
        %286 = sbr.rel (%p284) target = $region32
      $region31: #{audio_captioning_forward.7} parent=11 // pred_region
        _
      $region32: #{audio_captioning_forward.7} parent=11 // pred_fallthru
        _
      // Predicated region
      $region33: #{audio_captioning_forward.7} parent=11 // pred_check
        %p287 = pneg %p168
      $region34: #{audio_captioning_forward.7} parent=11 // pred_check_branch
        %289 = sbr.rel (%p287) target = $region36
      $region35: #{audio_captioning_forward.7} parent=11 // pred_region
        _
      $region36: #{audio_captioning_forward.7} parent=11 // pred_fallthru
        _
      // Predicated region
      $region37: #{audio_captioning_forward.7} parent=11 // pred_check
        %p290 = pneg %p189
      $region38: #{audio_captioning_forward.7} parent=11 // pred_check_branch
        %292 = sbr.rel (%p290) target = $region40
      $region39: #{audio_captioning_forward.7} parent=11 // pred_region
        _
      $region40: #{audio_captioning_forward.7} parent=11 // pred_fallthru
        _
      // Predicated region
      $region41: #{audio_captioning_forward.7} parent=11 // pred_check
        %p293 = pneg %p210
      $region42: #{audio_captioning_forward.7} parent=11 // pred_check_branch
        %295 = sbr.rel (%p293) target = $region44
      $region43: #{audio_captioning_forward.7} parent=11 // pred_region
        _
      $region44: #{audio_captioning_forward.7} parent=11 // pred_fallthru
        _
      // Predicated region
      $region45: #{audio_captioning_forward.7} parent=11 // pred_check
        %p296 = pneg %p231
      $region46: #{audio_captioning_forward.7} parent=11 // pred_check_branch
        %298 = sbr.rel (%p296) target = $region48
      $region47: #{audio_captioning_forward.7} parent=11 // pred_region
        _
      $region48: #{audio_captioning_forward.7} parent=11 // pred_fallthru
        _
    $region12: #{audio_captioning_forward.7} parent=5 // pred_fallthru
      _
    %p299 = scmp.lt.s32.totalorder %s16, 2
    // Predicated region
    $region49: #{audio_captioning_forward.7} parent=5 // pred_check
      %p300 = pneg %p299
    $region50: #{audio_captioning_forward.7} parent=5 // pred_check_branch
      %302 = sbr.rel (%p300) target = $region52
    $region51: #{audio_captioning_forward.7} parent=5 // pred_region
      // Predicated region
      $region53: #{audio_captioning_forward.7} parent=51 // pred_check
        %p303 = pneg %p36
      $region54: #{audio_captioning_forward.7} parent=51 // pred_check_branch
        %305 = sbr.rel (%p303) target = $region56
      $region55: #{audio_captioning_forward.7} parent=51 // pred_region
        %p306 = scmp.lt.s32.totalorder %s16, 1
        %s307 = scalar_select %p306, %s16, 1
        %s308 = smul.addr %s307, 2
        %s309 = smul.addr %s308, 8
        %s310 = scalar_lea.vmem %s0, %s309
      $region56: #{audio_captioning_forward.7} parent=51 // pred_fallthru
        _
    $region52: #{audio_captioning_forward.7} parent=5 // pred_fallthru
      _
    %p311 = scmp.le.s32.totalorder 1, %s16
    %p312 = scmp.lt.s32.totalorder %s16, 3
    %p313 = pnand %p311, %p312
    %p314 = pneg %p313
    // Predicated region
    $region57: #{audio_captioning_forward.7} parent=5 // pred_check
      _
    $region58: #{audio_captioning_forward.7} parent=5 // pred_check_branch
      %316 = sbr.rel (%p313) target = $region60
    $region59: #{audio_captioning_forward.7} parent=5 // pred_region
      %s317 = ssub.s32 %s16, 1
      %p318 = scmp.lt.s32.totalorder %s21, 1
      %s319 = scalar_select %p318, %s21, 1
      %s320 = smul.addr %s319, 2
      %s321 = smul.addr %s320, 8
      %s322 = scalar_lea.vmem %s0, %s321
      %p323 = pneg %p42
      %p324 = pneg %p39
      %p325 = pneg %p63
      %p326 = pneg %p60
      %p327 = pneg %p84
      %p328 = pneg %p81
      %p329 = pneg %p105
      %p330 = pneg %p102
      %p331 = pneg %p126
      %p332 = pneg %p123
      %p333 = pneg %p147
      %p334 = pneg %p144
      %p335 = pneg %p168
      %p336 = pneg %p165
      %p337 = pneg %p189
      %p338 = pneg %p186
      %p339 = pneg %p210
      %p340 = pneg %p207
      %p341 = pneg %p231
      %p342 = pneg %p228
      %p343 = pneg %p257
      %p344 = pneg %p254
      %p345 = scmp.lt.s32.totalorder %s21, 1
      %s346 = scalar_select %p345, %s21, 1
      %s347 = smul.addr %s346, 2
      %s348 = smul.addr %s347, 8
      %s349 = scalar_lea.vmem %s10, %s348
      %p350 = scmp.lt.s32.totalorder %s21, 1
      %s351 = scalar_select %p350, %s21, 1
      %s352 = smul.addr %s351, 2
      %s353 = smul.addr %s352, 8
      %s354 = scalar_lea.vmem %s0, %s353
      %p355 = scmp.lt.s32.totalorder %s21, 1
      %s356 = scalar_select %p355, %s21, 1
      %s357 = smul.addr %s356, 2
      %s358 = smul.addr %s357, 8
      %s359 = scalar_lea.vmem %s10, %s358
      %v361 = vld [vmem:[%s354] sm:$0xff]
      %v362 = vld [vmem:[%s354 + $0x8] sm:$0xff]
      %v363 = vld [vmem:[%s1] sm:$0xf]
      %v364 = vld [vmem:[%s1 + $0x4] sm:$0xf]
      %v365 = vld [vmem:[%s1 + $0x8] sm:$0xf]
      %v366 = vld [vmem:[%s1 + $0xc] sm:$0xf]
      %v367 = vld [vmem:[%s1 + $0x10] sm:$0xf]
      %v368 = vld [vmem:[%s1 + $0x14] sm:$0xf]
      %v369 = vld [vmem:[%s1 + $0x18] sm:$0xf]
      %v370 = vld [vmem:[%s1 + $0x1c] sm:$0xf]
      %v371 = vld [vmem:[%s1 + $0x20] sm:$0xf]
      %v372 = vld [vmem:[%s1 + $0x24] sm:$0xf]
      %v373 = vld [vmem:[%s1 + $0x28] sm:$0xf]
      %v374 = vld [vmem:[%s1 + $0x2c] sm:$0xf]
      %v375 = vpack.c.bf16 %v362, %v361
      %v376 = vld [vmem:[%s2] sm:$0xff]
      %v377 = vld [vmem:[%s2 + $0x8] sm:$0xff]
      %v378 = vld [vmem:[%s2 + $0x10] sm:$0xff]
      %v379 = vld [vmem:[%s2 + $0x18] sm:$0xff]
      %v380 = vld [vmem:[%s2 + $0x20] sm:$0xff]
      %v381 = vld [vmem:[%s2 + $0x28] sm:$0xff]
      %v382 = vld [vmem:[%s2 + $0x30] sm:$0xff]
      %v383 = vld [vmem:[%s2 + $0x38] sm:$0xff]
      %v384 = vld [vmem:[%s2 + $0x40] sm:$0xff]
      %v385 = vld [vmem:[%s2 + $0x48] sm:$0xff]
      %v386 = vld [vmem:[%s2 + $0x50] sm:$0xff]
      %v387 = vld [vmem:[%s2 + $0x58] sm:$0xff]
      %389 = vset.pattern.permute.xlu0 0
      %390 = vperm.xlu0 %389, %v376
      %v391 = vpop.permute.xlu0 %390
      %394 = vset.pattern.permute.xlu0 0
      %395 = vperm.xlu0 %394, %v377
      %v396 = vpop.permute.xlu0 %395
      %399 = vset.pattern.permute.xlu0 0
      %400 = vperm.xlu0 %399, %v378
      %v401 = vpop.permute.xlu0 %400
      %404 = vset.pattern.permute.xlu0 0
      %405 = vperm.xlu0 %404, %v379
      %v406 = vpop.permute.xlu0 %405
      %409 = vset.pattern.permute.xlu0 0
      %410 = vperm.xlu0 %409, %v380
      %v411 = vpop.permute.xlu0 %410
      %414 = vset.pattern.permute.xlu0 0
      %415 = vperm.xlu0 %414, %v381
      %v416 = vpop.permute.xlu0 %415
      %419 = vset.pattern.permute.xlu0 0
      %420 = vperm.xlu0 %419, %v382
      %v421 = vpop.permute.xlu0 %420
      %424 = vset.pattern.permute.xlu0 0
      %425 = vperm.xlu0 %424, %v383
      %v426 = vpop.permute.xlu0 %425
      %429 = vset.pattern.permute.xlu0 0
      %430 = vperm.xlu0 %429, %v384
      %v431 = vpop.permute.xlu0 %430
      %434 = vset.pattern.permute.xlu0 0
      %435 = vperm.xlu0 %434, %v385
      %v436 = vpop.permute.xlu0 %435
      %439 = vset.pattern.permute.xlu0 0
      %440 = vperm.xlu0 %439, %v386
      %v441 = vpop.permute.xlu0 %440
      %444 = vset.pattern.permute.xlu0 0
      %445 = vperm.xlu0 %444, %v387
      %v446 = vpop.permute.xlu0 %445
      %v460 = vunpack.c.l.b16 %v363
      %v461 = vunpack.c.l.b16 %v364
      %v462 = vunpack.c.l.b16 %v365
      %v463 = vunpack.c.l.b16 %v366
      %v464 = vunpack.c.l.b16 %v367
      %v465 = vunpack.c.l.b16 %v368
      %v466 = vunpack.c.l.b16 %v369
      %v467 = vunpack.c.l.b16 %v370
      %v468 = vunpack.c.l.b16 %v371
      %v469 = vunpack.c.l.b16 %v372
      %v470 = vunpack.c.l.b16 %v373
      %v471 = vunpack.c.l.b16 %v374
      %v472 = vpack.c.b16 %v461, %v460
      %v473 = vpack.c.b16 %v463, %v462
      %v474 = vpack.c.b16 %v465, %v464
      %v475 = vpack.c.b16 %v467, %v466
      %v476 = vpack.c.b16 %v469, %v468
      %v477 = vpack.c.b16 %v471, %v470
      %vm478 = vcmask 261120
      %v480 = vsel %vm478, %v472, 0
      %v483 = vsel %vm478, %v473, 0
      %v486 = vsel %vm478, %v474, 0
      %v489 = vsel %vm478, %v475, 0
      %v492 = vsel %vm478, %v476, 0
      %v495 = vsel %vm478, %v477, 0
      %v498 = vsel %vm478, %v375, 0
      %500 = vmatpush.bf16.xpose.msra.mxu0 0
      %501 = vmatpush.bf16.xpose.msra.mxu0 0
      %502 = vmatpush.bf16.xpose.msra.mxu0 0
      %503 = vmatpush.bf16.xpose.msra.mxu0 0
      %504 = vmatpush.bf16.xpose.msra.mxu0 0
      %505 = vmatpush.bf16.xpose.msra.mxu0 0
      %506 = vmatpush.bf16.xpose.msra.mxu0 0
      %507 = vmatpush.bf16.xpose.msra.mxu0 %v498
      %508 = vmatmul.bf16.gmra.mxu0 %v480
      %v509 = vpop.f32.mrf.mxu0
      %v510 = vadd.f32 %v391, %v509
      %v511 = vpop.f32.mrf.mxu0
      %v512 = vadd.f32 %v396, %v511
      %513 = vmatmul.bf16.gmra.mxu0 %v483
      %v514 = vpop.f32.mrf.mxu0
      %v515 = vadd.f32 %v401, %v514
      %v516 = vpop.f32.mrf.mxu0
      %v517 = vadd.f32 %v406, %v516
      %518 = vmatmul.bf16.gmra.mxu0 %v486
      %v519 = vpop.f32.mrf.mxu0
      %v520 = vadd.f32 %v411, %v519
      %v521 = vpop.f32.mrf.mxu0
      %v522 = vadd.f32 %v416, %v521
      %523 = vmatmul.bf16.gmra.mxu0 %v489
      %v524 = vpop.f32.mrf.mxu0
      %v525 = vadd.f32 %v421, %v524
      %v526 = vpop.f32.mrf.mxu0
      %v527 = vadd.f32 %v426, %v526
      %528 = vmatmul.bf16.gmra.mxu0 %v492
      %v529 = vpop.f32.mrf.mxu0
      %v530 = vadd.f32 %v431, %v529
      %v531 = vpop.f32.mrf.mxu0
      %v532 = vadd.f32 %v436, %v531
      %533 = vmatmul.bf16.gmra.mxu0 %v495
      %v534 = vpop.f32.mrf.mxu0
      %v535 = vadd.f32 %v441, %v534
      %v536 = vpop.f32.mrf.mxu0
      %v537 = vadd.f32 %v446, %v536
      %538 = vdwg.mxu0
      %v539 = vld [vmem:[%s3] sm:$0xf]
      %v540 = vld [vmem:[%s3 + $0x4] sm:$0xf]
      %v541 = vld [vmem:[%s3 + $0x8] sm:$0xf]
      %v542 = vld [vmem:[%s3 + $0xc] sm:$0xf]
      %v543 = vld [vmem:[%s4] sm:$0x1]
      %v544 = vpack.c.bf16 %v510, %v510
      %v545 = vpack.c.bf16 %v520, %v520
      %546 = vxpose.xlu0.c.b16.start [1/8] %v544, 128
      %547 = vxpose.xlu0.c.b16.cont [2/8] 0, 128
      %548 = vxpose.xlu0.c.b16.cont [3/8] 0, 128
      %549 = vxpose.xlu0.c.b16.cont [4/8] 0, 128
      %550 = vxpose.xlu0.c.b16.cont [5/8] 0, 128
      %551 = vxpose.xlu0.c.b16.cont [6/8] 0, 128
      %552 = vxpose.xlu0.c.b16.cont [7/8] 0, 128
      %553 = vxpose.xlu0.c.b16.end [8/8] 0, 128
      %v554 = vpop.trf.xlu0
      %v555 = vpop.trf.xlu0
      %v556 = vpop.trf.xlu0
      %v557 = vpop.trf.xlu0
      %v558 = vpop.trf.xlu0
      %v559 = vpop.trf.xlu0
      %v560 = vpop.trf.xlu0
      %v561 = vpop.trf.xlu0
      %vm562 = vcmask 64512
      %v564 = vsel %vm562, %v554, 0
      %vm566 = vcmask 1043456
      %v568 = vsel %vm566, %v545, 0
      %570 = vmatpush.bf16.msra.mxu0 0
      %571 = vmatpush.bf16.msra.mxu0 0
      %572 = vmatpush.bf16.msra.mxu0 0
      %573 = vmatpush.bf16.msra.mxu0 0
      %574 = vmatpush.bf16.msra.mxu0 0
      %575 = vmatpush.bf16.msra.mxu0 0
      %576 = vmatpush.bf16.msra.mxu0 0
      %577 = vmatpush.bf16.msra.mxu0 %v568
      %578 = vmatmul.bf16.gmra.mxu0 %v564
      %v579 = vpop.f32.mrf.mxu0
      %v580 = vadd.f32 0.0, %v579
      %v581 = vpop.f32.mrf.mxu0
      %v582 = vadd.f32 0.0, %v581
      %583 = vdwg.mxu0
      %vm584 = vcmask 130048
      %v585 = vsel %vm584, %v580, -inf
      %586 = vmax.xlane.f32.xlu0 %v585
      %v587 = vpop.xlane.xlu0 %586
      %v588 = vsel %vm584, %v582, -inf
      %589 = vmax.xlane.f32.xlu0 %v588
      %v590 = vpop.xlane.xlu0 %589
      %v591 = vsub.f32 %v580, %v587
      %v592 = vsub.f32 %v582, %v590
      %v593 = vmul.f32 %v591, 1.442695
      %v594 = vpow.pop %v593
      %v595 = vmul.f32 %v592, 1.442695
      %v596 = vpow.pop %v595
      %v597 = vsel %vm584, %v594, 0.0
      %598 = vadd.xlane.f32.xlu0 %v597
      %v599 = vpop.xlane.xlu0 %598
      %v600 = vsel %vm584, %v596, 0.0
      %601 = vadd.xlane.f32.xlu0 %v600
      %v602 = vpop.xlane.xlu0 %601
      %v603 = vrcp.pop %v599
      %v604 = vrcp.pop %v602
      %v605 = vmul.f32 %v594, %v603
      %v606 = vmul.f32 %v596, %v604
      %v607 = vpack.c.bf16 %v530, %v530
      %v608 = vpack.c.bf16 %v606, %v605
      %v610 = vsel %vm584, %v607, 0
      %v613 = vsel %vm584, %v608, 0
      %615 = vmatpush.bf16.xpose.msra.mxu0 0
      %616 = vmatpush.bf16.xpose.msra.mxu0 0
      %617 = vmatpush.bf16.xpose.msra.mxu0 0
      %618 = vmatpush.bf16.xpose.msra.mxu0 0
      %619 = vmatpush.bf16.xpose.msra.mxu0 0
      %620 = vmatpush.bf16.xpose.msra.mxu0 0
      %621 = vmatpush.bf16.xpose.msra.mxu0 0
      %622 = vmatpush.bf16.xpose.msra.mxu0 %v613
      %623 = vmatmul.bf16.gmra.mxu0 %v610
      %v624 = vpop.f32.mrf.mxu0
      %v625 = vadd.f32 0.0, %v624
      %v626 = vpop.f32.mrf.mxu0
      %627 = vdwg.mxu0
      %v628 = vpack.c.bf16 %v512, %v512
      %v629 = vpack.c.bf16 %v522, %v522
      %630 = vxpose.xlu0.c.b16.start [1/8] %v628, 128
      %631 = vxpose.xlu0.c.b16.cont [2/8] 0, 128
      %632 = vxpose.xlu0.c.b16.cont [3/8] 0, 128
      %633 = vxpose.xlu0.c.b16.cont [4/8] 0, 128
      %634 = vxpose.xlu0.c.b16.cont [5/8] 0, 128
      %635 = vxpose.xlu0.c.b16.cont [6/8] 0, 128
      %636 = vxpose.xlu0.c.b16.cont [7/8] 0, 128
      %637 = vxpose.xlu0.c.b16.end [8/8] 0, 128
      %v638 = vpop.trf.xlu0
      %v639 = vpop.trf.xlu0
      %v640 = vpop.trf.xlu0
      %v641 = vpop.trf.xlu0
      %v642 = vpop.trf.xlu0
      %v643 = vpop.trf.xlu0
      %v644 = vpop.trf.xlu0
      %v645 = vpop.trf.xlu0
      %v647 = vsel %vm562, %v638, 0
      %v650 = vsel %vm566, %v629, 0
      %652 = vmatpush.bf16.msra.mxu0 0
      %653 = vmatpush.bf16.msra.mxu0 0
      %654 = vmatpush.bf16.msra.mxu0 0
      %655 = vmatpush.bf16.msra.mxu0 0
      %656 = vmatpush.bf16.msra.mxu0 0
      %657 = vmatpush.bf16.msra.mxu0 0
      %658 = vmatpush.bf16.msra.mxu0 0
      %659 = vmatpush.bf16.msra.mxu0 %v650
      %660 = vmatmul.bf16.gmra.mxu0 %v647
      %v661 = vpop.f32.mrf.mxu0
      %v662 = vadd.f32 0.0, %v661
      %v663 = vpop.f32.mrf.mxu0
      %v664 = vadd.f32 0.0, %v663
      %665 = vdwg.mxu0
      %v666 = vsel %vm584, %v662, -inf
      %667 = vmax.xlane.f32.xlu0 %v666
      %v668 = vpop.xlane.xlu0 %667
      %v669 = vsel %vm584, %v664, -inf
      %670 = vmax.xlane.f32.xlu0 %v669
      %v671 = vpop.xlane.xlu0 %670
      %v672 = vsub.f32 %v662, %v668
      %v673 = vsub.f32 %v664, %v671
      %v674 = vmul.f32 %v672, 1.442695
      %v675 = vpow.pop %v674
      %v676 = vmul.f32 %v673, 1.442695
      %v677 = vpow.pop %v676
      %v678 = vsel %vm584, %v675, 0.0
      %679 = vadd.xlane.f32.xlu0 %v678
      %v680 = vpop.xlane.xlu0 %679
      %v681 = vsel %vm584, %v677, 0.0
      %682 = vadd.xlane.f32.xlu0 %v681
      %v683 = vpop.xlane.xlu0 %682
      %v684 = vrcp.pop %v680
      %v685 = vrcp.pop %v683
      %v686 = vmul.f32 %v675, %v684
      %v687 = vmul.f32 %v677, %v685
      %v688 = vpack.c.bf16 %v532, %v532
      %v689 = vpack.c.bf16 %v687, %v686
      %v691 = vsel %vm584, %v688, 0
      %v694 = vsel %vm584, %v689, 0
      %696 = vmatpush.bf16.xpose.msra.mxu0 0
      %697 = vmatpush.bf16.xpose.msra.mxu0 0
      %698 = vmatpush.bf16.xpose.msra.mxu0 0
      %699 = vmatpush.bf16.xpose.msra.mxu0 0
      %700 = vmatpush.bf16.xpose.msra.mxu0 0
      %701 = vmatpush.bf16.xpose.msra.mxu0 0
      %702 = vmatpush.bf16.xpose.msra.mxu0 0
      %703 = vmatpush.bf16.xpose.msra.mxu0 %v694
      %704 = vmatmul.bf16.gmra.mxu0 %v691
      %v705 = vpop.f32.mrf.mxu0
      %v706 = vadd.f32 0.0, %v705
      %v707 = vpop.f32.mrf.mxu0
      %708 = vdwg.mxu0
      %v709 = vpack.c.bf16 %v515, %v515
      %v710 = vpack.c.bf16 %v525, %v525
      %711 = vxpose.xlu0.c.b16.start [1/8] %v709, 128
      %712 = vxpose.xlu0.c.b16.cont [2/8] 0, 128
      %713 = vxpose.xlu0.c.b16.cont [3/8] 0, 128
      %714 = vxpose.xlu0.c.b16.cont [4/8] 0, 128
      %715 = vxpose.xlu0.c.b16.cont [5/8] 0, 128
      %716 = vxpose.xlu0.c.b16.cont [6/8] 0, 128
      %717 = vxpose.xlu0.c.b16.cont [7/8] 0, 128
      %718 = vxpose.xlu0.c.b16.end [8/8] 0, 128
      %v719 = vpop.trf.xlu0
      %v720 = vpop.trf.xlu0
      %v721 = vpop.trf.xlu0
      %v722 = vpop.trf.xlu0
      %v723 = vpop.trf.xlu0
      %v724 = vpop.trf.xlu0
      %v725 = vpop.trf.xlu0
      %v726 = vpop.trf.xlu0
      %v728 = vsel %vm562, %v719, 0
      %v731 = vsel %vm566, %v710, 0
      %733 = vmatpush.bf16.msra.mxu0 0
      %734 = vmatpush.bf16.msra.mxu0 0
      %735 = vmatpush.bf16.msra.mxu0 0
      %736 = vmatpush.bf16.msra.mxu0 0
      %737 = vmatpush.bf16.msra.mxu0 0
      %738 = vmatpush.bf16.msra.mxu0 0
      %739 = vmatpush.bf16.msra.mxu0 0
      %740 = vmatpush.bf16.msra.mxu0 %v731
      %741 = vmatmul.bf16.gmra.mxu0 %v728
      %v742 = vpop.f32.mrf.mxu0
      %v743 = vadd.f32 0.0, %v742
      %v744 = vpop.f32.mrf.mxu0
      %v745 = vadd.f32 0.0, %v744
      %746 = vdwg.mxu0
      %v747 = vsel %vm584, %v743, -inf
      %748 = vmax.xlane.f32.xlu0 %v747
      %v749 = vpop.xlane.xlu0 %748
      %v750 = vsel %vm584, %v745, -inf
      %751 = vmax.xlane.f32.xlu0 %v750
      %v752 = vpop.xlane.xlu0 %751
      %v753 = vsub.f32 %v743, %v749
      %v754 = vsub.f32 %v745, %v752
      %v755 = vmul.f32 %v753, 1.442695
      %v756 = vpow.pop %v755
      %v757 = vmul.f32 %v754, 1.442695
      %v758 = vpow.pop %v757
      %v759 = vsel %vm584, %v756, 0.0
      %760 = vadd.xlane.f32.xlu0 %v759
      %v761 = vpop.xlane.xlu0 %760
      %v762 = vsel %vm584, %v758, 0.0
      %763 = vadd.xlane.f32.xlu0 %v762
      %v764 = vpop.xlane.xlu0 %763
      %v765 = vrcp.pop %v761
      %v766 = vrcp.pop %v764
      %v767 = vmul.f32 %v756, %v765
      %v768 = vmul.f32 %v758, %v766
      %v769 = vpack.c.bf16 %v535, %v535
      %v770 = vpack.c.bf16 %v768, %v767
      %v772 = vsel %vm584, %v769, 0
      %v775 = vsel %vm584, %v770, 0
      %777 = vmatpush.bf16.xpose.msra.mxu0 0
      %778 = vmatpush.bf16.xpose.msra.mxu0 0
      %779 = vmatpush.bf16.xpose.msra.mxu0 0
      %780 = vmatpush.bf16.xpose.msra.mxu0 0
      %781 = vmatpush.bf16.xpose.msra.mxu0 0
      %782 = vmatpush.bf16.xpose.msra.mxu0 0
      %783 = vmatpush.bf16.xpose.msra.mxu0 0
      %784 = vmatpush.bf16.xpose.msra.mxu0 %v775
      %785 = vmatmul.bf16.gmra.mxu0 %v772
      %v786 = vpop.f32.mrf.mxu0
      %v787 = vadd.f32 0.0, %v786
      %v788 = vpop.f32.mrf.mxu0
      %789 = vdwg.mxu0
      %v790 = vpack.c.bf16 %v517, %v517
      %v791 = vpack.c.bf16 %v527, %v527
      %792 = vxpose.xlu0.c.b16.start [1/8] %v790, 128
      %793 = vxpose.xlu0.c.b16.cont [2/8] 0, 128
      %794 = vxpose.xlu0.c.b16.cont [3/8] 0, 128
      %795 = vxpose.xlu0.c.b16.cont [4/8] 0, 128
      %796 = vxpose.xlu0.c.b16.cont [5/8] 0, 128
      %797 = vxpose.xlu0.c.b16.cont [6/8] 0, 128
      %798 = vxpose.xlu0.c.b16.cont [7/8] 0, 128
      %799 = vxpose.xlu0.c.b16.end [8/8] 0, 128
      %v800 = vpop.trf.xlu0
      %v801 = vpop.trf.xlu0
      %v802 = vpop.trf.xlu0
      %v803 = vpop.trf.xlu0
      %v804 = vpop.trf.xlu0
      %v805 = vpop.trf.xlu0
      %v806 = vpop.trf.xlu0
      %v807 = vpop.trf.xlu0
      %v809 = vsel %vm562, %v800, 0
      %v812 = vsel %vm566, %v791, 0
      %814 = vmatpush.bf16.msra.mxu0 0
      %815 = vmatpush.bf16.msra.mxu0 0
      %816 = vmatpush.bf16.msra.mxu0 0
      %817 = vmatpush.bf16.msra.mxu0 0
      %818 = vmatpush.bf16.msra.mxu0 0
      %819 = vmatpush.bf16.msra.mxu0 0
      %820 = vmatpush.bf16.msra.mxu0 0
      %821 = vmatpush.bf16.msra.mxu0 %v812
      %822 = vmatmul.bf16.gmra.mxu0 %v809
      %v823 = vpop.f32.mrf.mxu0
      %v824 = vadd.f32 0.0, %v823
      %v825 = vpop.f32.mrf.mxu0
      %v826 = vadd.f32 0.0, %v825
      %827 = vdwg.mxu0
      %v828 = vsel %vm584, %v824, -inf
      %829 = vmax.xlane.f32.xlu0 %v828
      %v830 = vpop.xlane.xlu0 %829
      %v831 = vsel %vm584, %v826, -inf
      %832 = vmax.xlane.f32.xlu0 %v831
      %v833 = vpop.xlane.xlu0 %832
      %v834 = vsub.f32 %v824, %v830
      %v835 = vsub.f32 %v826, %v833
      %v836 = vmul.f32 %v834, 1.442695
      %v837 = vpow.pop %v836
      %v838 = vmul.f32 %v835, 1.442695
      %v839 = vpow.pop %v838
      %v840 = vsel %vm584, %v837, 0.0
      %841 = vadd.xlane.f32.xlu0 %v840
      %v842 = vpop.xlane.xlu0 %841
      %v843 = vsel %vm584, %v839, 0.0
      %844 = vadd.xlane.f32.xlu0 %v843
      %v845 = vpop.xlane.xlu0 %844
      %v846 = vrcp.pop %v842
      %v847 = vrcp.pop %v845
      %v848 = vmul.f32 %v837, %v846
      %v849 = vmul.f32 %v839, %v847
      %v850 = vpack.c.bf16 %v537, %v537
      %v851 = vpack.c.bf16 %v849, %v848
      %v853 = vsel %vm584, %v850, 0
      %v856 = vsel %vm584, %v851, 0
      %858 = vmatpush.bf16.xpose.msra.mxu0 0
      %859 = vmatpush.bf16.xpose.msra.mxu0 0
      %860 = vmatpush.bf16.xpose.msra.mxu0 0
      %861 = vmatpush.bf16.xpose.msra.mxu0 0
      %862 = vmatpush.bf16.xpose.msra.mxu0 0
      %863 = vmatpush.bf16.xpose.msra.mxu0 0
      %864 = vmatpush.bf16.xpose.msra.mxu0 0
      %865 = vmatpush.bf16.xpose.msra.mxu0 %v856
      %866 = vmatmul.bf16.gmra.mxu0 %v853
      %v867 = vpop.f32.mrf.mxu0
      %v868 = vadd.f32 0.0, %v867
      %v869 = vpop.f32.mrf.mxu0
      %870 = vdwg.mxu0
      %v871 = vpack.c.bf16 %v706, %v625
      %v872 = vpack.c.bf16 %v868, %v787
      %v874 = vperm.slane %v543, 0
      %876 = vxpose.xlu0.c.b16.start [1/8] %v871, 128
      %877 = vxpose.xlu0.c.b16.cont [2/8] %v872, 128
      %878 = vxpose.xlu0.c.b16.cont [3/8] 0, 128
      %879 = vxpose.xlu0.c.b16.cont [4/8] 0, 128
      %880 = vxpose.xlu0.c.b16.cont [5/8] 0, 128
      %881 = vxpose.xlu0.c.b16.cont [6/8] 0, 128
      %882 = vxpose.xlu0.c.b16.cont [7/8] 0, 128
      %883 = vxpose.xlu0.c.b16.end [8/8] 0, 128
      %v884 = vpop.trf.xlu0
      %v885 = vpop.trf.xlu0
      %v886 = vpop.trf.xlu0
      %v887 = vpop.trf.xlu0
      %v888 = vpop.trf.xlu0
      %v889 = vpop.trf.xlu0
      %v890 = vpop.trf.xlu0
      %v891 = vpop.trf.xlu0
      %v896 = vunpack.c.l.b16 %v539
      %v897 = vunpack.c.l.b16 %v540
      %v898 = vunpack.c.l.b16 %v541
      %v899 = vunpack.c.l.b16 %v542
      %v900 = vpack.c.b16 %v897, %v896
      %v901 = vpack.c.b16 %v899, %v898
      %v905 = vsel %vm478, %v884, 0
      %907 = vmatpush.bf16.msra.mxu0 0
      %908 = vmatpush.bf16.msra.mxu0 0
      %909 = vmatpush.bf16.msra.mxu0 0
      %910 = vmatpush.bf16.msra.mxu0 0
      %911 = vmatpush.bf16.msra.mxu0 0
      %912 = vmatpush.bf16.msra.mxu0 0
      %913 = vmatpush.bf16.msra.mxu0 %v901
      %914 = vmatpush.bf16.msra.mxu0 %v900
      %915 = vmatmul.bf16.gmra.mxu0 %v905
      %v916 = vpop.f32.mrf.mxu0
      %v917 = vadd.f32 %v874, %v916
      %v918 = vpop.f32.mrf.mxu0
      %v919 = vadd.f32 %v874, %v918
      %920 = vdwg.mxu0
      %v921 = vadd.f32 %v361, %v917
      %v922 = vadd.f32 %v362, %v919
      %v923 = vld [vmem:[%s9] sm:$0x1]
      %v924 = vld [vmem:[%s9 + $0x1] sm:$0x1]
      %v925 = vsel %vm478, %v921, 0.0
      %926 = vadd.xlane.f32.xlu0 %v925
      %v927 = vpop.xlane.xlu0 %926
      %v928 = vsel %vm478, %v922, 0.0
      %929 = vadd.xlane.f32.xlu0 %v928
      %v930 = vpop.xlane.xlu0 %929
      %v931 = vrcp.pop 32.0
      %v932 = vmul.f32 32.0, %v931
      %v933 = vsub.f32 1.0, %v932
      %v934 = vmul.f32 %v931, %v933
      %v935 = vadd.f32 %v931, %v934
      %vm936 = vweird.f32 %v931
      %v937 = vsel %vm936, %v931, %v935
      %v938 = vmul.f32 %v927, %v937
      %v939 = vmul.f32 %v930, %v937
      %v940 = vsub.f32 %v921, %v938
      %v941 = vsub.f32 %v922, %v939
      %v942 = vmul.f32 %v940, %v940
      %v943 = vmul.f32 %v941, %v941
      %v944 = vsel %vm478, %v942, 0.0
      %945 = vadd.xlane.f32.xlu0 %v944
      %v946 = vpop.xlane.xlu0 %945
      %v947 = vsel %vm478, %v943, 0.0
      %948 = vadd.xlane.f32.xlu0 %v947
      %v949 = vpop.xlane.xlu0 %948
      %v950 = vmul.f32 %v946, %v937
      %v951 = vmul.f32 %v949, %v937
      %v952 = vadd.f32 %v950, 1e-05
      %v953 = vadd.f32 %v951, 1e-05
      %v954 = vrsqrt.pop %v952
      %v955 = vmul.f32 %v954, %v952
      %v956 = vmul.f32 %v955, %v954
      %v957 = vmul.f32 0.5, %v956
      %v958 = vsub.f32 1.5, %v957
      %v959 = vmul.f32 %v954, %v958
      %vm960 = vweird.f32 %v952
      %vm961 = vweird.f32 %v954
      %vm962 = vmor %vm960, %vm961
      %v963 = vsel %vm962, %v954, %v959
      %v964 = vrsqrt.pop %v953
      %v965 = vmul.f32 %v964, %v953
      %v966 = vmul.f32 %v965, %v964
      %v967 = vmul.f32 0.5, %v966
      %v968 = vsub.f32 1.5, %v967
      %v969 = vmul.f32 %v964, %v968
      %vm970 = vweird.f32 %v953
      %vm971 = vweird.f32 %v964
      %vm972 = vmor %vm970, %vm971
      %v973 = vsel %vm972, %v964, %v969
      %v974 = vmul.f32 %v940, %v963
      %v975 = vmul.f32 %v941, %v973
      %v976 = vperm.slane %v923, 0
      %v977 = vmul.f32 %v974, %v976
      %v978 = vmul.f32 %v975, %v976
      %v979 = vperm.slane %v924, 0
      %v980 = vadd.f32 %v977, %v979
      %v981 = vadd.f32 %v978, %v979
      %v982 = vld [vmem:[%s5] sm:$0xf]
      %v983 = vld [vmem:[%s5 + $0x4] sm:$0xf]
      %v984 = vld [vmem:[%s5 + $0x8] sm:$0xf]
      %v985 = vld [vmem:[%s5 + $0xc] sm:$0xf]
      %v986 = vpack.c.bf16 %v981, %v980
      %v987 = vld [vmem:[%s6] sm:$0x1]
      %v989 = vperm.slane %v987, 0
      %v995 = vunpack.c.l.b16 %v982
      %v996 = vunpack.c.l.b16 %v983
      %v997 = vunpack.c.l.b16 %v984
      %v998 = vunpack.c.l.b16 %v985
      %v999 = vpack.c.b16 %v996, %v995
      %v1000 = vpack.c.b16 %v998, %v997
      %v1004 = vsel %vm478, %v986, 0
      %1006 = vmatpush.bf16.msra.mxu0 0
      %1007 = vmatpush.bf16.msra.mxu0 0
      %1008 = vmatpush.bf16.msra.mxu0 0
      %1009 = vmatpush.bf16.msra.mxu0 0
      %1010 = vmatpush.bf16.msra.mxu0 0
      %1011 = vmatpush.bf16.msra.mxu0 0
      %1012 = vmatpush.bf16.msra.mxu0 %v1000
      %1013 = vmatpush.bf16.msra.mxu0 %v999
      %1014 = vmatmul.bf16.gmra.mxu0 %v1004
      %v1015 = vpop.f32.mrf.mxu0
      %v1016 = vadd.f32 %v989, %v1015
      %v1017 = vpop.f32.mrf.mxu0
      %v1018 = vadd.f32 %v989, %v1017
      %1019 = vdwg.mxu0
      %v1020 = vmax.f32 %v1016, 0.0
      %v1021 = vmax.f32 %v1018, 0.0
      %v1022 = vld [vmem:[%s7] sm:$0xf]
      %v1023 = vld [vmem:[%s7 + $0x4] sm:$0xf]
      %v1024 = vld [vmem:[%s7 + $0x8] sm:$0xf]
      %v1025 = vld [vmem:[%s7 + $0xc] sm:$0xf]
      %v1026 = vld [vmem:[%s7 + $0x10] sm:$0xf]
      %v1027 = vld [vmem:[%s7 + $0x14] sm:$0xf]
      %v1028 = vld [vmem:[%s7 + $0x18] sm:$0xf]
      %v1029 = vld [vmem:[%s7 + $0x1c] sm:$0xf]
      %v1030 = vpack.c.bf16 %v1021, %v1020
      %v1031 = vld [vmem:[%s8] sm:$0x1]
      %v1033 = vperm.slane %v1031, 0
      %v1043 = vunpack.c.l.b16 %v1022
      %v1044 = vunpack.c.l.b16 %v1023
      %v1045 = vunpack.c.l.b16 %v1024
      %v1046 = vunpack.c.l.b16 %v1025
      %v1047 = vunpack.c.l.b16 %v1026
      %v1048 = vunpack.c.l.b16 %v1027
      %v1049 = vunpack.c.l.b16 %v1028
      %v1050 = vunpack.c.l.b16 %v1029
      %v1051 = vpack.c.b16 %v1044, %v1043
      %v1052 = vpack.c.b16 %v1046, %v1045
      %v1053 = vpack.c.b16 %v1048, %v1047
      %v1054 = vpack.c.b16 %v1050, %v1049
      %vm1059 = vcmask 523264
      %v1061 = vsel %vm1059, %v1030, 0
      %1063 = vmatpush.bf16.msra.mxu0 0
      %1064 = vmatpush.bf16.msra.mxu0 0
      %1065 = vmatpush.bf16.msra.mxu0 0
      %1066 = vmatpush.bf16.msra.mxu0 0
      %1067 = vmatpush.bf16.msra.mxu0 %v1054
      %1068 = vmatpush.bf16.msra.mxu0 %v1053
      %1069 = vmatpush.bf16.msra.mxu0 %v1052
      %1070 = vmatpush.bf16.msra.mxu0 %v1051
      %1071 = vmatmul.bf16.gmra.mxu0 %v1061
      %v1072 = vpop.f32.mrf.mxu0
      %v1073 = vadd.f32 %v1033, %v1072
      %v1074 = vpop.f32.mrf.mxu0
      %v1075 = vadd.f32 %v1033, %v1074
      %1076 = vdwg.mxu0
      %v1077 = vadd.f32 %v980, %v1073
      %v1078 = vadd.f32 %v981, %v1075
      %v1079 = vld [vmem:[%s9 + $0x2] sm:$0x1]
      %v1080 = vld [vmem:[%s9 + $0x3] sm:$0x1]
      %v1081 = vsel %vm478, %v1077, 0.0
      %1082 = vadd.xlane.f32.xlu0 %v1081
      %v1083 = vpop.xlane.xlu0 %1082
      %v1084 = vsel %vm478, %v1078, 0.0
      %1085 = vadd.xlane.f32.xlu0 %v1084
      %v1086 = vpop.xlane.xlu0 %1085
      %v1087 = vmul.f32 %v1083, %v937
      %v1088 = vmul.f32 %v1086, %v937
      %v1089 = vsub.f32 %v1077, %v1087
      %v1090 = vsub.f32 %v1078, %v1088
      %v1091 = vmul.f32 %v1089, %v1089
      %v1092 = vmul.f32 %v1090, %v1090
      %v1093 = vsel %vm478, %v1091, 0.0
      %1094 = vadd.xlane.f32.xlu0 %v1093
      %v1095 = vpop.xlane.xlu0 %1094
      %v1096 = vsel %vm478, %v1092, 0.0
      %1097 = vadd.xlane.f32.xlu0 %v1096
      %v1098 = vpop.xlane.xlu0 %1097
      %v1099 = vmul.f32 %v1095, %v937
      %v1100 = vmul.f32 %v1098, %v937
      %v1101 = vadd.f32 %v1099, 1e-05
      %v1102 = vadd.f32 %v1100, 1e-05
      %v1103 = vrsqrt.pop %v1101
      %v1104 = vmul.f32 %v1103, %v1101
      %v1105 = vmul.f32 %v1104, %v1103
      %v1106 = vmul.f32 0.5, %v1105
      %v1107 = vsub.f32 1.5, %v1106
      %v1108 = vmul.f32 %v1103, %v1107
      %vm1109 = vweird.f32 %v1101
      %vm1110 = vweird.f32 %v1103
      %vm1111 = vmor %vm1109, %vm1110
      %v1112 = vsel %vm1111, %v1103, %v1108
      %v1113 = vrsqrt.pop %v1102
      %v1114 = vmul.f32 %v1113, %v1102
      %v1115 = vmul.f32 %v1114, %v1113
      %v1116 = vmul.f32 0.5, %v1115
      %v1117 = vsub.f32 1.5, %v1116
      %v1118 = vmul.f32 %v1113, %v1117
      %vm1119 = vweird.f32 %v1102
      %vm1120 = vweird.f32 %v1113
      %vm1121 = vmor %vm1119, %vm1120
      %v1122 = vsel %vm1121, %v1113, %v1118
      %v1123 = vmul.f32 %v1089, %v1112
      %v1124 = vmul.f32 %v1090, %v1122
      %v1125 = vperm.slane %v1079, 0
      %v1126 = vmul.f32 %v1123, %v1125
      %v1127 = vmul.f32 %v1124, %v1125
      %v1128 = vperm.slane %v1080, 0
      %v1129 = vadd.f32 %v1126, %v1128
      %v1130 = vadd.f32 %v1127, %v1128
      %1131 = vst.msk [vmem:[%s359] sm:$0xff] %vm478, %v1129
      %1132 = vst.msk [vmem:[%s359 + $0x8] sm:$0xff] %vm478, %v1130
      %p1133 = scmp.lt.s32.totalorder %s21, 1
      %s1134 = scalar_select %p1133, %s21, 1
      %s1135 = smul.addr %s1134, 2
      %s1136 = smul.addr %s1135, 8
      %s1137 = scalar_lea.vmem %s10, %s1136
      // Predicated region
      $region61: #{audio_captioning_forward.7} parent=59 // pred_check
        %p1138 = pneg %p254
      $region62: #{audio_captioning_forward.7} parent=59 // pred_check_branch
        %1140 = sbr.rel (%p1138) target = $region64
      $region63: #{audio_captioning_forward.7} parent=59 // pred_region
        _
      $region64: #{audio_captioning_forward.7} parent=59 // pred_fallthru
        _
    $region60: #{audio_captioning_forward.7} parent=5 // pred_fallthru
      _
    %p1141 = scmp.le.s32.totalorder 2, %s16
    // Predicated region
    $region65: #{audio_captioning_forward.7} parent=5 // pred_check
      %p1142 = pneg %p1141
    $region66: #{audio_captioning_forward.7} parent=5 // pred_check_branch
      %1144 = sbr.rel (%p1142) target = $region68
    $region67: #{audio_captioning_forward.7} parent=5 // pred_region
      %s1145 = ssub.s32 %s16, 2
      // Predicated region
      $region69: #{audio_captioning_forward.7} parent=67 // pred_check
        %p1146 = pneg %p260
      $region70: #{audio_captioning_forward.7} parent=67 // pred_check_branch
        %1148 = sbr.rel (%p1146) target = $region72
      $region71: #{audio_captioning_forward.7} parent=67 // pred_region
        %p1149 = scmp.lt.s32.totalorder %s22, 1
        %s1150 = scalar_select %p1149, %s22, 1
        %s1151 = smul.addr %s1150, 2
        %s1152 = smul.addr %s1151, 8
        %s1153 = scalar_lea.vmem %s10, %s1152
      $region72: #{audio_captioning_forward.7} parent=67 // pred_fallthru
        _
    $region68: #{audio_captioning_forward.7} parent=5 // pred_fallthru
      _
  $region6: #{audio_captioning_forward.7} parent=0 // loop_footer
    %s20 = sadd.s32 1, %s16
  $region7: #{audio_captioning_forward.7} parent=0 // loop_footer_branch
    %15 = sbr.rel target = $region3
  $region8: #{audio_captioning_forward.7} parent=0 // loop_exit
    _

// kernel: audio_captioning_forward.9
$region0: #{audio_captioning_forward.9}
  #allocation0 [shape = 'u32[]', space=smem, size = 0x4, offset = 0x4, fixed_abs, tag = 'smem constant byte address 0x4 - core index']
  #allocation1 [shape = 'u32[72,128]{1,0:T(1,128)}', space=vmem, size = 0x9000, scoped, tag = 'internal scratch']
  %s0 = inlined_call_operand.vmem [shape: f32[2,8,32], index: 0, kind: input, shape index: {}]
  %s1 = inlined_call_operand.vmem [shape: f32[2,16,32], index: 1, kind: input, shape index: {}]
  %s2 = inlined_call_operand.vmem [shape: bf16[96,32], index: 2, kind: input, shape index: {}]
  %s3 = inlined_call_operand.vmem [shape: f32[96,1], index: 3, kind: input, shape index: {}]
  %s4 = inlined_call_operand.vmem [shape: bf16[32,32], index: 4, kind: input, shape index: {}]
  %s5 = inlined_call_operand.vmem [shape: f32[1,32], index: 5, kind: input, shape index: {}]
  %s6 = inlined_call_operand.vmem [shape: bf16[32,32], index: 6, kind: input, shape index: {}]
  %s7 = inlined_call_operand.vmem [shape: f32[32,1], index: 7, kind: input, shape index: {}]
  %s8 = inlined_call_operand.vmem [shape: bf16[64,32], index: 8, kind: input, shape index: {}]
  %s9 = inlined_call_operand.vmem [shape: f32[64,1], index: 9, kind: input, shape index: {}]
  %s10 = inlined_call_operand.vmem [shape: bf16[32,32], index: 10, kind: input, shape index: {}]
  %s11 = inlined_call_operand.vmem [shape: f32[1,32], index: 11, kind: input, shape index: {}]
  %s12 = inlined_call_operand.vmem [shape: bf16[32,64], index: 12, kind: input, shape index: {}]
  %s13 = inlined_call_operand.vmem [shape: f32[1,64], index: 13, kind: input, shape index: {}]
  %s14 = inlined_call_operand.vmem [shape: bf16[64,32], index: 14, kind: input, shape index: {}]
  %s15 = inlined_call_operand.vmem [shape: f32[1,32], index: 15, kind: input, shape index: {}]
  %s16 = inlined_call_operand.vmem [shape: f32[6,32], index: 16, kind: input, shape index: {}]
  %s17 = inlined_call_operand.vmem [shape: f32[2,8,32], index: 17, kind: output, shape index: {}]
  %s18 = sld [smem:[#allocation0]]
  $region101: #{audio_captioning_forward.9} parent=0
    _
  %s20 = ssub.s32 1, %s18
  %s21 = scalar_select 0, %s20, %s18
  loop: start=0, step=1, limit=4
  $region2: #{audio_captioning_forward.9} parent=0 // loop_pre_header
    _
  $region3: #{audio_captioning_forward.9} parent=0 // loop_header
    %s23 = sphi 0, %s27
    %p24 = scmp.ge.s32.totalorder %s23, 4
    %s33 = sphi 0, %s35
    %s36 = sphi 0, %s33
    %s37 = sphi 0, %s36
    %s53 = sphi 0, %s37
    %s59 = sphi 0, %s61
    %s62 = sphi 0, %s59
    %s63 = sphi 0, %s62
    %s79 = sphi 0, %s63
    %s83 = sphi 0, %s83
    %s85 = sphi 0, %s83
    %s86 = sphi 0, %s85
    %s100 = sphi 0, %s86
    %s104 = sphi 0, %s104
    %s106 = sphi 0, %s104
    %s107 = sphi 0, %s106
    %s121 = sphi 0, %s107
    %s125 = sphi 0, %s125
    %s127 = sphi 0, %s125
    %s128 = sphi 0, %s127
    %s142 = sphi 0, %s128
    %s146 = sphi 0, %s146
    %s148 = sphi 0, %s146
    %s149 = sphi 0, %s148
    %s163 = sphi 0, %s149
    %s167 = sphi 0, %s167
    %s169 = sphi 0, %s167
    %s170 = sphi 0, %s169
    %s184 = sphi 0, %s170
    %s188 = sphi 0, %s188
    %s190 = sphi 0, %s188
    %s191 = sphi 0, %s190
    %s205 = sphi 0, %s191
    %s209 = sphi 0, %s209
    %s211 = sphi 0, %s209
    %s212 = sphi 0, %s211
    %s226 = sphi 0, %s212
    %s230 = sphi 0, %s230
    %s232 = sphi 0, %s230
    %s233 = sphi 0, %s232
    %s247 = sphi 0, %s233
    %s251 = sphi 0, %s251
    %s253 = sphi 0, %s251
    %s254 = sphi 0, %s253
    %s268 = sphi 0, %s254
    %s272 = sphi 0, %s272
    %s274 = sphi 0, %s272
    %s275 = sphi 0, %s274
    %s289 = sphi 0, %s275
    %s293 = sphi 0, %s293
    %s295 = sphi 0, %s293
    %s296 = sphi 0, %s295
    %s310 = sphi 0, %s296
    %s314 = sphi 0, %s314
    %s316 = sphi 0, %s314
    %s317 = sphi 0, %s316
    %s331 = sphi 0, %s317
    %s335 = sphi 0, %s335
    %s337 = sphi 0, %s335
    %s338 = sphi 0, %s337
    %s352 = sphi 0, %s338
    %s356 = sphi 0, %s356
    %s358 = sphi 0, %s356
    %s359 = sphi 0, %s358
    %s373 = sphi 0, %s359
    %s377 = sphi 0, %s377
    %s379 = sphi 0, %s377
    %s380 = sphi 0, %s379
    %s394 = sphi 0, %s380
    %s400 = sphi 0, %s402
    %s403 = sphi 0, %s400
    %s404 = sphi 0, %s403
    %s420 = sphi 0, %s404
  $region4: #{audio_captioning_forward.9} parent=0 // loop_header_branch
    %26 = sbr.rel (%p24) target = $region8
  $region5: #{audio_captioning_forward.9} parent=0 // loop_body
    %s28 = ssub.s32 %s23, 1
    %s29 = ssub.s32 %s23, 2
    %s30 = sadd.s32 %s23, 1
    %s31 = ssub.s32 %s23, %s30
    %p32 = scmp.eq.s32.totalorder %s31, 0
    %s34 = sadd.s32 %s33, 1
    %s35 = scalar_select %p32, %s33, %s34
    %p38 = pneg %p32
    %p39 = scmp.eq.s32.totalorder %s23, 1
    %p40 = por %p38, %p39
    %p41 = scmp.ne.s32.totalorder %s33, %s36
    %p42 = scmp.eq.s32.totalorder %s23, 0
    %p43 = por %p41, %p42
    %p44 = scmp.ne.s32.totalorder %s33, %s36
    %p45 = scmp.eq.s32.totalorder %s28, 1
    %p46 = por %p44, %p45
    %p47 = scmp.ne.s32.totalorder %s36, %s37
    %p48 = scmp.eq.s32.totalorder %s28, 0
    %p49 = por %p47, %p48
    %p50 = scmp.ne.s32.totalorder %s36, %s37
    %p51 = scmp.eq.s32.totalorder %s29, 1
    %p52 = por %p50, %p51
    %p54 = scmp.ne.s32.totalorder %s37, %s53
    %p55 = scmp.eq.s32.totalorder %s29, 0
    %p56 = por %p54, %p55
    %s57 = ssub.s32 %s23, %s30
    %p58 = scmp.eq.s32.totalorder %s57, 0
    %s60 = sadd.s32 %s59, 1
    %s61 = scalar_select %p58, %s59, %s60
    %p64 = pneg %p58
    %p65 = scmp.eq.s32.totalorder %s23, 1
    %p66 = por %p64, %p65
    %p67 = scmp.ne.s32.totalorder %s59, %s62
    %p68 = scmp.eq.s32.totalorder %s23, 0
    %p69 = por %p67, %p68
    %p70 = scmp.ne.s32.totalorder %s59, %s62
    %p71 = scmp.eq.s32.totalorder %s28, 1
    %p72 = por %p70, %p71
    %p73 = scmp.ne.s32.totalorder %s62, %s63
    %p74 = scmp.eq.s32.totalorder %s28, 0
    %p75 = por %p73, %p74
    %p76 = scmp.ne.s32.totalorder %s62, %s63
    %p77 = scmp.eq.s32.totalorder %s29, 1
    %p78 = por %p76, %p77
    %p80 = scmp.ne.s32.totalorder %s63, %s79
    %p81 = scmp.eq.s32.totalorder %s29, 0
    %p82 = por %p80, %p81
    %s84 = sadd.s32 %s83, 1
    %p87 = scmp.eq.s32.totalorder %s23, 1
    %p88 = scmp.ne.s32.totalorder %s83, %s85
    %p89 = scmp.eq.s32.totalorder %s23, 0
    %p90 = por %p88, %p89
    %p91 = scmp.ne.s32.totalorder %s83, %s85
    %p92 = scmp.eq.s32.totalorder %s28, 1
    %p93 = por %p91, %p92
    %p94 = scmp.ne.s32.totalorder %s85, %s86
    %p95 = scmp.eq.s32.totalorder %s28, 0
    %p96 = por %p94, %p95
    %p97 = scmp.ne.s32.totalorder %s85, %s86
    %p98 = scmp.eq.s32.totalorder %s29, 1
    %p99 = por %p97, %p98
    %p101 = scmp.ne.s32.totalorder %s86, %s100
    %p102 = scmp.eq.s32.totalorder %s29, 0
    %p103 = por %p101, %p102
    %s105 = sadd.s32 %s104, 1
    %p108 = scmp.eq.s32.totalorder %s23, 1
    %p109 = scmp.ne.s32.totalorder %s104, %s106
    %p110 = scmp.eq.s32.totalorder %s23, 0
    %p111 = por %p109, %p110
    %p112 = scmp.ne.s32.totalorder %s104, %s106
    %p113 = scmp.eq.s32.totalorder %s28, 1
    %p114 = por %p112, %p113
    %p115 = scmp.ne.s32.totalorder %s106, %s107
    %p116 = scmp.eq.s32.totalorder %s28, 0
    %p117 = por %p115, %p116
    %p118 = scmp.ne.s32.totalorder %s106, %s107
    %p119 = scmp.eq.s32.totalorder %s29, 1
    %p120 = por %p118, %p119
    %p122 = scmp.ne.s32.totalorder %s107, %s121
    %p123 = scmp.eq.s32.totalorder %s29, 0
    %p124 = por %p122, %p123
    %s126 = sadd.s32 %s125, 1
    %p129 = scmp.eq.s32.totalorder %s23, 1
    %p130 = scmp.ne.s32.totalorder %s125, %s127
    %p131 = scmp.eq.s32.totalorder %s23, 0
    %p132 = por %p130, %p131
    %p133 = scmp.ne.s32.totalorder %s125, %s127
    %p134 = scmp.eq.s32.totalorder %s28, 1
    %p135 = por %p133, %p134
    %p136 = scmp.ne.s32.totalorder %s127, %s128
    %p137 = scmp.eq.s32.totalorder %s28, 0
    %p138 = por %p136, %p137
    %p139 = scmp.ne.s32.totalorder %s127, %s128
    %p140 = scmp.eq.s32.totalorder %s29, 1
    %p141 = por %p139, %p140
    %p143 = scmp.ne.s32.totalorder %s128, %s142
    %p144 = scmp.eq.s32.totalorder %s29, 0
    %p145 = por %p143, %p144
    %s147 = sadd.s32 %s146, 1
    %p150 = scmp.eq.s32.totalorder %s23, 1
    %p151 = scmp.ne.s32.totalorder %s146, %s148
    %p152 = scmp.eq.s32.totalorder %s23, 0
    %p153 = por %p151, %p152
    %p154 = scmp.ne.s32.totalorder %s146, %s148
    %p155 = scmp.eq.s32.totalorder %s28, 1
    %p156 = por %p154, %p155
    %p157 = scmp.ne.s32.totalorder %s148, %s149
    %p158 = scmp.eq.s32.totalorder %s28, 0
    %p159 = por %p157, %p158
    %p160 = scmp.ne.s32.totalorder %s148, %s149
    %p161 = scmp.eq.s32.totalorder %s29, 1
    %p162 = por %p160, %p161
    %p164 = scmp.ne.s32.totalorder %s149, %s163
    %p165 = scmp.eq.s32.totalorder %s29, 0
    %p166 = por %p164, %p165
    %s168 = sadd.s32 %s167, 1
    %p171 = scmp.eq.s32.totalorder %s23, 1
    %p172 = scmp.ne.s32.totalorder %s167, %s169
    %p173 = scmp.eq.s32.totalorder %s23, 0
    %p174 = por %p172, %p173
    %p175 = scmp.ne.s32.totalorder %s167, %s169
    %p176 = scmp.eq.s32.totalorder %s28, 1
    %p177 = por %p175, %p176
    %p178 = scmp.ne.s32.totalorder %s169, %s170
    %p179 = scmp.eq.s32.totalorder %s28, 0
    %p180 = por %p178, %p179
    %p181 = scmp.ne.s32.totalorder %s169, %s170
    %p182 = scmp.eq.s32.totalorder %s29, 1
    %p183 = por %p181, %p182
    %p185 = scmp.ne.s32.totalorder %s170, %s184
    %p186 = scmp.eq.s32.totalorder %s29, 0
    %p187 = por %p185, %p186
    %s189 = sadd.s32 %s188, 1
    %p192 = scmp.eq.s32.totalorder %s23, 1
    %p193 = scmp.ne.s32.totalorder %s188, %s190
    %p194 = scmp.eq.s32.totalorder %s23, 0
    %p195 = por %p193, %p194
    %p196 = scmp.ne.s32.totalorder %s188, %s190
    %p197 = scmp.eq.s32.totalorder %s28, 1
    %p198 = por %p196, %p197
    %p199 = scmp.ne.s32.totalorder %s190, %s191
    %p200 = scmp.eq.s32.totalorder %s28, 0
    %p201 = por %p199, %p200
    %p202 = scmp.ne.s32.totalorder %s190, %s191
    %p203 = scmp.eq.s32.totalorder %s29, 1
    %p204 = por %p202, %p203
    %p206 = scmp.ne.s32.totalorder %s191, %s205
    %p207 = scmp.eq.s32.totalorder %s29, 0
    %p208 = por %p206, %p207
    %s210 = sadd.s32 %s209, 1
    %p213 = scmp.eq.s32.totalorder %s23, 1
    %p214 = scmp.ne.s32.totalorder %s209, %s211
    %p215 = scmp.eq.s32.totalorder %s23, 0
    %p216 = por %p214, %p215
    %p217 = scmp.ne.s32.totalorder %s209, %s211
    %p218 = scmp.eq.s32.totalorder %s28, 1
    %p219 = por %p217, %p218
    %p220 = scmp.ne.s32.totalorder %s211, %s212
    %p221 = scmp.eq.s32.totalorder %s28, 0
    %p222 = por %p220, %p221
    %p223 = scmp.ne.s32.totalorder %s211, %s212
    %p224 = scmp.eq.s32.totalorder %s29, 1
    %p225 = por %p223, %p224
    %p227 = scmp.ne.s32.totalorder %s212, %s226
    %p228 = scmp.eq.s32.totalorder %s29, 0
    %p229 = por %p227, %p228
    %s231 = sadd.s32 %s230, 1
    %p234 = scmp.eq.s32.totalorder %s23, 1
    %p235 = scmp.ne.s32.totalorder %s230, %s232
    %p236 = scmp.eq.s32.totalorder %s23, 0
    %p237 = por %p235, %p236
    %p238 = scmp.ne.s32.totalorder %s230, %s232
    %p239 = scmp.eq.s32.totalorder %s28, 1
    %p240 = por %p238, %p239
    %p241 = scmp.ne.s32.totalorder %s232, %s233
    %p242 = scmp.eq.s32.totalorder %s28, 0
    %p243 = por %p241, %p242
    %p244 = scmp.ne.s32.totalorder %s232, %s233
    %p245 = scmp.eq.s32.totalorder %s29, 1
    %p246 = por %p244, %p245
    %p248 = scmp.ne.s32.totalorder %s233, %s247
    %p249 = scmp.eq.s32.totalorder %s29, 0
    %p250 = por %p248, %p249
    %s252 = sadd.s32 %s251, 1
    %p255 = scmp.eq.s32.totalorder %s23, 1
    %p256 = scmp.ne.s32.totalorder %s251, %s253
    %p257 = scmp.eq.s32.totalorder %s23, 0
    %p258 = por %p256, %p257
    %p259 = scmp.ne.s32.totalorder %s251, %s253
    %p260 = scmp.eq.s32.totalorder %s28, 1
    %p261 = por %p259, %p260
    %p262 = scmp.ne.s32.totalorder %s253, %s254
    %p263 = scmp.eq.s32.totalorder %s28, 0
    %p264 = por %p262, %p263
    %p265 = scmp.ne.s32.totalorder %s253, %s254
    %p266 = scmp.eq.s32.totalorder %s29, 1
    %p267 = por %p265, %p266
    %p269 = scmp.ne.s32.totalorder %s254, %s268
    %p270 = scmp.eq.s32.totalorder %s29, 0
    %p271 = por %p269, %p270
    %s273 = sadd.s32 %s272, 1
    %p276 = scmp.eq.s32.totalorder %s23, 1
    %p277 = scmp.ne.s32.totalorder %s272, %s274
    %p278 = scmp.eq.s32.totalorder %s23, 0
    %p279 = por %p277, %p278
    %p280 = scmp.ne.s32.totalorder %s272, %s274
    %p281 = scmp.eq.s32.totalorder %s28, 1
    %p282 = por %p280, %p281
    %p283 = scmp.ne.s32.totalorder %s274, %s275
    %p284 = scmp.eq.s32.totalorder %s28, 0
    %p285 = por %p283, %p284
    %p286 = scmp.ne.s32.totalorder %s274, %s275
    %p287 = scmp.eq.s32.totalorder %s29, 1
    %p288 = por %p286, %p287
    %p290 = scmp.ne.s32.totalorder %s275, %s289
    %p291 = scmp.eq.s32.totalorder %s29, 0
    %p292 = por %p290, %p291
    %s294 = sadd.s32 %s293, 1
    %p297 = scmp.eq.s32.totalorder %s23, 1
    %p298 = scmp.ne.s32.totalorder %s293, %s295
    %p299 = scmp.eq.s32.totalorder %s23, 0
    %p300 = por %p298, %p299
    %p301 = scmp.ne.s32.totalorder %s293, %s295
    %p302 = scmp.eq.s32.totalorder %s28, 1
    %p303 = por %p301, %p302
    %p304 = scmp.ne.s32.totalorder %s295, %s296
    %p305 = scmp.eq.s32.totalorder %s28, 0
    %p306 = por %p304, %p305
    %p307 = scmp.ne.s32.totalorder %s295, %s296
    %p308 = scmp.eq.s32.totalorder %s29, 1
    %p309 = por %p307, %p308
    %p311 = scmp.ne.s32.totalorder %s296, %s310
    %p312 = scmp.eq.s32.totalorder %s29, 0
    %p313 = por %p311, %p312
    %s315 = sadd.s32 %s314, 1
    %p318 = scmp.eq.s32.totalorder %s23, 1
    %p319 = scmp.ne.s32.totalorder %s314, %s316
    %p320 = scmp.eq.s32.totalorder %s23, 0
    %p321 = por %p319, %p320
    %p322 = scmp.ne.s32.totalorder %s314, %s316
    %p323 = scmp.eq.s32.totalorder %s28, 1
    %p324 = por %p322, %p323
    %p325 = scmp.ne.s32.totalorder %s316, %s317
    %p326 = scmp.eq.s32.totalorder %s28, 0
    %p327 = por %p325, %p326
    %p328 = scmp.ne.s32.totalorder %s316, %s317
    %p329 = scmp.eq.s32.totalorder %s29, 1
    %p330 = por %p328, %p329
    %p332 = scmp.ne.s32.totalorder %s317, %s331
    %p333 = scmp.eq.s32.totalorder %s29, 0
    %p334 = por %p332, %p333
    %s336 = sadd.s32 %s335, 1
    %p339 = scmp.eq.s32.totalorder %s23, 1
    %p340 = scmp.ne.s32.totalorder %s335, %s337
    %p341 = scmp.eq.s32.totalorder %s23, 0
    %p342 = por %p340, %p341
    %p343 = scmp.ne.s32.totalorder %s335, %s337
    %p344 = scmp.eq.s32.totalorder %s28, 1
    %p345 = por %p343, %p344
    %p346 = scmp.ne.s32.totalorder %s337, %s338
    %p347 = scmp.eq.s32.totalorder %s28, 0
    %p348 = por %p346, %p347
    %p349 = scmp.ne.s32.totalorder %s337, %s338
    %p350 = scmp.eq.s32.totalorder %s29, 1
    %p351 = por %p349, %p350
    %p353 = scmp.ne.s32.totalorder %s338, %s352
    %p354 = scmp.eq.s32.totalorder %s29, 0
    %p355 = por %p353, %p354
    %s357 = sadd.s32 %s356, 1
    %p360 = scmp.eq.s32.totalorder %s23, 1
    %p361 = scmp.ne.s32.totalorder %s356, %s358
    %p362 = scmp.eq.s32.totalorder %s23, 0
    %p363 = por %p361, %p362
    %p364 = scmp.ne.s32.totalorder %s356, %s358
    %p365 = scmp.eq.s32.totalorder %s28, 1
    %p366 = por %p364, %p365
    %p367 = scmp.ne.s32.totalorder %s358, %s359
    %p368 = scmp.eq.s32.totalorder %s28, 0
    %p369 = por %p367, %p368
    %p370 = scmp.ne.s32.totalorder %s358, %s359
    %p371 = scmp.eq.s32.totalorder %s29, 1
    %p372 = por %p370, %p371
    %p374 = scmp.ne.s32.totalorder %s359, %s373
    %p375 = scmp.eq.s32.totalorder %s29, 0
    %p376 = por %p374, %p375
    %s378 = sadd.s32 %s377, 1
    %p381 = scmp.eq.s32.totalorder %s23, 1
    %p382 = scmp.ne.s32.totalorder %s377, %s379
    %p383 = scmp.eq.s32.totalorder %s23, 0
    %p384 = por %p382, %p383
    %p385 = scmp.ne.s32.totalorder %s377, %s379
    %p386 = scmp.eq.s32.totalorder %s28, 1
    %p387 = por %p385, %p386
    %p388 = scmp.ne.s32.totalorder %s379, %s380
    %p389 = scmp.eq.s32.totalorder %s28, 0
    %p390 = por %p388, %p389
    %p391 = scmp.ne.s32.totalorder %s379, %s380
    %p392 = scmp.eq.s32.totalorder %s29, 1
    %p393 = por %p391, %p392
    %p395 = scmp.ne.s32.totalorder %s380, %s394
    %p396 = scmp.eq.s32.totalorder %s29, 0
    %p397 = por %p395, %p396
    %s398 = ssub.s32 %s23, %s30
    %p399 = scmp.eq.s32.totalorder %s398, 0
    %s401 = sadd.s32 %s400, 1
    %s402 = scalar_select %p399, %s400, %s401
    %p405 = pneg %p399
    %p406 = scmp.eq.s32.totalorder %s23, 1
    %p407 = por %p405, %p406
    %p408 = scmp.ne.s32.totalorder %s400, %s403
    %p409 = scmp.eq.s32.totalorder %s23, 0
    %p410 = por %p408, %p409
    %p411 = scmp.ne.s32.totalorder %s400, %s403
    %p412 = scmp.eq.s32.totalorder %s28, 1
    %p413 = por %p411, %p412
    %p414 = scmp.ne.s32.totalorder %s403, %s404
    %p415 = scmp.eq.s32.totalorder %s28, 0
    %p416 = por %p414, %p415
    %p417 = scmp.ne.s32.totalorder %s403, %s404
    %p418 = scmp.eq.s32.totalorder %s29, 1
    %p419 = por %p417, %p418
    %p421 = scmp.ne.s32.totalorder %s404, %s420
    %p422 = scmp.eq.s32.totalorder %s29, 0
    %p423 = por %p421, %p422
    %p424 = scmp.le.s32.totalorder 1, %s23
    %p425 = scmp.lt.s32.totalorder %s23, 3
    %p426 = pnand %p424, %p425
    %p427 = pneg %p426
    // Predicated region
    $region9: #{audio_captioning_forward.9} parent=5 // pred_check
      _
    $region10: #{audio_captioning_forward.9} parent=5 // pred_check_branch
      %429 = sbr.rel (%p426) target = $region12
    $region11: #{audio_captioning_forward.9} parent=5 // pred_region
      %s430 = ssub.s32 %s23, 1
      // Predicated region
      $region13: #{audio_captioning_forward.9} parent=11 // pred_check
        %p431 = pneg %p96
      $region14: #{audio_captioning_forward.9} parent=11 // pred_check_branch
        %433 = sbr.rel (%p431) target = $region16
      $region15: #{audio_captioning_forward.9} parent=11 // pred_region
        _
      $region16: #{audio_captioning_forward.9} parent=11 // pred_fallthru
        _
      // Predicated region
      $region17: #{audio_captioning_forward.9} parent=11 // pred_check
        %p434 = pneg %p117
      $region18: #{audio_captioning_forward.9} parent=11 // pred_check_branch
        %436 = sbr.rel (%p434) target = $region20
      $region19: #{audio_captioning_forward.9} parent=11 // pred_region
        _
      $region20: #{audio_captioning_forward.9} parent=11 // pred_fallthru
        _
      // Predicated region
      $region21: #{audio_captioning_forward.9} parent=11 // pred_check
        %p437 = pneg %p138
      $region22: #{audio_captioning_forward.9} parent=11 // pred_check_branch
        %439 = sbr.rel (%p437) target = $region24
      $region23: #{audio_captioning_forward.9} parent=11 // pred_region
        _
      $region24: #{audio_captioning_forward.9} parent=11 // pred_fallthru
        _
      // Predicated region
      $region25: #{audio_captioning_forward.9} parent=11 // pred_check
        %p440 = pneg %p159
      $region26: #{audio_captioning_forward.9} parent=11 // pred_check_branch
        %442 = sbr.rel (%p440) target = $region28
      $region27: #{audio_captioning_forward.9} parent=11 // pred_region
        _
      $region28: #{audio_captioning_forward.9} parent=11 // pred_fallthru
        _
      // Predicated region
      $region29: #{audio_captioning_forward.9} parent=11 // pred_check
        %p443 = pneg %p180
      $region30: #{audio_captioning_forward.9} parent=11 // pred_check_branch
        %445 = sbr.rel (%p443) target = $region32
      $region31: #{audio_captioning_forward.9} parent=11 // pred_region
        _
      $region32: #{audio_captioning_forward.9} parent=11 // pred_fallthru
        _
      // Predicated region
      $region33: #{audio_captioning_forward.9} parent=11 // pred_check
        %p446 = pneg %p201
      $region34: #{audio_captioning_forward.9} parent=11 // pred_check_branch
        %448 = sbr.rel (%p446) target = $region36
      $region35: #{audio_captioning_forward.9} parent=11 // pred_region
        _
      $region36: #{audio_captioning_forward.9} parent=11 // pred_fallthru
        _
      // Predicated region
      $region37: #{audio_captioning_forward.9} parent=11 // pred_check
        %p449 = pneg %p222
      $region38: #{audio_captioning_forward.9} parent=11 // pred_check_branch
        %451 = sbr.rel (%p449) target = $region40
      $region39: #{audio_captioning_forward.9} parent=11 // pred_region
        _
      $region40: #{audio_captioning_forward.9} parent=11 // pred_fallthru
        _
      // Predicated region
      $region41: #{audio_captioning_forward.9} parent=11 // pred_check
        %p452 = pneg %p243
      $region42: #{audio_captioning_forward.9} parent=11 // pred_check_branch
        %454 = sbr.rel (%p452) target = $region44
      $region43: #{audio_captioning_forward.9} parent=11 // pred_region
        _
      $region44: #{audio_captioning_forward.9} parent=11 // pred_fallthru
        _
      // Predicated region
      $region45: #{audio_captioning_forward.9} parent=11 // pred_check
        %p455 = pneg %p264
      $region46: #{audio_captioning_forward.9} parent=11 // pred_check_branch
        %457 = sbr.rel (%p455) target = $region48
      $region47: #{audio_captioning_forward.9} parent=11 // pred_region
        _
      $region48: #{audio_captioning_forward.9} parent=11 // pred_fallthru
        _
      // Predicated region
      $region49: #{audio_captioning_forward.9} parent=11 // pred_check
        %p458 = pneg %p285
      $region50: #{audio_captioning_forward.9} parent=11 // pred_check_branch
        %460 = sbr.rel (%p458) target = $region52
      $region51: #{audio_captioning_forward.9} parent=11 // pred_region
        _
      $region52: #{audio_captioning_forward.9} parent=11 // pred_fallthru
        _
      // Predicated region
      $region53: #{audio_captioning_forward.9} parent=11 // pred_check
        %p461 = pneg %p306
      $region54: #{audio_captioning_forward.9} parent=11 // pred_check_branch
        %463 = sbr.rel (%p461) target = $region56
      $region55: #{audio_captioning_forward.9} parent=11 // pred_region
        _
      $region56: #{audio_captioning_forward.9} parent=11 // pred_fallthru
        _
      // Predicated region
      $region57: #{audio_captioning_forward.9} parent=11 // pred_check
        %p464 = pneg %p327
      $region58: #{audio_captioning_forward.9} parent=11 // pred_check_branch
        %466 = sbr.rel (%p464) target = $region60
      $region59: #{audio_captioning_forward.9} parent=11 // pred_region
        _
      $region60: #{audio_captioning_forward.9} parent=11 // pred_fallthru
        _
      // Predicated region
      $region61: #{audio_captioning_forward.9} parent=11 // pred_check
        %p467 = pneg %p348
      $region62: #{audio_captioning_forward.9} parent=11 // pred_check_branch
        %469 = sbr.rel (%p467) target = $region64
      $region63: #{audio_captioning_forward.9} parent=11 // pred_region
        _
      $region64: #{audio_captioning_forward.9} parent=11 // pred_fallthru
        _
      // Predicated region
      $region65: #{audio_captioning_forward.9} parent=11 // pred_check
        %p470 = pneg %p369
      $region66: #{audio_captioning_forward.9} parent=11 // pred_check_branch
        %472 = sbr.rel (%p470) target = $region68
      $region67: #{audio_captioning_forward.9} parent=11 // pred_region
        _
      $region68: #{audio_captioning_forward.9} parent=11 // pred_fallthru
        _
      // Predicated region
      $region69: #{audio_captioning_forward.9} parent=11 // pred_check
        %p473 = pneg %p390
      $region70: #{audio_captioning_forward.9} parent=11 // pred_check_branch
        %475 = sbr.rel (%p473) target = $region72
      $region71: #{audio_captioning_forward.9} parent=11 // pred_region
        _
      $region72: #{audio_captioning_forward.9} parent=11 // pred_fallthru
        _
    $region12: #{audio_captioning_forward.9} parent=5 // pred_fallthru
      _
    %p476 = scmp.lt.s32.totalorder %s23, 2
    // Predicated region
    $region73: #{audio_captioning_forward.9} parent=5 // pred_check
      %p477 = pneg %p476
    $region74: #{audio_captioning_forward.9} parent=5 // pred_check_branch
      %479 = sbr.rel (%p477) target = $region76
    $region75: #{audio_captioning_forward.9} parent=5 // pred_region
      // Predicated region
      $region77: #{audio_captioning_forward.9} parent=75 // pred_check
        %p480 = pneg %p43
      $region78: #{audio_captioning_forward.9} parent=75 // pred_check_branch
        %482 = sbr.rel (%p480) target = $region80
      $region79: #{audio_captioning_forward.9} parent=75 // pred_region
        %p483 = scmp.lt.s32.totalorder %s23, 1
        %s484 = scalar_select %p483, %s23, 1
        %s485 = smul.addr %s484, 8
        %s486 = scalar_lea.vmem %s0, %s485
      $region80: #{audio_captioning_forward.9} parent=75 // pred_fallthru
        _
      // Predicated region
      $region81: #{audio_captioning_forward.9} parent=75 // pred_check
        %p487 = pneg %p69
      $region82: #{audio_captioning_forward.9} parent=75 // pred_check_branch
        %489 = sbr.rel (%p487) target = $region84
      $region83: #{audio_captioning_forward.9} parent=75 // pred_region
        %p490 = scmp.lt.s32.totalorder %s23, 1
        %s491 = scalar_select %p490, %s23, 1
        %s492 = smul.addr %s491, 2
        %s493 = smul.addr %s492, 8
        %s494 = scalar_lea.vmem %s1, %s493
      $region84: #{audio_captioning_forward.9} parent=75 // pred_fallthru
        _
    $region76: #{audio_captioning_forward.9} parent=5 // pred_fallthru
      _
    %p495 = scmp.le.s32.totalorder 1, %s23
    %p496 = scmp.lt.s32.totalorder %s23, 3
    %p497 = pnand %p495, %p496
    %p498 = pneg %p497
    // Predicated region
    $region85: #{audio_captioning_forward.9} parent=5 // pred_check
      _
    $region86: #{audio_captioning_forward.9} parent=5 // pred_check_branch
      %500 = sbr.rel (%p497) target = $region88
    $region87: #{audio_captioning_forward.9} parent=5 // pred_region
      %s501 = ssub.s32 %s23, 1
      %p502 = scmp.lt.s32.totalorder %s28, 1
      %s503 = scalar_select %p502, %s28, 1
      %s504 = smul.addr %s503, 8
      %s505 = scalar_lea.vmem %s0, %s504
      %p506 = pneg %p49
      %p507 = pneg %p46
      %p508 = scmp.lt.s32.totalorder %s28, 1
      %s509 = scalar_select %p508, %s28, 1
      %s510 = smul.addr %s509, 2
      %s511 = smul.addr %s510, 8
      %s512 = scalar_lea.vmem %s1, %s511
      %p513 = pneg %p75
      %p514 = pneg %p72
      %p515 = pneg %p96
      %p516 = pneg %p93
      %p517 = pneg %p117
      %p518 = pneg %p114
      %p519 = pneg %p138
      %p520 = pneg %p135
      %p521 = pneg %p159
      %p522 = pneg %p156
      %p523 = pneg %p180
      %p524 = pneg %p177
      %p525 = pneg %p201
      %p526 = pneg %p198
      %p527 = pneg %p222
      %p528 = pneg %p219
      %p529 = pneg %p243
      %p530 = pneg %p240
      %p531 = pneg %p264
      %p532 = pneg %p261
      %p533 = pneg %p285
      %p534 = pneg %p282
      %p535 = pneg %p306
      %p536 = pneg %p303
      %p537 = pneg %p327
      %p538 = pneg %p324
      %p539 = pneg %p348
      %p540 = pneg %p345
      %p541 = pneg %p369
      %p542 = pneg %p366
      %p543 = pneg %p390
      %p544 = pneg %p387
      %p545 = pneg %p416
      %p546 = pneg %p413
      %p547 = scmp.lt.s32.totalorder %s28, 1
      %s548 = scalar_select %p547, %s28, 1
      %s549 = smul.addr %s548, 8
      %s550 = scalar_lea.vmem %s17, %s549
      %p551 = scmp.lt.s32.totalorder %s28, 1
      %s552 = scalar_select %p551, %s28, 1
      %s553 = smul.addr %s552, 8
      %s554 = scalar_lea.vmem %s0, %s553
      %p555 = scmp.lt.s32.totalorder %s28, 1
      %s556 = scalar_select %p555, %s28, 1
      %s557 = smul.addr %s556, 2
      %s558 = smul.addr %s557, 8
      %s559 = scalar_lea.vmem %s1, %s558
      %p560 = scmp.lt.s32.totalorder %s28, 1
      %s561 = scalar_select %p560, %s28, 1
      %s562 = smul.addr %s561, 8
      %s563 = scalar_lea.vmem %s17, %s562
      %v565 = vld [vmem:[%s554] sm:$0xff]
      %v566 = vld [vmem:[%s559] sm:$0xff]
      %v567 = vld [vmem:[%s559 + $0x8] sm:$0xff]
      %v568 = vld [vmem:[%s2] sm:$0xf]
      %v569 = vld [vmem:[%s2 + $0x4] sm:$0xf]
      %v570 = vld [vmem:[%s2 + $0x8] sm:$0xf]
      %v571 = vld [vmem:[%s2 + $0xc] sm:$0xf]
      %v572 = vld [vmem:[%s2 + $0x10] sm:$0xf]
      %v573 = vld [vmem:[%s2 + $0x14] sm:$0xf]
      %v574 = vld [vmem:[%s2 + $0x18] sm:$0xf]
      %v575 = vld [vmem:[%s2 + $0x1c] sm:$0xf]
      %v576 = vld [vmem:[%s2 + $0x20] sm:$0xf]
      %v577 = vld [vmem:[%s2 + $0x24] sm:$0xf]
      %v578 = vld [vmem:[%s2 + $0x28] sm:$0xf]
      %v579 = vld [vmem:[%s2 + $0x2c] sm:$0xf]
      %v580 = vpack.c.bf16 %v565, %v565
      %v581 = vld [vmem:[%s3] sm:$0xff]
      %v582 = vld [vmem:[%s3 + $0x8] sm:$0xff]
      %v583 = vld [vmem:[%s3 + $0x10] sm:$0xff]
      %v584 = vld [vmem:[%s3 + $0x18] sm:$0xff]
      %v585 = vld [vmem:[%s3 + $0x20] sm:$0xff]
      %v586 = vld [vmem:[%s3 + $0x28] sm:$0xff]
      %v587 = vld [vmem:[%s3 + $0x30] sm:$0xff]
      %v588 = vld [vmem:[%s3 + $0x38] sm:$0xff]
      %v589 = vld [vmem:[%s3 + $0x40] sm:$0xff]
      %v590 = vld [vmem:[%s3 + $0x48] sm:$0xff]
      %v591 = vld [vmem:[%s3 + $0x50] sm:$0xff]
      %v592 = vld [vmem:[%s3 + $0x58] sm:$0xff]
      %594 = vset.pattern.permute.xlu0 0
      %595 = vperm.xlu0 %594, %v581
      %v596 = vpop.permute.xlu0 %595
      %599 = vset.pattern.permute.xlu0 0
      %600 = vperm.xlu0 %599, %v582
      %v601 = vpop.permute.xlu0 %600
      %604 = vset.pattern.permute.xlu0 0
      %605 = vperm.xlu0 %604, %v583
      %v606 = vpop.permute.xlu0 %605
      %609 = vset.pattern.permute.xlu0 0
      %610 = vperm.xlu0 %609, %v584
      %v611 = vpop.permute.xlu0 %610
      %614 = vset.pattern.permute.xlu0 0
      %615 = vperm.xlu0 %614, %v585
      %v616 = vpop.permute.xlu0 %615
      %619 = vset.pattern.permute.xlu0 0
      %620 = vperm.xlu0 %619, %v586
      %v621 = vpop.permute.xlu0 %620
      %624 = vset.pattern.permute.xlu0 0
      %625 = vperm.xlu0 %624, %v587
      %v626 = vpop.permute.xlu0 %625
      %629 = vset.pattern.permute.xlu0 0
      %630 = vperm.xlu0 %629, %v588
      %v631 = vpop.permute.xlu0 %630
      %634 = vset.pattern.permute.xlu0 0
      %635 = vperm.xlu0 %634, %v589
      %v636 = vpop.permute.xlu0 %635
      %639 = vset.pattern.permute.xlu0 0
      %640 = vperm.xlu0 %639, %v590
      %v641 = vpop.permute.xlu0 %640
      %644 = vset.pattern.permute.xlu0 0
      %645 = vperm.xlu0 %644, %v591
      %v646 = vpop.permute.xlu0 %645
      %649 = vset.pattern.permute.xlu0 0
      %650 = vperm.xlu0 %649, %v592
      %v651 = vpop.permute.xlu0 %650
      %v665 = vunpack.c.l.b16 %v568
      %v666 = vunpack.c.l.b16 %v569
      %v667 = vunpack.c.l.b16 %v570
      %v668 = vunpack.c.l.b16 %v571
      %v669 = vunpack.c.l.b16 %v572
      %v670 = vunpack.c.l.b16 %v573
      %v671 = vunpack.c.l.b16 %v574
      %v672 = vunpack.c.l.b16 %v575
      %v673 = vunpack.c.l.b16 %v576
      %v674 = vunpack.c.l.b16 %v577
      %v675 = vunpack.c.l.b16 %v578
      %v676 = vunpack.c.l.b16 %v579
      %v677 = vpack.c.b16 %v666, %v665
      %v678 = vpack.c.b16 %v668, %v667
      %v679 = vpack.c.b16 %v670, %v669
      %v680 = vpack.c.b16 %v672, %v671
      %v681 = vpack.c.b16 %v674, %v673
      %v682 = vpack.c.b16 %v676, %v675
      %vm683 = vcmask 261120
      %v685 = vsel %vm683, %v677, 0
      %v688 = vsel %vm683, %v678, 0
      %v691 = vsel %vm683, %v679, 0
      %v694 = vsel %vm683, %v680, 0
      %v697 = vsel %vm683, %v681, 0
      %v700 = vsel %vm683, %v682, 0
      %v703 = vsel %vm683, %v580, 0
      %705 = vmatpush.bf16.xpose.msra.mxu0 0
      %706 = vmatpush.bf16.xpose.msra.mxu0 0
      %707 = vmatpush.bf16.xpose.msra.mxu0 0
      %708 = vmatpush.bf16.xpose.msra.mxu0 0
      %709 = vmatpush.bf16.xpose.msra.mxu0 0
      %710 = vmatpush.bf16.xpose.msra.mxu0 0
      %711 = vmatpush.bf16.xpose.msra.mxu0 0
      %712 = vmatpush.bf16.xpose.msra.mxu0 %v703
      %713 = vmatmul.bf16.gmra.mxu0 %v685
      %v714 = vpop.f32.mrf.mxu0
      %v715 = vadd.f32 %v596, %v714
      %v716 = vpop.f32.mrf.mxu0
      %v717 = vadd.f32 %v601, %v716
      %718 = vmatmul.bf16.gmra.mxu0 %v688
      %v719 = vpop.f32.mrf.mxu0
      %v720 = vadd.f32 %v606, %v719
      %v721 = vpop.f32.mrf.mxu0
      %v722 = vadd.f32 %v611, %v721
      %723 = vmatmul.bf16.gmra.mxu0 %v691
      %v724 = vpop.f32.mrf.mxu0
      %v725 = vadd.f32 %v616, %v724
      %v726 = vpop.f32.mrf.mxu0
      %v727 = vadd.f32 %v621, %v726
      %728 = vmatmul.bf16.gmra.mxu0 %v694
      %v729 = vpop.f32.mrf.mxu0
      %v730 = vadd.f32 %v626, %v729
      %v731 = vpop.f32.mrf.mxu0
      %v732 = vadd.f32 %v631, %v731
      %733 = vmatmul.bf16.gmra.mxu0 %v697
      %v734 = vpop.f32.mrf.mxu0
      %v735 = vadd.f32 %v636, %v734
      %v736 = vpop.f32.mrf.mxu0
      %v737 = vadd.f32 %v641, %v736
      %738 = vmatmul.bf16.gmra.mxu0 %v700
      %v739 = vpop.f32.mrf.mxu0
      %v740 = vadd.f32 %v646, %v739
      %v741 = vpop.f32.mrf.mxu0
      %v742 = vadd.f32 %v651, %v741
      %743 = vdwg.mxu0
      %v744 = vld [vmem:[%s4] sm:$0xf]
      %v745 = vld [vmem:[%s4 + $0x4] sm:$0xf]
      %v746 = vld [vmem:[%s4 + $0x8] sm:$0xf]
      %v747 = vld [vmem:[%s4 + $0xc] sm:$0xf]
      %v748 = vld [vmem:[%s5] sm:$0x1]
      %v749 = vlaneseq
      %v750 = vshrl.u32 %v749, 7
      %v751 = vlaneseq
      %v752 = vand.u32 %v751, 127
      %vm753 = vcmp.gt.s32.totalorder %v752, %v750
      %v754 = vsel %vm753, -1e+30, 0.0
      %v755 = vpack.c.bf16 %v715, %v715
      %v756 = vpack.c.bf16 %v725, %v725
      %757 = vxpose.xlu0.c.b16.start [1/8] %v755, 128
      %758 = vxpose.xlu0.c.b16.cont [2/8] 0, 128
      %759 = vxpose.xlu0.c.b16.cont [3/8] 0, 128
      %760 = vxpose.xlu0.c.b16.cont [4/8] 0, 128
      %761 = vxpose.xlu0.c.b16.cont [5/8] 0, 128
      %762 = vxpose.xlu0.c.b16.cont [6/8] 0, 128
      %763 = vxpose.xlu0.c.b16.cont [7/8] 0, 128
      %764 = vxpose.xlu0.c.b16.end [8/8] 0, 128
      %v765 = vpop.trf.xlu0
      %v766 = vpop.trf.xlu0
      %v767 = vpop.trf.xlu0
      %v768 = vpop.trf.xlu0
      %v769 = vpop.trf.xlu0
      %v770 = vpop.trf.xlu0
      %v771 = vpop.trf.xlu0
      %v772 = vpop.trf.xlu0
      %vm773 = vcmask 64512
      %v775 = vsel %vm773, %v765, 0
      %vm777 = vcmask 1043456
      %v779 = vsel %vm777, %v756, 0
      %781 = vmatpush.bf16.msra.mxu0 0
      %782 = vmatpush.bf16.msra.mxu0 0
      %783 = vmatpush.bf16.msra.mxu0 0
      %784 = vmatpush.bf16.msra.mxu0 0
      %785 = vmatpush.bf16.msra.mxu0 0
      %786 = vmatpush.bf16.msra.mxu0 0
      %787 = vmatpush.bf16.msra.mxu0 0
      %788 = vmatpush.bf16.msra.mxu0 %v779
      %789 = vmatmul.bf16.gmra.mxu0 %v775
      %v790 = vpop.f32.mrf.mxu0
      %v791 = vadd.f32 %v754, %v790
      %v792 = vpop.f32.mrf.mxu0
      %793 = vdwg.mxu0
      %v794 = vsel %vm773, %v791, -inf
      %795 = vmax.xlane.f32.xlu0 %v794
      %v796 = vpop.xlane.xlu0 %795
      %v797 = vsub.f32 %v791, %v796
      %v798 = vmul.f32 %v797, 1.442695
      %v799 = vpow.pop %v798
      %v800 = vsel %vm773, %v799, 0.0
      %801 = vadd.xlane.f32.xlu0 %v800
      %v802 = vpop.xlane.xlu0 %801
      %v803 = vrcp.pop %v802
      %v804 = vmul.f32 %v799, %v803
      %v805 = vpack.c.bf16 %v735, %v735
      %v806 = vpack.c.bf16 %v804, %v804
      %v808 = vsel %vm773, %v805, 0
      %v811 = vsel %vm773, %v806, 0
      %813 = vmatpush.bf16.xpose.msra.mxu0 0
      %814 = vmatpush.bf16.xpose.msra.mxu0 0
      %815 = vmatpush.bf16.xpose.msra.mxu0 0
      %816 = vmatpush.bf16.xpose.msra.mxu0 0
      %817 = vmatpush.bf16.xpose.msra.mxu0 0
      %818 = vmatpush.bf16.xpose.msra.mxu0 0
      %819 = vmatpush.bf16.xpose.msra.mxu0 0
      %820 = vmatpush.bf16.xpose.msra.mxu0 %v811
      %821 = vmatmul.bf16.gmra.mxu0 %v808
      %v822 = vpop.f32.mrf.mxu0
      %v823 = vadd.f32 0.0, %v822
      %v824 = vpop.f32.mrf.mxu0
      %825 = vdwg.mxu0
      %v826 = vpack.c.bf16 %v717, %v717
      %v827 = vpack.c.bf16 %v727, %v727
      %828 = vxpose.xlu0.c.b16.start [1/8] %v826, 128
      %829 = vxpose.xlu0.c.b16.cont [2/8] 0, 128
      %830 = vxpose.xlu0.c.b16.cont [3/8] 0, 128
      %831 = vxpose.xlu0.c.b16.cont [4/8] 0, 128
      %832 = vxpose.xlu0.c.b16.cont [5/8] 0, 128
      %833 = vxpose.xlu0.c.b16.cont [6/8] 0, 128
      %834 = vxpose.xlu0.c.b16.cont [7/8] 0, 128
      %835 = vxpose.xlu0.c.b16.end [8/8] 0, 128
      %v836 = vpop.trf.xlu0
      %v837 = vpop.trf.xlu0
      %v838 = vpop.trf.xlu0
      %v839 = vpop.trf.xlu0
      %v840 = vpop.trf.xlu0
      %v841 = vpop.trf.xlu0
      %v842 = vpop.trf.xlu0
      %v843 = vpop.trf.xlu0
      %v845 = vsel %vm773, %v836, 0
      %v848 = vsel %vm777, %v827, 0
      %850 = vmatpush.bf16.msra.mxu0 0
      %851 = vmatpush.bf16.msra.mxu0 0
      %852 = vmatpush.bf16.msra.mxu0 0
      %853 = vmatpush.bf16.msra.mxu0 0
      %854 = vmatpush.bf16.msra.mxu0 0
      %855 = vmatpush.bf16.msra.mxu0 0
      %856 = vmatpush.bf16.msra.mxu0 0
      %857 = vmatpush.bf16.msra.mxu0 %v848
      %858 = vmatmul.bf16.gmra.mxu0 %v845
      %v859 = vpop.f32.mrf.mxu0
      %v860 = vadd.f32 %v754, %v859
      %v861 = vpop.f32.mrf.mxu0
      %862 = vdwg.mxu0
      %v863 = vsel %vm773, %v860, -inf
      %864 = vmax.xlane.f32.xlu0 %v863
      %v865 = vpop.xlane.xlu0 %864
      %v866 = vsub.f32 %v860, %v865
      %v867 = vmul.f32 %v866, 1.442695
      %v868 = vpow.pop %v867
      %v869 = vsel %vm773, %v868, 0.0
      %870 = vadd.xlane.f32.xlu0 %v869
      %v871 = vpop.xlane.xlu0 %870
      %v872 = vrcp.pop %v871
      %v873 = vmul.f32 %v868, %v872
      %v874 = vpack.c.bf16 %v737, %v737
      %v875 = vpack.c.bf16 %v873, %v873
      %v877 = vsel %vm773, %v874, 0
      %v880 = vsel %vm773, %v875, 0
      %882 = vmatpush.bf16.xpose.msra.mxu0 0
      %883 = vmatpush.bf16.xpose.msra.mxu0 0
      %884 = vmatpush.bf16.xpose.msra.mxu0 0
      %885 = vmatpush.bf16.xpose.msra.mxu0 0
      %886 = vmatpush.bf16.xpose.msra.mxu0 0
      %887 = vmatpush.bf16.xpose.msra.mxu0 0
      %888 = vmatpush.bf16.xpose.msra.mxu0 0
      %889 = vmatpush.bf16.xpose.msra.mxu0 %v880
      %890 = vmatmul.bf16.gmra.mxu0 %v877
      %v891 = vpop.f32.mrf.mxu0
      %v892 = vadd.f32 0.0, %v891
      %v893 = vpop.f32.mrf.mxu0
      %894 = vdwg.mxu0
      %v895 = vpack.c.bf16 %v720, %v720
      %v896 = vpack.c.bf16 %v730, %v730
      %897 = vxpose.xlu0.c.b16.start [1/8] %v895, 128
      %898 = vxpose.xlu0.c.b16.cont [2/8] 0, 128
      %899 = vxpose.xlu0.c.b16.cont [3/8] 0, 128
      %900 = vxpose.xlu0.c.b16.cont [4/8] 0, 128
      %901 = vxpose.xlu0.c.b16.cont [5/8] 0, 128
      %902 = vxpose.xlu0.c.b16.cont [6/8] 0, 128
      %903 = vxpose.xlu0.c.b16.cont [7/8] 0, 128
      %904 = vxpose.xlu0.c.b16.end [8/8] 0, 128
      %v905 = vpop.trf.xlu0
      %v906 = vpop.trf.xlu0
      %v907 = vpop.trf.xlu0
      %v908 = vpop.trf.xlu0
      %v909 = vpop.trf.xlu0
      %v910 = vpop.trf.xlu0
      %v911 = vpop.trf.xlu0
      %v912 = vpop.trf.xlu0
      %v914 = vsel %vm773, %v905, 0
      %v917 = vsel %vm777, %v896, 0
      %919 = vmatpush.bf16.msra.mxu0 0
      %920 = vmatpush.bf16.msra.mxu0 0
      %921 = vmatpush.bf16.msra.mxu0 0
      %922 = vmatpush.bf16.msra.mxu0 0
      %923 = vmatpush.bf16.msra.mxu0 0
      %924 = vmatpush.bf16.msra.mxu0 0
      %925 = vmatpush.bf16.msra.mxu0 0
      %926 = vmatpush.bf16.msra.mxu0 %v917
      %927 = vmatmul.bf16.gmra.mxu0 %v914
      %v928 = vpop.f32.mrf.mxu0
      %v929 = vadd.f32 %v754, %v928
      %v930 = vpop.f32.mrf.mxu0
      %931 = vdwg.mxu0
      %v932 = vsel %vm773, %v929, -inf
      %933 = vmax.xlane.f32.xlu0 %v932
      %v934 = vpop.xlane.xlu0 %933
      %v935 = vsub.f32 %v929, %v934
      %v936 = vmul.f32 %v935, 1.442695
      %v937 = vpow.pop %v936
      %v938 = vsel %vm773, %v937, 0.0
      %939 = vadd.xlane.f32.xlu0 %v938
      %v940 = vpop.xlane.xlu0 %939
      %v941 = vrcp.pop %v940
      %v942 = vmul.f32 %v937, %v941
      %v943 = vpack.c.bf16 %v740, %v740
      %v944 = vpack.c.bf16 %v942, %v942
      %v946 = vsel %vm773, %v943, 0
      %v949 = vsel %vm773, %v944, 0
      %951 = vmatpush.bf16.xpose.msra.mxu0 0
      %952 = vmatpush.bf16.xpose.msra.mxu0 0
      %953 = vmatpush.bf16.xpose.msra.mxu0 0
      %954 = vmatpush.bf16.xpose.msra.mxu0 0
      %955 = vmatpush.bf16.xpose.msra.mxu0 0
      %956 = vmatpush.bf16.xpose.msra.mxu0 0
      %957 = vmatpush.bf16.xpose.msra.mxu0 0
      %958 = vmatpush.bf16.xpose.msra.mxu0 %v949
      %959 = vmatmul.bf16.gmra.mxu0 %v946
      %v960 = vpop.f32.mrf.mxu0
      %v961 = vadd.f32 0.0, %v960
      %v962 = vpop.f32.mrf.mxu0
      %963 = vdwg.mxu0
      %v964 = vpack.c.bf16 %v722, %v722
      %v965 = vpack.c.bf16 %v732, %v732
      %966 = vxpose.xlu0.c.b16.start [1/8] %v964, 128
      %967 = vxpose.xlu0.c.b16.cont [2/8] 0, 128
      %968 = vxpose.xlu0.c.b16.cont [3/8] 0, 128
      %969 = vxpose.xlu0.c.b16.cont [4/8] 0, 128
      %970 = vxpose.xlu0.c.b16.cont [5/8] 0, 128
      %971 = vxpose.xlu0.c.b16.cont [6/8] 0, 128
      %972 = vxpose.xlu0.c.b16.cont [7/8] 0, 128
      %973 = vxpose.xlu0.c.b16.end [8/8] 0, 128
      %v974 = vpop.trf.xlu0
      %v975 = vpop.trf.xlu0
      %v976 = vpop.trf.xlu0
      %v977 = vpop.trf.xlu0
      %v978 = vpop.trf.xlu0
      %v979 = vpop.trf.xlu0
      %v980 = vpop.trf.xlu0
      %v981 = vpop.trf.xlu0
      %v983 = vsel %vm773, %v974, 0
      %v986 = vsel %vm777, %v965, 0
      %988 = vmatpush.bf16.msra.mxu0 0
      %989 = vmatpush.bf16.msra.mxu0 0
      %990 = vmatpush.bf16.msra.mxu0 0
      %991 = vmatpush.bf16.msra.mxu0 0
      %992 = vmatpush.bf16.msra.mxu0 0
      %993 = vmatpush.bf16.msra.mxu0 0
      %994 = vmatpush.bf16.msra.mxu0 0
      %995 = vmatpush.bf16.msra.mxu0 %v986
      %996 = vmatmul.bf16.gmra.mxu0 %v983
      %v997 = vpop.f32.mrf.mxu0
      %v998 = vadd.f32 %v754, %v997
      %v999 = vpop.f32.mrf.mxu0
      %1000 = vdwg.mxu0
      %v1001 = vsel %vm773, %v998, -inf
      %1002 = vmax.xlane.f32.xlu0 %v1001
      %v1003 = vpop.xlane.xlu0 %1002
      %v1004 = vsub.f32 %v998, %v1003
      %v1005 = vmul.f32 %v1004, 1.442695
      %v1006 = vpow.pop %v1005
      %v1007 = vsel %vm773, %v1006, 0.0
      %1008 = vadd.xlane.f32.xlu0 %v1007
      %v1009 = vpop.xlane.xlu0 %1008
      %v1010 = vrcp.pop %v1009
      %v1011 = vmul.f32 %v1006, %v1010
      %v1012 = vpack.c.bf16 %v742, %v742
      %v1013 = vpack.c.bf16 %v1011, %v1011
      %v1015 = vsel %vm773, %v1012, 0
      %v1018 = vsel %vm773, %v1013, 0
      %1020 = vmatpush.bf16.xpose.msra.mxu0 0
      %1021 = vmatpush.bf16.xpose.msra.mxu0 0
      %1022 = vmatpush.bf16.xpose.msra.mxu0 0
      %1023 = vmatpush.bf16.xpose.msra.mxu0 0
      %1024 = vmatpush.bf16.xpose.msra.mxu0 0
      %1025 = vmatpush.bf16.xpose.msra.mxu0 0
      %1026 = vmatpush.bf16.xpose.msra.mxu0 0
      %1027 = vmatpush.bf16.xpose.msra.mxu0 %v1018
      %1028 = vmatmul.bf16.gmra.mxu0 %v1015
      %v1029 = vpop.f32.mrf.mxu0
      %v1030 = vadd.f32 0.0, %v1029
      %v1031 = vpop.f32.mrf.mxu0
      %1032 = vdwg.mxu0
      %v1033 = vpack.c.bf16 %v892, %v823
      %v1034 = vpack.c.bf16 %v1030, %v961
      %v1036 = vperm.slane %v748, 0
      %1038 = vxpose.xlu0.c.b16.start [1/8] %v1033, 128
      %1039 = vxpose.xlu0.c.b16.cont [2/8] %v1034, 128
      %1040 = vxpose.xlu0.c.b16.cont [3/8] 0, 128
      %1041 = vxpose.xlu0.c.b16.cont [4/8] 0, 128
      %1042 = vxpose.xlu0.c.b16.cont [5/8] 0, 128
      %1043 = vxpose.xlu0.c.b16.cont [6/8] 0, 128
      %1044 = vxpose.xlu0.c.b16.cont [7/8] 0, 128
      %1045 = vxpose.xlu0.c.b16.end [8/8] 0, 128
      %v1046 = vpop.trf.xlu0
      %v1047 = vpop.trf.xlu0
      %v1048 = vpop.trf.xlu0
      %v1049 = vpop.trf.xlu0
      %v1050 = vpop.trf.xlu0
      %v1051 = vpop.trf.xlu0
      %v1052 = vpop.trf.xlu0
      %v1053 = vpop.trf.xlu0
      %v1058 = vunpack.c.l.b16 %v744
      %v1059 = vunpack.c.l.b16 %v745
      %v1060 = vunpack.c.l.b16 %v746
      %v1061 = vunpack.c.l.b16 %v747
      %v1062 = vpack.c.b16 %v1059, %v1058
      %v1063 = vpack.c.b16 %v1061, %v1060
      %v1067 = vsel %vm683, %v1046, 0
      %1069 = vmatpush.bf16.msra.mxu0 0
      %1070 = vmatpush.bf16.msra.mxu0 0
      %1071 = vmatpush.bf16.msra.mxu0 0
      %1072 = vmatpush.bf16.msra.mxu0 0
      %1073 = vmatpush.bf16.msra.mxu0 0
      %1074 = vmatpush.bf16.msra.mxu0 0
      %1075 = vmatpush.bf16.msra.mxu0 %v1063
      %1076 = vmatpush.bf16.msra.mxu0 %v1062
      %1077 = vmatmul.bf16.gmra.mxu0 %v1067
      %v1078 = vpop.f32.mrf.mxu0
      %v1079 = vadd.f32 %v1036, %v1078
      %v1080 = vpop.f32.mrf.mxu0
      %1081 = vdwg.mxu0
      %v1082 = vadd.f32 %v565, %v1079
      %v1083 = vld [vmem:[%s16] sm:$0x1]
      %v1084 = vld [vmem:[%s16 + $0x1] sm:$0x1]
      %v1085 = vsel %vm683, %v1082, 0.0
      %1086 = vadd.xlane.f32.xlu0 %v1085
      %v1087 = vpop.xlane.xlu0 %1086
      %v1088 = vrcp.pop 32.0
      %v1089 = vmul.f32 32.0, %v1088
      %v1090 = vsub.f32 1.0, %v1089
      %v1091 = vmul.f32 %v1088, %v1090
      %v1092 = vadd.f32 %v1088, %v1091
      %vm1093 = vweird.f32 %v1088
      %v1094 = vsel %vm1093, %v1088, %v1092
      %v1095 = vmul.f32 %v1087, %v1094
      %v1096 = vsub.f32 %v1082, %v1095
      %v1097 = vmul.f32 %v1096, %v1096
      %v1098 = vsel %vm683, %v1097, 0.0
      %1099 = vadd.xlane.f32.xlu0 %v1098
      %v1100 = vpop.xlane.xlu0 %1099
      %v1101 = vmul.f32 %v1100, %v1094
      %v1102 = vadd.f32 %v1101, 1e-05
      %v1103 = vrsqrt.pop %v1102
      %v1104 = vmul.f32 %v1103, %v1102
      %v1105 = vmul.f32 %v1104, %v1103
      %v1106 = vmul.f32 0.5, %v1105
      %v1107 = vsub.f32 1.5, %v1106
      %v1108 = vmul.f32 %v1103, %v1107
      %vm1109 = vweird.f32 %v1102
      %vm1110 = vweird.f32 %v1103
      %vm1111 = vmor %vm1109, %vm1110
      %v1112 = vsel %vm1111, %v1103, %v1108
      %v1113 = vmul.f32 %v1096, %v1112
      %v1114 = vperm.slane %v1083, 0
      %v1115 = vmul.f32 %v1113, %v1114
      %v1116 = vperm.slane %v1084, 0
      %v1117 = vadd.f32 %v1115, %v1116
      %v1118 = vld [vmem:[%s6] sm:$0xf]
      %v1119 = vld [vmem:[%s6 + $0x4] sm:$0xf]
      %v1120 = vld [vmem:[%s6 + $0x8] sm:$0xf]
      %v1121 = vld [vmem:[%s6 + $0xc] sm:$0xf]
      %v1122 = vpack.c.bf16 %v1117, %v1117
      %v1123 = vld [vmem:[%s7] sm:$0xff]
      %v1124 = vld [vmem:[%s7 + $0x8] sm:$0xff]
      %v1125 = vld [vmem:[%s7 + $0x10] sm:$0xff]
      %v1126 = vld [vmem:[%s7 + $0x18] sm:$0xff]
      %1128 = vset.pattern.permute.xlu0 0
      %1129 = vperm.xlu0 %1128, %v1123
      %v1130 = vpop.permute.xlu0 %1129
      %1133 = vset.pattern.permute.xlu0 0
      %1134 = vperm.xlu0 %1133, %v1124
      %v1135 = vpop.permute.xlu0 %1134
      %1138 = vset.pattern.permute.xlu0 0
      %1139 = vperm.xlu0 %1138, %v1125
      %v1140 = vpop.permute.xlu0 %1139
      %1143 = vset.pattern.permute.xlu0 0
      %1144 = vperm.xlu0 %1143, %v1126
      %v1145 = vpop.permute.xlu0 %1144
      %v1151 = vunpack.c.l.b16 %v1118
      %v1152 = vunpack.c.l.b16 %v1119
      %v1153 = vunpack.c.l.b16 %v1120
      %v1154 = vunpack.c.l.b16 %v1121
      %v1155 = vpack.c.b16 %v1152, %v1151
      %v1156 = vpack.c.b16 %v1154, %v1153
      %v1158 = vsel %vm683, %v1155, 0
      %v1161 = vsel %vm683, %v1156, 0
      %v1164 = vsel %vm683, %v1122, 0
      %1166 = vmatpush.bf16.xpose.msra.mxu0 0
      %1167 = vmatpush.bf16.xpose.msra.mxu0 0
      %1168 = vmatpush.bf16.xpose.msra.mxu0 0
      %1169 = vmatpush.bf16.xpose.msra.mxu0 0
      %1170 = vmatpush.bf16.xpose.msra.mxu0 0
      %1171 = vmatpush.bf16.xpose.msra.mxu0 0
      %1172 = vmatpush.bf16.xpose.msra.mxu0 0
      %1173 = vmatpush.bf16.xpose.msra.mxu0 %v1164
      %1174 = vmatmul.bf16.gmra.mxu0 %v1158
      %v1175 = vpop.f32.mrf.mxu0
      %v1176 = vadd.f32 %v1130, %v1175
      %v1177 = vpop.f32.mrf.mxu0
      %v1178 = vadd.f32 %v1135, %v1177
      %1179 = vmatmul.bf16.gmra.mxu0 %v1161
      %v1180 = vpop.f32.mrf.mxu0
      %v1181 = vadd.f32 %v1140, %v1180
      %v1182 = vpop.f32.mrf.mxu0
      %v1183 = vadd.f32 %v1145, %v1182
      %1184 = vdwg.mxu0
      %v1185 = vld [vmem:[%s8] sm:$0xf]
      %v1186 = vld [vmem:[%s8 + $0x4] sm:$0xf]
      %v1187 = vld [vmem:[%s8 + $0x8] sm:$0xf]
      %v1188 = vld [vmem:[%s8 + $0xc] sm:$0xf]
      %v1189 = vld [vmem:[%s8 + $0x10] sm:$0xf]
      %v1190 = vld [vmem:[%s8 + $0x14] sm:$0xf]
      %v1191 = vld [vmem:[%s8 + $0x18] sm:$0xf]
      %v1192 = vld [vmem:[%s8 + $0x1c] sm:$0xf]
      %v1193 = vpack.c.bf16 %v567, %v566
      %v1194 = vld [vmem:[%s9] sm:$0xff]
      %v1195 = vld [vmem:[%s9 + $0x8] sm:$0xff]
      %v1196 = vld [vmem:[%s9 + $0x10] sm:$0xff]
      %v1197 = vld [vmem:[%s9 + $0x18] sm:$0xff]
      %v1198 = vld [vmem:[%s9 + $0x20] sm:$0xff]
      %v1199 = vld [vmem:[%s9 + $0x28] sm:$0xff]
      %v1200 = vld [vmem:[%s9 + $0x30] sm:$0xff]
      %v1201 = vld [vmem:[%s9 + $0x38] sm:$0xff]
      %1203 = vset.pattern.permute.xlu0 0
      %1204 = vperm.xlu0 %1203, %v1194
      %v1205 = vpop.permute.xlu0 %1204
      %1208 = vset.pattern.permute.xlu0 0
      %1209 = vperm.xlu0 %1208, %v1195
      %v1210 = vpop.permute.xlu0 %1209
      %1213 = vset.pattern.permute.xlu0 0
      %1214 = vperm.xlu0 %1213, %v1196
      %v1215 = vpop.permute.xlu0 %1214
      %1218 = vset.pattern.permute.xlu0 0
      %1219 = vperm.xlu0 %1218, %v1197
      %v1220 = vpop.permute.xlu0 %1219
      %1223 = vset.pattern.permute.xlu0 0
      %1224 = vperm.xlu0 %1223, %v1198
      %v1225 = vpop.permute.xlu0 %1224
      %1228 = vset.pattern.permute.xlu0 0
      %1229 = vperm.xlu0 %1228, %v1199
      %v1230 = vpop.permute.xlu0 %1229
      %1233 = vset.pattern.permute.xlu0 0
      %1234 = vperm.xlu0 %1233, %v1200
      %v1235 = vpop.permute.xlu0 %1234
      %1238 = vset.pattern.permute.xlu0 0
      %1239 = vperm.xlu0 %1238, %v1201
      %v1240 = vpop.permute.xlu0 %1239
      %v1250 = vunpack.c.l.b16 %v1185
      %v1251 = vunpack.c.l.b16 %v1186
      %v1252 = vunpack.c.l.b16 %v1187
      %v1253 = vunpack.c.l.b16 %v1188
      %v1254 = vunpack.c.l.b16 %v1189
      %v1255 = vunpack.c.l.b16 %v1190
      %v1256 = vunpack.c.l.b16 %v1191
      %v1257 = vunpack.c.l.b16 %v1192
      %v1258 = vpack.c.b16 %v1251, %v1250
      %v1259 = vpack.c.b16 %v1253, %v1252
      %v1260 = vpack.c.b16 %v1255, %v1254
      %v1261 = vpack.c.b16 %v1257, %v1256
      %v1263 = vsel %vm683, %v1258, 0
      %v1266 = vsel %vm683, %v1259, 0
      %v1269 = vsel %vm683, %v1260, 0
      %v1272 = vsel %vm683, %v1261, 0
      %v1275 = vsel %vm683, %v1193, 0
      %1277 = vmatpush.bf16.xpose.msra.mxu0 0
      %1278 = vmatpush.bf16.xpose.msra.mxu0 0
      %1279 = vmatpush.bf16.xpose.msra.mxu0 0
      %1280 = vmatpush.bf16.xpose.msra.mxu0 0
      %1281 = vmatpush.bf16.xpose.msra.mxu0 0
      %1282 = vmatpush.bf16.xpose.msra.mxu0 0
      %1283 = vmatpush.bf16.xpose.msra.mxu0 0
      %1284 = vmatpush.bf16.xpose.msra.mxu0 %v1275
      %1285 = vmatmul.bf16.gmra.mxu0 %v1263
      %v1286 = vpop.f32.mrf.mxu0
      %v1287 = vadd.f32 %v1205, %v1286
      %v1288 = vpop.f32.mrf.mxu0
      %v1289 = vadd.f32 %v1210, %v1288
      %1290 = vmatmul.bf16.gmra.mxu0 %v1266
      %v1291 = vpop.f32.mrf.mxu0
      %v1292 = vadd.f32 %v1215, %v1291
      %v1293 = vpop.f32.mrf.mxu0
      %v1294 = vadd.f32 %v1220, %v1293
      %1295 = vmatmul.bf16.gmra.mxu0 %v1269
      %v1296 = vpop.f32.mrf.mxu0
      %v1297 = vadd.f32 %v1225, %v1296
      %v1298 = vpop.f32.mrf.mxu0
      %v1299 = vadd.f32 %v1230, %v1298
      %1300 = vmatmul.bf16.gmra.mxu0 %v1272
      %v1301 = vpop.f32.mrf.mxu0
      %v1302 = vadd.f32 %v1235, %v1301
      %v1303 = vpop.f32.mrf.mxu0
      %v1304 = vadd.f32 %v1240, %v1303
      %1305 = vdwg.mxu0
      %v1306 = vld [vmem:[%s10] sm:$0xf]
      %v1307 = vld [vmem:[%s10 + $0x4] sm:$0xf]
      %v1308 = vld [vmem:[%s10 + $0x8] sm:$0xf]
      %v1309 = vld [vmem:[%s10 + $0xc] sm:$0xf]
      %v1310 = vld [vmem:[%s11] sm:$0x1]
      %v1311 = vpack.c.bf16 %v1176, %v1176
      %v1312 = vpack.c.bf16 %v1287, %v1287
      %1313 = vxpose.xlu0.c.b16.start [1/8] %v1311, 128
      %1314 = vxpose.xlu0.c.b16.cont [2/8] 0, 128
      %1315 = vxpose.xlu0.c.b16.cont [3/8] 0, 128
      %1316 = vxpose.xlu0.c.b16.cont [4/8] 0, 128
      %1317 = vxpose.xlu0.c.b16.cont [5/8] 0, 128
      %1318 = vxpose.xlu0.c.b16.cont [6/8] 0, 128
      %1319 = vxpose.xlu0.c.b16.cont [7/8] 0, 128
      %1320 = vxpose.xlu0.c.b16.end [8/8] 0, 128
      %v1321 = vpop.trf.xlu0
      %v1322 = vpop.trf.xlu0
      %v1323 = vpop.trf.xlu0
      %v1324 = vpop.trf.xlu0
      %v1325 = vpop.trf.xlu0
      %v1326 = vpop.trf.xlu0
      %v1327 = vpop.trf.xlu0
      %v1328 = vpop.trf.xlu0
      %v1330 = vsel %vm773, %v1321, 0
      %v1333 = vsel %vm777, %v1312, 0
      %1335 = vmatpush.bf16.msra.mxu0 0
      %1336 = vmatpush.bf16.msra.mxu0 0
      %1337 = vmatpush.bf16.msra.mxu0 0
      %1338 = vmatpush.bf16.msra.mxu0 0
      %1339 = vmatpush.bf16.msra.mxu0 0
      %1340 = vmatpush.bf16.msra.mxu0 0
      %1341 = vmatpush.bf16.msra.mxu0 0
      %1342 = vmatpush.bf16.msra.mxu0 %v1333
      %1343 = vmatmul.bf16.gmra.mxu0 %v1330
      %v1344 = vpop.f32.mrf.mxu0
      %v1345 = vadd.f32 0.0, %v1344
      %v1346 = vpop.f32.mrf.mxu0
      %1347 = vdwg.mxu0
      %vm1348 = vcmask 130048
      %v1349 = vsel %vm1348, %v1345, -inf
      %1350 = vmax.xlane.f32.xlu0 %v1349
      %v1351 = vpop.xlane.xlu0 %1350
      %v1352 = vsub.f32 %v1345, %v1351
      %v1353 = vmul.f32 %v1352, 1.442695
      %v1354 = vpow.pop %v1353
      %v1355 = vsel %vm1348, %v1354, 0.0
      %1356 = vadd.xlane.f32.xlu0 %v1355
      %v1357 = vpop.xlane.xlu0 %1356
      %v1358 = vrcp.pop %v1357
      %v1359 = vmul.f32 %v1354, %v1358
      %v1360 = vpack.c.bf16 %v1297, %v1297
      %v1361 = vpack.c.bf16 %v1359, %v1359
      %v1363 = vsel %vm1348, %v1360, 0
      %v1366 = vsel %vm1348, %v1361, 0
      %1368 = vmatpush.bf16.xpose.msra.mxu0 0
      %1369 = vmatpush.bf16.xpose.msra.mxu0 0
      %1370 = vmatpush.bf16.xpose.msra.mxu0 0
      %1371 = vmatpush.bf16.xpose.msra.mxu0 0
      %1372 = vmatpush.bf16.xpose.msra.mxu0 0
      %1373 = vmatpush.bf16.xpose.msra.mxu0 0
      %1374 = vmatpush.bf16.xpose.msra.mxu0 0
      %1375 = vmatpush.bf16.xpose.msra.mxu0 %v1366
      %1376 = vmatmul.bf16.gmra.mxu0 %v1363
      %v1377 = vpop.f32.mrf.mxu0
      %v1378 = vadd.f32 0.0, %v1377
      %v1379 = vpop.f32.mrf.mxu0
      %1380 = vdwg.mxu0
      %v1381 = vpack.c.bf16 %v1178, %v1178
      %v1382 = vpack.c.bf16 %v1289, %v1289
      %1383 = vxpose.xlu0.c.b16.start [1/8] %v1381, 128
      %1384 = vxpose.xlu0.c.b16.cont [2/8] 0, 128
      %1385 = vxpose.xlu0.c.b16.cont [3/8] 0, 128
      %1386 = vxpose.xlu0.c.b16.cont [4/8] 0, 128
      %1387 = vxpose.xlu0.c.b16.cont [5/8] 0, 128
      %1388 = vxpose.xlu0.c.b16.cont [6/8] 0, 128
      %1389 = vxpose.xlu0.c.b16.cont [7/8] 0, 128
      %1390 = vxpose.xlu0.c.b16.end [8/8] 0, 128
      %v1391 = vpop.trf.xlu0
      %v1392 = vpop.trf.xlu0
      %v1393 = vpop.trf.xlu0
      %v1394 = vpop.trf.xlu0
      %v1395 = vpop.trf.xlu0
      %v1396 = vpop.trf.xlu0
      %v1397 = vpop.trf.xlu0
      %v1398 = vpop.trf.xlu0
      %v1400 = vsel %vm773, %v1391, 0
      %v1403 = vsel %vm777, %v1382, 0
      %1405 = vmatpush.bf16.msra.mxu0 0
      %1406 = vmatpush.bf16.msra.mxu0 0
      %1407 = vmatpush.bf16.msra.mxu0 0
      %1408 = vmatpush.bf16.msra.mxu0 0
      %1409 = vmatpush.bf16.msra.mxu0 0
      %1410 = vmatpush.bf16.msra.mxu0 0
      %1411 = vmatpush.bf16.msra.mxu0 0
      %1412 = vmatpush.bf16.msra.mxu0 %v1403
      %1413 = vmatmul.bf16.gmra.mxu0 %v1400
      %v1414 = vpop.f32.mrf.mxu0
      %v1415 = vadd.f32 0.0, %v1414
      %v1416 = vpop.f32.mrf.mxu0
      %1417 = vdwg.mxu0
      %v1418 = vsel %vm1348, %v1415, -inf
      %1419 = vmax.xlane.f32.xlu0 %v1418
      %v1420 = vpop.xlane.xlu0 %1419
      %v1421 = vsub.f32 %v1415, %v1420
      %v1422 = vmul.f32 %v1421, 1.442695
      %v1423 = vpow.pop %v1422
      %v1424 = vsel %vm1348, %v1423, 0.0
      %1425 = vadd.xlane.f32.xlu0 %v1424
      %v1426 = vpop.xlane.xlu0 %1425
      %v1427 = vrcp.pop %v1426
      %v1428 = vmul.f32 %v1423, %v1427
      %v1429 = vpack.c.bf16 %v1299, %v1299
      %v1430 = vpack.c.bf16 %v1428, %v1428
      %v1432 = vsel %vm1348, %v1429, 0
      %v1435 = vsel %vm1348, %v1430, 0
      %1437 = vmatpush.bf16.xpose.msra.mxu0 0
      %1438 = vmatpush.bf16.xpose.msra.mxu0 0
      %1439 = vmatpush.bf16.xpose.msra.mxu0 0
      %1440 = vmatpush.bf16.xpose.msra.mxu0 0
      %1441 = vmatpush.bf16.xpose.msra.mxu0 0
      %1442 = vmatpush.bf16.xpose.msra.mxu0 0
      %1443 = vmatpush.bf16.xpose.msra.mxu0 0
      %1444 = vmatpush.bf16.xpose.msra.mxu0 %v1435
      %1445 = vmatmul.bf16.gmra.mxu0 %v1432
      %v1446 = vpop.f32.mrf.mxu0
      %v1447 = vadd.f32 0.0, %v1446
      %v1448 = vpop.f32.mrf.mxu0
      %1449 = vdwg.mxu0
      %v1450 = vpack.c.bf16 %v1181, %v1181
      %v1451 = vpack.c.bf16 %v1292, %v1292
      %1452 = vxpose.xlu0.c.b16.start [1/8] %v1450, 128
      %1453 = vxpose.xlu0.c.b16.cont [2/8] 0, 128
      %1454 = vxpose.xlu0.c.b16.cont [3/8] 0, 128
      %1455 = vxpose.xlu0.c.b16.cont [4/8] 0, 128
      %1456 = vxpose.xlu0.c.b16.cont [5/8] 0, 128
      %1457 = vxpose.xlu0.c.b16.cont [6/8] 0, 128
      %1458 = vxpose.xlu0.c.b16.cont [7/8] 0, 128
      %1459 = vxpose.xlu0.c.b16.end [8/8] 0, 128
      %v1460 = vpop.trf.xlu0
      %v1461 = vpop.trf.xlu0
      %v1462 = vpop.trf.xlu0
      %v1463 = vpop.trf.xlu0
      %v1464 = vpop.trf.xlu0
      %v1465 = vpop.trf.xlu0
      %v1466 = vpop.trf.xlu0
      %v1467 = vpop.trf.xlu0
      %v1469 = vsel %vm773, %v1460, 0
      %v1472 = vsel %vm777, %v1451, 0
      %1474 = vmatpush.bf16.msra.mxu0 0
      %1475 = vmatpush.bf16.msra.mxu0 0
      %1476 = vmatpush.bf16.msra.mxu0 0
      %1477 = vmatpush.bf16.msra.mxu0 0
      %1478 = vmatpush.bf16.msra.mxu0 0
      %1479 = vmatpush.bf16.msra.mxu0 0
      %1480 = vmatpush.bf16.msra.mxu0 0
      %1481 = vmatpush.bf16.msra.mxu0 %v1472
      %1482 = vmatmul.bf16.gmra.mxu0 %v1469
      %v1483 = vpop.f32.mrf.mxu0
      %v1484 = vadd.f32 0.0, %v1483
      %v1485 = vpop.f32.mrf.mxu0
      %1486 = vdwg.mxu0
      %v1487 = vsel %vm1348, %v1484, -inf
      %1488 = vmax.xlane.f32.xlu0 %v1487
      %v1489 = vpop.xlane.xlu0 %1488
      %v1490 = vsub.f32 %v1484, %v1489
      %v1491 = vmul.f32 %v1490, 1.442695
      %v1492 = vpow.pop %v1491
      %v1493 = vsel %vm1348, %v1492, 0.0
      %1494 = vadd.xlane.f32.xlu0 %v1493
      %v1495 = vpop.xlane.xlu0 %1494
      %v1496 = vrcp.pop %v1495
      %v1497 = vmul.f32 %v1492, %v1496
      %v1498 = vpack.c.bf16 %v1302, %v1302
      %v1499 = vpack.c.bf16 %v1497, %v1497
      %v1501 = vsel %vm1348, %v1498, 0
      %v1504 = vsel %vm1348, %v1499, 0
      %1506 = vmatpush.bf16.xpose.msra.mxu0 0
      %1507 = vmatpush.bf16.xpose.msra.mxu0 0
      %1508 = vmatpush.bf16.xpose.msra.mxu0 0
      %1509 = vmatpush.bf16.xpose.msra.mxu0 0
      %1510 = vmatpush.bf16.xpose.msra.mxu0 0
      %1511 = vmatpush.bf16.xpose.msra.mxu0 0
      %1512 = vmatpush.bf16.xpose.msra.mxu0 0
      %1513 = vmatpush.bf16.xpose.msra.mxu0 %v1504
      %1514 = vmatmul.bf16.gmra.mxu0 %v1501
      %v1515 = vpop.f32.mrf.mxu0
      %v1516 = vadd.f32 0.0, %v1515
      %v1517 = vpop.f32.mrf.mxu0
      %1518 = vdwg.mxu0
      %v1519 = vpack.c.bf16 %v1183, %v1183
      %v1520 = vpack.c.bf16 %v1294, %v1294
      %1521 = vxpose.xlu0.c.b16.start [1/8] %v1519, 128
      %1522 = vxpose.xlu0.c.b16.cont [2/8] 0, 128
      %1523 = vxpose.xlu0.c.b16.cont [3/8] 0, 128
      %1524 = vxpose.xlu0.c.b16.cont [4/8] 0, 128
      %1525 = vxpose.xlu0.c.b16.cont [5/8] 0, 128
      %1526 = vxpose.xlu0.c.b16.cont [6/8] 0, 128
      %1527 = vxpose.xlu0.c.b16.cont [7/8] 0, 128
      %1528 = vxpose.xlu0.c.b16.end [8/8] 0, 128
      %v1529 = vpop.trf.xlu0
      %v1530 = vpop.trf.xlu0
      %v1531 = vpop.trf.xlu0
      %v1532 = vpop.trf.xlu0
      %v1533 = vpop.trf.xlu0
      %v1534 = vpop.trf.xlu0
      %v1535 = vpop.trf.xlu0
      %v1536 = vpop.trf.xlu0
      %v1538 = vsel %vm773, %v1529, 0
      %v1541 = vsel %vm777, %v1520, 0
      %1543 = vmatpush.bf16.msra.mxu0 0
      %1544 = vmatpush.bf16.msra.mxu0 0
      %1545 = vmatpush.bf16.msra.mxu0 0
      %1546 = vmatpush.bf16.msra.mxu0 0
      %1547 = vmatpush.bf16.msra.mxu0 0
      %1548 = vmatpush.bf16.msra.mxu0 0
      %1549 = vmatpush.bf16.msra.mxu0 0
      %1550 = vmatpush.bf16.msra.mxu0 %v1541
      %1551 = vmatmul.bf16.gmra.mxu0 %v1538
      %v1552 = vpop.f32.mrf.mxu0
      %v1553 = vadd.f32 0.0, %v1552
      %v1554 = vpop.f32.mrf.mxu0
      %1555 = vdwg.mxu0
      %v1556 = vsel %vm1348, %v1553, -inf
      %1557 = vmax.xlane.f32.xlu0 %v1556
      %v1558 = vpop.xlane.xlu0 %1557
      %v1559 = vsub.f32 %v1553, %v1558
      %v1560 = vmul.f32 %v1559, 1.442695
      %v1561 = vpow.pop %v1560
      %v1562 = vsel %vm1348, %v1561, 0.0
      %1563 = vadd.xlane.f32.xlu0 %v1562
      %v1564 = vpop.xlane.xlu0 %1563
      %v1565 = vrcp.pop %v1564
      %v1566 = vmul.f32 %v1561, %v1565
      %v1567 = vpack.c.bf16 %v1304, %v1304
      %v1568 = vpack.c.bf16 %v1566, %v1566
      %v1570 = vsel %vm1348, %v1567, 0
      %v1573 = vsel %vm1348, %v1568, 0
      %1575 = vmatpush.bf16.xpose.msra.mxu0 0
      %1576 = vmatpush.bf16.xpose.msra.mxu0 0
      %1577 = vmatpush.bf16.xpose.msra.mxu0 0
      %1578 = vmatpush.bf16.xpose.msra.mxu0 0
      %1579 = vmatpush.bf16.xpose.msra.mxu0 0
      %1580 = vmatpush.bf16.xpose.msra.mxu0 0
      %1581 = vmatpush.bf16.xpose.msra.mxu0 0
      %1582 = vmatpush.bf16.xpose.msra.mxu0 %v1573
      %1583 = vmatmul.bf16.gmra.mxu0 %v1570
      %v1584 = vpop.f32.mrf.mxu0
      %v1585 = vadd.f32 0.0, %v1584
      %v1586 = vpop.f32.mrf.mxu0
      %1587 = vdwg.mxu0
      %v1588 = vpack.c.bf16 %v1447, %v1378
      %v1589 = vpack.c.bf16 %v1585, %v1516
      %v1591 = vperm.slane %v1310, 0
      %1593 = vxpose.xlu0.c.b16.start [1/8] %v1588, 128
      %1594 = vxpose.xlu0.c.b16.cont [2/8] %v1589, 128
      %1595 = vxpose.xlu0.c.b16.cont [3/8] 0, 128
      %1596 = vxpose.xlu0.c.b16.cont [4/8] 0, 128
      %1597 = vxpose.xlu0.c.b16.cont [5/8] 0, 128
      %1598 = vxpose.xlu0.c.b16.cont [6/8] 0, 128
      %1599 = vxpose.xlu0.c.b16.cont [7/8] 0, 128
      %1600 = vxpose.xlu0.c.b16.end [8/8] 0, 128
      %v1601 = vpop.trf.xlu0
      %v1602 = vpop.trf.xlu0
      %v1603 = vpop.trf.xlu0
      %v1604 = vpop.trf.xlu0
      %v1605 = vpop.trf.xlu0
      %v1606 = vpop.trf.xlu0
      %v1607 = vpop.trf.xlu0
      %v1608 = vpop.trf.xlu0
      %v1613 = vunpack.c.l.b16 %v1306
      %v1614 = vunpack.c.l.b16 %v1307
      %v1615 = vunpack.c.l.b16 %v1308
      %v1616 = vunpack.c.l.b16 %v1309
      %v1617 = vpack.c.b16 %v1614, %v1613
      %v1618 = vpack.c.b16 %v1616, %v1615
      %v1622 = vsel %vm683, %v1601, 0
      %1624 = vmatpush.bf16.msra.mxu0 0
      %1625 = vmatpush.bf16.msra.mxu0 0
      %1626 = vmatpush.bf16.msra.mxu0 0
      %1627 = vmatpush.bf16.msra.mxu0 0
      %1628 = vmatpush.bf16.msra.mxu0 0
      %1629 = vmatpush.bf16.msra.mxu0 0
      %1630 = vmatpush.bf16.msra.mxu0 %v1618
      %1631 = vmatpush.bf16.msra.mxu0 %v1617
      %1632 = vmatmul.bf16.gmra.mxu0 %v1622
      %v1633 = vpop.f32.mrf.mxu0
      %v1634 = vadd.f32 %v1591, %v1633
      %v1635 = vpop.f32.mrf.mxu0
      %1636 = vdwg.mxu0
      %v1637 = vadd.f32 %v1117, %v1634
      %v1638 = vld [vmem:[%s16 + $0x2] sm:$0x1]
      %v1639 = vld [vmem:[%s16 + $0x3] sm:$0x1]
      %v1640 = vsel %vm683, %v1637, 0.0
      %1641 = vadd.xlane.f32.xlu0 %v1640
      %v1642 = vpop.xlane.xlu0 %1641
      %v1643 = vmul.f32 %v1642, %v1094
      %v1644 = vsub.f32 %v1637, %v1643
      %v1645 = vmul.f32 %v1644, %v1644
      %v1646 = vsel %vm683, %v1645, 0.0
      %1647 = vadd.xlane.f32.xlu0 %v1646
      %v1648 = vpop.xlane.xlu0 %1647
      %v1649 = vmul.f32 %v1648, %v1094
      %v1650 = vadd.f32 %v1649, 1e-05
      %v1651 = vrsqrt.pop %v1650
      %v1652 = vmul.f32 %v1651, %v1650
      %v1653 = vmul.f32 %v1652, %v1651
      %v1654 = vmul.f32 0.5, %v1653
      %v1655 = vsub.f32 1.5, %v1654
      %v1656 = vmul.f32 %v1651, %v1655
      %vm1657 = vweird.f32 %v1650
      %vm1658 = vweird.f32 %v1651
      %vm1659 = vmor %vm1657, %vm1658
      %v1660 = vsel %vm1659, %v1651, %v1656
      %v1661 = vmul.f32 %v1644, %v1660
      %v1662 = vperm.slane %v1638, 0
      %v1663 = vmul.f32 %v1661, %v1662
      %v1664 = vperm.slane %v1639, 0
      %v1665 = vadd.f32 %v1663, %v1664
      %v1666 = vld [vmem:[%s12] sm:$0xf]
      %v1667 = vld [vmem:[%s12 + $0x4] sm:$0xf]
      %v1668 = vld [vmem:[%s12 + $0x8] sm:$0xf]
      %v1669 = vld [vmem:[%s12 + $0xc] sm:$0xf]
      %v1670 = vpack.c.bf16 %v1665, %v1665
      %v1671 = vld [vmem:[%s13] sm:$0x1]
      %v1673 = vperm.slane %v1671, 0
      %v1679 = vunpack.c.l.b16 %v1666
      %v1680 = vunpack.c.l.b16 %v1667
      %v1681 = vunpack.c.l.b16 %v1668
      %v1682 = vunpack.c.l.b16 %v1669
      %v1683 = vpack.c.b16 %v1680, %v1679
      %v1684 = vpack.c.b16 %v1682, %v1681
      %v1688 = vsel %vm683, %v1670, 0
      %1690 = vmatpush.bf16.msra.mxu0 0
      %1691 = vmatpush.bf16.msra.mxu0 0
      %1692 = vmatpush.bf16.msra.mxu0 0
      %1693 = vmatpush.bf16.msra.mxu0 0
      %1694 = vmatpush.bf16.msra.mxu0 0
      %1695 = vmatpush.bf16.msra.mxu0 0
      %1696 = vmatpush.bf16.msra.mxu0 %v1684
      %1697 = vmatpush.bf16.msra.mxu0 %v1683
      %1698 = vmatmul.bf16.gmra.mxu0 %v1688
      %v1699 = vpop.f32.mrf.mxu0
      %v1700 = vadd.f32 %v1673, %v1699
      %v1701 = vpop.f32.mrf.mxu0
      %1702 = vdwg.mxu0
      %v1703 = vmax.f32 %v1700, 0.0
      %v1704 = vld [vmem:[%s14] sm:$0xf]
      %v1705 = vld [vmem:[%s14 + $0x4] sm:$0xf]
      %v1706 = vld [vmem:[%s14 + $0x8] sm:$0xf]
      %v1707 = vld [vmem:[%s14 + $0xc] sm:$0xf]
      %v1708 = vld [vmem:[%s14 + $0x10] sm:$0xf]
      %v1709 = vld [vmem:[%s14 + $0x14] sm:$0xf]
      %v1710 = vld [vmem:[%s14 + $0x18] sm:$0xf]
      %v1711 = vld [vmem:[%s14 + $0x1c] sm:$0xf]
      %v1712 = vpack.c.bf16 %v1703, %v1703
      %v1713 = vld [vmem:[%s15] sm:$0x1]
      %v1715 = vperm.slane %v1713, 0
      %v1725 = vunpack.c.l.b16 %v1704
      %v1726 = vunpack.c.l.b16 %v1705
      %v1727 = vunpack.c.l.b16 %v1706
      %v1728 = vunpack.c.l.b16 %v1707
      %v1729 = vunpack.c.l.b16 %v1708
      %v1730 = vunpack.c.l.b16 %v1709
      %v1731 = vunpack.c.l.b16 %v1710
      %v1732 = vunpack.c.l.b16 %v1711
      %v1733 = vpack.c.b16 %v1726, %v1725
      %v1734 = vpack.c.b16 %v1728, %v1727
      %v1735 = vpack.c.b16 %v1730, %v1729
      %v1736 = vpack.c.b16 %v1732, %v1731
      %vm1741 = vcmask 523264
      %v1743 = vsel %vm1741, %v1712, 0
      %1745 = vmatpush.bf16.msra.mxu0 0
      %1746 = vmatpush.bf16.msra.mxu0 0
      %1747 = vmatpush.bf16.msra.mxu0 0
      %1748 = vmatpush.bf16.msra.mxu0 0
      %1749 = vmatpush.bf16.msra.mxu0 %v1736
      %1750 = vmatpush.bf16.msra.mxu0 %v1735
      %1751 = vmatpush.bf16.msra.mxu0 %v1734
      %1752 = vmatpush.bf16.msra.mxu0 %v1733
      %1753 = vmatmul.bf16.gmra.mxu0 %v1743
      %v1754 = vpop.f32.mrf.mxu0
      %v1755 = vadd.f32 %v1715, %v1754
      %v1756 = vpop.f32.mrf.mxu0
      %1757 = vdwg.mxu0
      %v1758 = vadd.f32 %v1665, %v1755
      %v1759 = vld [vmem:[%s16 + $0x4] sm:$0x1]
      %v1760 = vld [vmem:[%s16 + $0x5] sm:$0x1]
      %v1761 = vsel %vm683, %v1758, 0.0
      %1762 = vadd.xlane.f32.xlu0 %v1761
      %v1763 = vpop.xlane.xlu0 %1762
      %v1764 = vmul.f32 %v1763, %v1094
      %v1765 = vsub.f32 %v1758, %v1764
      %v1766 = vmul.f32 %v1765, %v1765
      %v1767 = vsel %vm683, %v1766, 0.0
      %1768 = vadd.xlane.f32.xlu0 %v1767
      %v1769 = vpop.xlane.xlu0 %1768
      %v1770 = vmul.f32 %v1769, %v1094
      %v1771 = vadd.f32 %v1770, 1e-05
      %v1772 = vrsqrt.pop %v1771
      %v1773 = vmul.f32 %v1772, %v1771
      %v1774 = vmul.f32 %v1773, %v1772
      %v1775 = vmul.f32 0.5, %v1774
      %v1776 = vsub.f32 1.5, %v1775
      %v1777 = vmul.f32 %v1772, %v1776
      %vm1778 = vweird.f32 %v1771
      %vm1779 = vweird.f32 %v1772
      %vm1780 = vmor %vm1778, %vm1779
      %v1781 = vsel %vm1780, %v1772, %v1777
      %v1782 = vmul.f32 %v1765, %v1781
      %v1783 = vperm.slane %v1759, 0
      %v1784 = vmul.f32 %v1782, %v1783
      %v1785 = vperm.slane %v1760, 0
      %v1786 = vadd.f32 %v1784, %v1785
      %1787 = vst.msk [vmem:[%s563] sm:$0xff] %vm683, %v1786
      %p1788 = scmp.lt.s32.totalorder %s28, 1
      %s1789 = scalar_select %p1788, %s28, 1
      %s1790 = smul.addr %s1789, 8
      %s1791 = scalar_lea.vmem %s17, %s1790
      // Predicated region
      $region89: #{audio_captioning_forward.9} parent=87 // pred_check
        %p1792 = pneg %p413
      $region90: #{audio_captioning_forward.9} parent=87 // pred_check_branch
        %1794 = sbr.rel (%p1792) target = $region92
      $region91: #{audio_captioning_forward.9} parent=87 // pred_region
        _
      $region92: #{audio_captioning_forward.9} parent=87 // pred_fallthru
        _
    $region88: #{audio_captioning_forward.9} parent=5 // pred_fallthru
      _
    %p1795 = scmp.le.s32.totalorder 2, %s23
    // Predicated region
    $region93: #{audio_captioning_forward.9} parent=5 // pred_check
      %p1796 = pneg %p1795
    $region94: #{audio_captioning_forward.9} parent=5 // pred_check_branch
      %1798 = sbr.rel (%p1796) target = $region96
    $region95: #{audio_captioning_forward.9} parent=5 // pred_region
      %s1799 = ssub.s32 %s23, 2
      // Predicated region
      $region97: #{audio_captioning_forward.9} parent=95 // pred_check
        %p1800 = pneg %p419
      $region98: #{audio_captioning_forward.9} parent=95 // pred_check_branch
        %1802 = sbr.rel (%p1800) target = $region100
      $region99: #{audio_captioning_forward.9} parent=95 // pred_region
        %p1803 = scmp.lt.s32.totalorder %s29, 1
        %s1804 = scalar_select %p1803, %s29, 1
        %s1805 = smul.addr %s1804, 8
        %s1806 = scalar_lea.vmem %s17, %s1805
      $region100: #{audio_captioning_forward.9} parent=95 // pred_fallthru
        _
    $region96: #{audio_captioning_forward.9} parent=5 // pred_fallthru
      _
  $region6: #{audio_captioning_forward.9} parent=0 // loop_footer
    %s27 = sadd.s32 1, %s23
  $region7: #{audio_captioning_forward.9} parent=0 // loop_footer_branch
    %22 = sbr.rel target = $region3
  $region8: #{audio_captioning_forward.9} parent=0 // loop_exit
    _

</llo_original>
